<compile_context>
chip_gen: v7x
topology: tpu7x:2x2x1
jax: 0.10.0
libtpu: 0.0.40
codegen_flags: <defaults>
</compile_context>

<pallas_src>
import jax
import jax.numpy as jnp
from jax.experimental import pallas as pl
from jax.experimental.pallas import tpu as pltpu


BN_EPS = 1e-5
NEG_SLOPE = 0.2
LANE = 128

try:  # size the VMEM limit to the actual part (v5e/v6e: 128 MiB, v7x: 64 MiB)
    _VMEM_CAP = int(pltpu.get_tpu_info().vmem_capacity_bytes)
except Exception:  # conservative fallback
    _VMEM_CAP = 64 * 1024 * 1024
VMEM_LIMIT_BYTES = max(32 * 1024 * 1024,
                       min(100 * 1024 * 1024, (3 * _VMEM_CAP) // 4))


def _round_up(x, m):
    return ((x + m - 1) // m) * m


def _row_tile(ho, wo, n):
    """Largest divisor of ho with <=1024 output rows per tile, keeping >=2
    grid steps overall so dual-TensorCore parts get parallel work."""
    th = 1
    for d in range(1, ho + 1):
        if ho % d == 0 and d * wo <= 1024:
            th = d
    if n * (ho // th) < 2:
        for d in range(th - 1, 0, -1):
            if ho % d == 0:
                th = d
                break
    return th


# --------------------------------------------------------------------------
# Pass 1: direct conv (in-kernel tap accumulation on the MXU) + BN partials
# --------------------------------------------------------------------------
def _conv_stats(xp, w_taps, n, ho, wo, th, ksize):
    """y = conv(xp, w) with taps accumulated in-kernel; also per-tile BN stats.

    xp:     (N, Hin, Win, Cin_pad) bf16, spatially padded (space-to-depth for
            the stride-2 layer).
    w_taps: (ksize*ksize, Cin_pad, Cout_pad) bf16.
    Returns y (N, ho, wo, Cout_pad) bf16 and stats (N, ho//th, 2, Cout_pad) f32
            (row 0 = per-channel sum, row 1 = per-channel sum of squares).
    """
    _, hin, w_in, cin_pad = xp.shape
    taps, _, cout_pad = w_taps.shape
    n_tiles = ho // th
    m_rows = th * wo

    def kernel(x_ref, w_ref, y_ref, st_ref, acc_ref):
        row0 = pl.program_id(1) * th
        for t in range(taps):
            a, b = divmod(t, ksize)
            window = x_ref[pl.ds(row0 + a, th), pl.ds(b, wo), :]
            contrib = jnp.dot(window.reshape(m_rows, cin_pad), w_ref[t],
                              preferred_element_type=jnp.float32)
            if t == 0:
                acc_ref[...] = contrib
            else:
                acc_ref[...] += contrib
        acc = acc_ref[...]
        # bf16 intermediate activation; BN stats from the f32 accumulator.
        y_ref[...] = acc.reshape(th, wo, cout_pad).astype(y_ref.dtype)
        st_ref[0:1, :] = jnp.sum(acc, axis=0, keepdims=True)
        st_ref[1:2, :] = jnp.sum(acc * acc, axis=0, keepdims=True)

    cost = pl.CostEstimate(
        flops=2 * n * ho * wo * taps * cin_pad * cout_pad,
        transcendentals=0,
        bytes_accessed=(n * hin * w_in * cin_pad * 2
                        + taps * cin_pad * cout_pad * 2
                        + n * ho * wo * cout_pad * 2
                        + n * n_tiles * 2 * cout_pad * 4),
    )
    return pl.pallas_call(
        kernel,
        out_shape=(
            jax.ShapeDtypeStruct((n, ho, wo, cout_pad), jnp.bfloat16),
            jax.ShapeDtypeStruct((n, n_tiles, 2, cout_pad), jnp.float32),
        ),
        grid_spec=pltpu.PrefetchScalarGridSpec(
            num_scalar_prefetch=0,
            grid=(n, n_tiles),
            in_specs=[
                # Whole padded image per batch element; block index is constant
                # across row tiles so it is DMA'd once per image.
                pl.BlockSpec((None, hin, w_in, cin_pad),
                             lambda i, r: (i, 0, 0, 0)),
                pl.BlockSpec((taps, cin_pad, cout_pad),
                             lambda i, r: (0, 0, 0)),
            ],
            out_specs=[
                pl.BlockSpec((None, th, wo, cout_pad),
                             lambda i, r: (i, r, 0, 0)),
                pl.BlockSpec((None, None, 2, cout_pad),
                             lambda i, r: (i, r, 0, 0)),
            ],
            scratch_shapes=[pltpu.VMEM((m_rows, cout_pad), jnp.float32)],
        ),
        compiler_params=pltpu.CompilerParams(
            dimension_semantics=("parallel", "parallel"),
            vmem_limit_bytes=VMEM_LIMIT_BYTES,
        ),
        cost_estimate=cost,
    )(xp, w_taps)


# --------------------------------------------------------------------------
# Pass 2: folded BN affine (single FMA) + LeakyReLU(0.2), large M tiles
# --------------------------------------------------------------------------
def _bn_lrelu(y2d, scale, shift, out_dtype):
    m, cpad = y2d.shape
    tile_m = min(2048, _round_up(m, 8))      # decoupled from pass-1 tiling
    m_pad = _round_up(m, tile_m)
    if m_pad != m:
        y2d = jnp.pad(y2d, ((0, m_pad - m), (0, 0)))
    n_tiles = m_pad // tile_m

    def kernel(y_ref, s_ref, t_ref, o_ref):
        z = y_ref[...].astype(jnp.float32) * s_ref[...] + t_ref[...]
        o_ref[...] = jnp.where(z >= 0.0, z, NEG_SLOPE * z).astype(o_ref.dtype)

    out = pl.pallas_call(
        kernel,
        out_shape=jax.ShapeDtypeStruct((m_pad, cpad), out_dtype),
        grid_spec=pltpu.PrefetchScalarGridSpec(
            num_scalar_prefetch=0,
            grid=(n_tiles,),
            in_specs=[
                pl.BlockSpec((tile_m, cpad), lambda i: (i, 0)),
                pl.BlockSpec((1, cpad), lambda i: (0, 0)),
                pl.BlockSpec((1, cpad), lambda i: (0, 0)),
            ],
            out_specs=pl.BlockSpec((tile_m, cpad), lambda i: (i, 0)),
        ),
        compiler_params=pltpu.CompilerParams(
            dimension_semantics=("parallel",),
            vmem_limit_bytes=VMEM_LIMIT_BYTES,
        ),
    )(y2d, scale, shift)
    return out[:m]


# --------------------------------------------------------------------------
# One Conv2d(3x3) + BatchNorm2d(train-mode) + LeakyReLU(0.2) layer
# --------------------------------------------------------------------------
def _conv_bn_lrelu(xp, w, gamma, beta, n, ho, wo, ksize, cout_pad, out_dtype):
    """xp is the padded (and possibly space-to-depth) input, channels already
    lane-padded.  The conv bias is omitted: under training-mode BatchNorm it
    shifts y and the batch mean identically and cancels exactly."""
    cout, cin = w.shape[0], w.shape[1]
    cin_pad = xp.shape[-1]

    if ksize == 3:                                   # stride-1 3x3 conv
        w_taps = jnp.transpose(w, (2, 3, 1, 0)).reshape(9, cin, cout)
    else:                                            # stride-2 conv as 2x2 taps
        wt = jnp.transpose(w, (2, 3, 1, 0))                    # (3,3,ci,co)
        wt = jnp.pad(wt, ((0, 1), (0, 1), (0, 0), (0, 0)))     # (4,4,ci,co)
        wt = wt.reshape(2, 2, 2, 2, cin, cout)                 # (a,p,b,q,ci,co)
        wt = jnp.transpose(wt, (0, 2, 1, 3, 4, 5))             # (a,b,p,q,ci,co)
        w_taps = wt.reshape(4, 4 * cin, cout)
    w_taps = jnp.pad(w_taps, ((0, 0),
                              (0, cin_pad - w_taps.shape[1]),
                              (0, cout_pad - cout))).astype(jnp.bfloat16)

    th = _row_tile(ho, wo, n)
    y, st = _conv_stats(xp, w_taps, n, ho, wo, th, ksize)

    # Exact global batch statistics (reduced across tiles / batch here).
    m = n * ho * wo
    tot = jnp.sum(st[:, :, 0, :], axis=(0, 1))
    tot_sq = jnp.sum(st[:, :, 1, :], axis=(0, 1))
    mean = tot / m
    var = jnp.maximum(tot_sq / m - mean * mean, 0.0)   # biased batch variance
    inv_std = jax.lax.rsqrt(var + BN_EPS)
    g = jnp.pad(gamma, (0, cout_pad - cout))
    b = jnp.pad(beta, (0, cout_pad - cout))
    scale = (g * inv_std).reshape(1, cout_pad)
    shift = (b - mean * g * inv_std).reshape(1, cout_pad)
    # Padded channels: mean=var=gamma=beta=0 -> scale=shift=0 -> stay zero.

    z = _bn_lrelu(y.reshape(m, cout_pad), scale, shift, out_dtype)
    return z.reshape(n, ho, wo, cout_pad)


# --------------------------------------------------------------------------
# down.forward
# --------------------------------------------------------------------------
@jax.jit
def down_forward(x_nchw, params):
    """Forward pass of `down` (training-mode BN). NCHW in / NCHW out."""
    x = jnp.transpose(x_nchw, (0, 2, 3, 1)).astype(jnp.float32)   # -> NHWC
    n, h, w, cin = x.shape
    cout = params["w1"].shape[0]
    cout_pad = _round_up(cout, LANE)
    ho = (h - 1) // 2 + 1
    wo = (w - 1) // 2 + 1

    # --- layer 1: stride-2 conv folded into 2x2 taps over space-to-depth ---
    hp, wp = 2 * ho + 2, 2 * wo + 2
    cin1_pad = _round_up(4 * cin, LANE)
    xp = jnp.pad(x.astype(jnp.bfloat16),
                 ((0, 0), (1, hp - 1 - h), (1, wp - 1 - w), (0, 0)))
    xs = xp.reshape(n, hp // 2, 2, wp // 2, 2, cin)
    xs = jnp.transpose(xs, (0, 1, 3, 2, 4, 5)).reshape(n, hp // 2, wp // 2,
                                                       4 * cin)
    xs = jnp.pad(xs, ((0, 0), (0, 0), (0, 0), (0, cin1_pad - 4 * cin)))
    h1 = _conv_bn_lrelu(xs, params["w1"], params["g1"], params["be1"],
                        n, ho, wo, 2, cout_pad, jnp.bfloat16)

    # --- layers 2, 3: stride-1 3x3 convs on channel-padded bf16 activations ---
    h2 = _conv_bn_lrelu(jnp.pad(h1, ((0, 0), (1, 1), (1, 1), (0, 0))),
                        params["w2"], params["g2"], params["be2"],
                        n, ho, wo, 3, cout_pad, jnp.bfloat16)
    h3 = _conv_bn_lrelu(jnp.pad(h2, ((0, 0), (1, 1), (1, 1), (0, 0))),
                        params["w3"], params["g3"], params["be3"],
                        n, ho, wo, 3, cout_pad, jnp.float32)

    return jnp.transpose(h3[..., :cout], (0, 3, 1, 2))            # -> NCHW


def init_params(key, in_ch, out_ch):
    """Deterministic synthetic init for the 3 conv + 3 BN layers."""
    keys = jax.random.split(key, 12)

    def conv_w(k, cin, cout):
        bound = 1.0 / jnp.sqrt(cin * 9)
        return jax.random.uniform(k, (cout, cin, 3, 3), jnp.float32,
                                  -bound, bound)

    def conv_b(k, cin, cout):
        bound = 1.0 / jnp.sqrt(cin * 9)
        return jax.random.uniform(k, (cout,), jnp.float32, -bound, bound)

    # Conv biases kept for interface parity; they are mathematically no-ops
    # under training-mode BatchNorm and are not used in the forward.
    return {
        "w1": conv_w(keys[0], in_ch, out_ch),
        "b1": conv_b(keys[1], in_ch, out_ch),
        "g1": 1.0 + 0.1 * jax.random.normal(keys[2], (out_ch,), jnp.float32),
        "be1": 0.1 * jax.random.normal(keys[3], (out_ch,), jnp.float32),
        "w2": conv_w(keys[4], out_ch, out_ch),
        "b2": conv_b(keys[5], out_ch, out_ch),
        "g2": 1.0 + 0.1 * jax.random.normal(keys[6], (out_ch,), jnp.float32),
        "be2": 0.1 * jax.random.normal(keys[7], (out_ch,), jnp.float32),
        "w3": conv_w(keys[8], out_ch, out_ch),
        "b3": conv_b(keys[9], out_ch, out_ch),
        "g3": 1.0 + 0.1 * jax.random.normal(keys[10], (out_ch,), jnp.float32),
        "be3": 0.1 * jax.random.normal(keys[11], (out_ch,), jnp.float32),
    }


if __name__ == "__main__":
    key = jax.random.PRNGKey(0)
    k_x, k_p = jax.random.split(key)

    N, IN_CH, OUT_CH, H, W = 2, 4, 8, 16, 16
    x = jax.random.normal(k_x, (N, IN_CH, H, W), dtype=jnp.float32)  # NCHW
    params = init_params(k_p, IN_CH, OUT_CH)

    out = down_forward(x, params)
    out = jax.block_until_ready(out)

    assert out.shape == (N, OUT_CH, H // 2, W // 2), out.shape
    assert out.dtype == jnp.float32
    assert bool(jnp.all(jnp.isfinite(out)))
    print("KERNEL_OK")
</pallas_src>

<mosaic_0001>
module attributes {stable_mosaic.version = 11 : i64} {
  func.func @kernel(%arg0: i32, %arg1: i32, %arg2: memref<1x9x9x128xbf16, #tpu.memory_space<vmem>>, %arg3: memref<4x128x128xbf16, #tpu.memory_space<vmem>>, %arg4: memref<1x8x8x128xbf16, #tpu.memory_space<vmem>>, %arg5: memref<1x1x2x128xf32, #tpu.memory_space<vmem>>, %arg6: memref<64x128xf32, #tpu.memory_space<vmem>>) attributes {dimension_semantics = [#tpu.dimension_semantics<parallel>, #tpu.dimension_semantics<parallel>], iteration_bounds = array<i64: 2, 1>, scalar_prefetch = 0 : i64, scratch_operands = 1 : i64, tpu.core_type = #tpu.core_type<tc>, window_params = [{transform_indices = @transform_0, window_bounds = array<i64: 1, 9, 9, 128>}, {pipeline_mode = #tpu.pipeline_mode<synchronous>, transform_indices = @transform_1, window_bounds = array<i64: 4, 128, 128>}, {transform_indices = @transform_2, window_bounds = array<i64: 1, 8, 8, 128>}, {transform_indices = @transform_3, window_bounds = array<i64: 1, 1, 2, 128>}]} {
    %c8_i32 = arith.constant 8 : i32
    %0 = arith.muli %arg1, %c8_i32 : i32
    %c0_i32 = arith.constant 0 : i32
    %1 = arith.addi %0, %c0_i32 : i32
    %c0 = arith.constant 0 : index
    %2 = arith.index_cast %1 : i32 to index
    %c0_0 = arith.constant 0 : index
    %c0_1 = arith.constant 0 : index
    %3 = vector.load %arg2[%c0, %2, %c0_0, %c0_1] : memref<1x9x9x128xbf16, #tpu.memory_space<vmem>>, vector<1x8x8x128xbf16>
    %4 = vector.shape_cast %3 : vector<1x8x8x128xbf16> to vector<8x8x128xbf16>
    %5 = vector.shape_cast %4 : vector<8x8x128xbf16> to vector<64x128xbf16>
    %c0_2 = arith.constant 0 : index
    %c0_3 = arith.constant 0 : index
    %c0_4 = arith.constant 0 : index
    %6 = vector.load %arg3[%c0_2, %c0_3, %c0_4] : memref<4x128x128xbf16, #tpu.memory_space<vmem>>, vector<1x128x128xbf16>
    %7 = vector.shape_cast %6 : vector<1x128x128xbf16> to vector<128x128xbf16>
    %cst = arith.constant dense<0.000000e+00> : vector<64x128xf32>
    %8 = tpu.matmul %5, %7, %cst {dimension_numbers = #tpu.dot_dimension_numbers<[1], [0], [0], [1], [0, 0, 1, 1], [], []>} : vector<64x128xbf16>, vector<128x128xbf16>, vector<64x128xf32> -> vector<64x128xf32>
    %c0_5 = arith.constant 0 : index
    %c0_6 = arith.constant 0 : index
    %9 = vector.load %arg6[%c0_5, %c0_6] : memref<64x128xf32, #tpu.memory_space<vmem>>, vector<64x128xf32>
    tpu.vector_store %arg6[%c0_5, %c0_6], %8 {strides = array<i32>} : memref<64x128xf32, #tpu.memory_space<vmem>>, vector<64x128xf32>,
    %c0_i32_7 = arith.constant 0 : i32
    %10 = arith.addi %0, %c0_i32_7 : i32
    %c0_8 = arith.constant 0 : index
    %11 = arith.index_cast %10 : i32 to index
    %c1 = arith.constant 1 : index
    %c0_9 = arith.constant 0 : index
    %12 = vector.load %arg2[%c0_8, %11, %c1, %c0_9] : memref<1x9x9x128xbf16, #tpu.memory_space<vmem>>, vector<1x8x8x128xbf16>
    %13 = vector.shape_cast %12 : vector<1x8x8x128xbf16> to vector<8x8x128xbf16>
    %14 = vector.shape_cast %13 : vector<8x8x128xbf16> to vector<64x128xbf16>
    %c1_10 = arith.constant 1 : index
    %c0_11 = arith.constant 0 : index
    %c0_12 = arith.constant 0 : index
    %15 = vector.load %arg3[%c1_10, %c0_11, %c0_12] : memref<4x128x128xbf16, #tpu.memory_space<vmem>>, vector<1x128x128xbf16>
    %16 = vector.shape_cast %15 : vector<1x128x128xbf16> to vector<128x128xbf16>
    %cst_13 = arith.constant dense<0.000000e+00> : vector<64x128xf32>
    %17 = tpu.matmul %14, %16, %cst_13 {dimension_numbers = #tpu.dot_dimension_numbers<[1], [0], [0], [1], [0, 0, 1, 1], [], []>} : vector<64x128xbf16>, vector<128x128xbf16>, vector<64x128xf32> -> vector<64x128xf32>
    %c0_14 = arith.constant 0 : index
    %c0_15 = arith.constant 0 : index
    %18 = vector.load %arg6[%c0_14, %c0_15] : memref<64x128xf32, #tpu.memory_space<vmem>>, vector<64x128xf32>
    %19 = arith.addf %18, %17 : vector<64x128xf32>
    %c0_16 = arith.constant 0 : index
    %c0_17 = arith.constant 0 : index
    %20 = vector.load %arg6[%c0_16, %c0_17] : memref<64x128xf32, #tpu.memory_space<vmem>>, vector<64x128xf32>
    tpu.vector_store %arg6[%c0_16, %c0_17], %19 {strides = array<i32>} : memref<64x128xf32, #tpu.memory_space<vmem>>, vector<64x128xf32>,
    %c1_i32 = arith.constant 1 : i32
    %21 = arith.addi %0, %c1_i32 : i32
    %c0_18 = arith.constant 0 : index
    %22 = arith.index_cast %21 : i32 to index
    %c0_19 = arith.constant 0 : index
    %c0_20 = arith.constant 0 : index
    %23 = vector.load %arg2[%c0_18, %22, %c0_19, %c0_20] : memref<1x9x9x128xbf16, #tpu.memory_space<vmem>>, vector<1x8x8x128xbf16>
    %24 = vector.shape_cast %23 : vector<1x8x8x128xbf16> to vector<8x8x128xbf16>
    %25 = vector.shape_cast %24 : vector<8x8x128xbf16> to vector<64x128xbf16>
    %c2 = arith.constant 2 : index
    %c0_21 = arith.constant 0 : index
    %c0_22 = arith.constant 0 : index
    %26 = vector.load %arg3[%c2, %c0_21, %c0_22] : memref<4x128x128xbf16, #tpu.memory_space<vmem>>, vector<1x128x128xbf16>
    %27 = vector.shape_cast %26 : vector<1x128x128xbf16> to vector<128x128xbf16>
    %cst_23 = arith.constant dense<0.000000e+00> : vector<64x128xf32>
    %28 = tpu.matmul %25, %27, %cst_23 {dimension_numbers = #tpu.dot_dimension_numbers<[1], [0], [0], [1], [0, 0, 1, 1], [], []>} : vector<64x128xbf16>, vector<128x128xbf16>, vector<64x128xf32> -> vector<64x128xf32>
    %c0_24 = arith.constant 0 : index
    %c0_25 = arith.constant 0 : index
    %29 = vector.load %arg6[%c0_24, %c0_25] : memref<64x128xf32, #tpu.memory_space<vmem>>, vector<64x128xf32>
    %30 = arith.addf %29, %28 : vector<64x128xf32>
    %c0_26 = arith.constant 0 : index
    %c0_27 = arith.constant 0 : index
    %31 = vector.load %arg6[%c0_26, %c0_27] : memref<64x128xf32, #tpu.memory_space<vmem>>, vector<64x128xf32>
    tpu.vector_store %arg6[%c0_26, %c0_27], %30 {strides = array<i32>} : memref<64x128xf32, #tpu.memory_space<vmem>>, vector<64x128xf32>,
    %c1_i32_28 = arith.constant 1 : i32
    %32 = arith.addi %0, %c1_i32_28 : i32
    %c0_29 = arith.constant 0 : index
    %33 = arith.index_cast %32 : i32 to index
    %c1_30 = arith.constant 1 : index
    %c0_31 = arith.constant 0 : index
    %34 = vector.load %arg2[%c0_29, %33, %c1_30, %c0_31] : memref<1x9x9x128xbf16, #tpu.memory_space<vmem>>, vector<1x8x8x128xbf16>
    %35 = vector.shape_cast %34 : vector<1x8x8x128xbf16> to vector<8x8x128xbf16>
    %36 = vector.shape_cast %35 : vector<8x8x128xbf16> to vector<64x128xbf16>
    %c3 = arith.constant 3 : index
    %c0_32 = arith.constant 0 : index
    %c0_33 = arith.constant 0 : index
    %37 = vector.load %arg3[%c3, %c0_32, %c0_33] : memref<4x128x128xbf16, #tpu.memory_space<vmem>>, vector<1x128x128xbf16>
    %38 = vector.shape_cast %37 : vector<1x128x128xbf16> to vector<128x128xbf16>
    %cst_34 = arith.constant dense<0.000000e+00> : vector<64x128xf32>
    %39 = tpu.matmul %36, %38, %cst_34 {dimension_numbers = #tpu.dot_dimension_numbers<[1], [0], [0], [1], [0, 0, 1, 1], [], []>} : vector<64x128xbf16>, vector<128x128xbf16>, vector<64x128xf32> -> vector<64x128xf32>
    %c0_35 = arith.constant 0 : index
    %c0_36 = arith.constant 0 : index
    %40 = vector.load %arg6[%c0_35, %c0_36] : memref<64x128xf32, #tpu.memory_space<vmem>>, vector<64x128xf32>
    %41 = arith.addf %40, %39 : vector<64x128xf32>
    %c0_37 = arith.constant 0 : index
    %c0_38 = arith.constant 0 : index
    %42 = vector.load %arg6[%c0_37, %c0_38] : memref<64x128xf32, #tpu.memory_space<vmem>>, vector<64x128xf32>
    tpu.vector_store %arg6[%c0_37, %c0_38], %41 {strides = array<i32>} : memref<64x128xf32, #tpu.memory_space<vmem>>, vector<64x128xf32>,
    %c0_39 = arith.constant 0 : index
    %c0_40 = arith.constant 0 : index
    %43 = vector.load %arg6[%c0_39, %c0_40] : memref<64x128xf32, #tpu.memory_space<vmem>>, vector<64x128xf32>
    %44 = vector.shape_cast %43 : vector<64x128xf32> to vector<8x8x128xf32>
    %45 = arith.truncf %44 : vector<8x8x128xf32> to vector<8x8x128xbf16>
    %c0_41 = arith.constant 0 : index
    %c0_42 = arith.constant 0 : index
    %c0_43 = arith.constant 0 : index
    %c0_44 = arith.constant 0 : index
    %46 = vector.load %arg4[%c0_41, %c0_42, %c0_43, %c0_44] : memref<1x8x8x128xbf16, #tpu.memory_space<vmem>>, vector<1x8x8x128xbf16>
    %47 = vector.shape_cast %46 : vector<1x8x8x128xbf16> to vector<8x8x128xbf16>
    %48 = vector.shape_cast %45 : vector<8x8x128xbf16> to vector<1x8x8x128xbf16>
    tpu.vector_store %arg4[%c0_41, %c0_42, %c0_43, %c0_44], %48 {strides = array<i32>} : memref<1x8x8x128xbf16, #tpu.memory_space<vmem>>, vector<1x8x8x128xbf16>,
    %cst_45 = arith.constant dense<0.000000e+00> : vector<128xf32>
    %49 = vector.multi_reduction <add>, %43, %cst_45 [0] : vector<64x128xf32> to vector<128xf32>
    %50 = vector.shape_cast %49 : vector<128xf32> to vector<1x128xf32>
    %c0_46 = arith.constant 0 : index
    %c0_47 = arith.constant 0 : index
    %c0_48 = arith.constant 0 : index
    %c0_49 = arith.constant 0 : index
    %51 = vector.load %arg5[%c0_46, %c0_47, %c0_48, %c0_49] : memref<1x1x2x128xf32, #tpu.memory_space<vmem>>, vector<1x1x1x128xf32>
    %52 = vector.shape_cast %51 : vector<1x1x1x128xf32> to vector<1x128xf32>
    %53 = vector.shape_cast %50 : vector<1x128xf32> to vector<1x1x1x128xf32>
    tpu.vector_store %arg5[%c0_46, %c0_47, %c0_48, %c0_49], %53 {strides = array<i32>} : memref<1x1x2x128xf32, #tpu.memory_space<vmem>>, vector<1x1x1x128xf32>,
    %54 = arith.mulf %43, %43 : vector<64x128xf32>
    %cst_50 = arith.constant dense<0.000000e+00> : vector<128xf32>
    %55 = vector.multi_reduction <add>, %54, %cst_50 [0] : vector<64x128xf32> to vector<128xf32>
    %56 = vector.shape_cast %55 : vector<128xf32> to vector<1x128xf32>
    %c0_51 = arith.constant 0 : index
    %c0_52 = arith.constant 0 : index
    %c1_53 = arith.constant 1 : index
    %c0_54 = arith.constant 0 : index
    %57 = vector.load %arg5[%c0_51, %c0_52, %c1_53, %c0_54] : memref<1x1x2x128xf32, #tpu.memory_space<vmem>>, vector<1x1x1x128xf32>
    %58 = vector.shape_cast %57 : vector<1x1x1x128xf32> to vector<1x128xf32>
    %59 = vector.shape_cast %56 : vector<1x128xf32> to vector<1x1x1x128xf32>
    tpu.vector_store %arg5[%c0_51, %c0_52, %c1_53, %c0_54], %59 {strides = array<i32>} : memref<1x1x2x128xf32, #tpu.memory_space<vmem>>, vector<1x1x1x128xf32>,
    return
  }
  func.func @transform_0(%arg0: i32, %arg1: i32) -> (i32, i32, i32, i32) {
    %c0_i32 = arith.constant 0 : i32
    %c0_i32_0 = arith.constant 0 : i32
    %c0_i32_1 = arith.constant 0 : i32
    %c0_i32_2 = arith.constant 0 : i32
    return %arg0, %c0_i32, %c0_i32_0, %c0_i32_1 : i32, i32, i32, i32
  }
  func.func @transform_1(%arg0: i32, %arg1: i32) -> (i32, i32, i32) {
    %c0_i32 = arith.constant 0 : i32
    %c0_i32_0 = arith.constant 0 : i32
    %c0_i32_1 = arith.constant 0 : i32
    %c0_i32_2 = arith.constant 0 : i32
    return %c0_i32, %c0_i32_0, %c0_i32_1 : i32, i32, i32
  }
  func.func @transform_2(%arg0: i32, %arg1: i32) -> (i32, i32, i32, i32) {
    %c0_i32 = arith.constant 0 : i32
    %c0_i32_0 = arith.constant 0 : i32
    %c0_i32_1 = arith.constant 0 : i32
    return %arg0, %arg1, %c0_i32, %c0_i32_0 : i32, i32, i32, i32
  }
  func.func @transform_3(%arg0: i32, %arg1: i32) -> (i32, i32, i32, i32) {
    %c0_i32 = arith.constant 0 : i32
    %c0_i32_0 = arith.constant 0 : i32
    %c0_i32_1 = arith.constant 0 : i32
    return %arg0, %arg1, %c0_i32, %c0_i32_0 : i32, i32, i32, i32
  }
}

module attributes {stable_mosaic.version = 11 : i64} {
  func.func @kernel(%arg0: i32, %arg1: memref<128x128xbf16, #tpu.memory_space<vmem>>, %arg2: memref<1x128xf32, #tpu.memory_space<vmem>>, %arg3: memref<1x128xf32, #tpu.memory_space<vmem>>, %arg4: memref<128x128xbf16, #tpu.memory_space<vmem>>) attributes {dimension_semantics = [#tpu.dimension_semantics<parallel>], iteration_bounds = array<i64: 1>, scalar_prefetch = 0 : i64, scratch_operands = 0 : i64, tpu.core_type = #tpu.core_type<tc>, window_params = [{transform_indices = @transform_0, window_bounds = array<i64: 128, 128>}, {pipeline_mode = #tpu.pipeline_mode<synchronous>, transform_indices = @transform_1, window_bounds = array<i64: 1, 128>}, {pipeline_mode = #tpu.pipeline_mode<synchronous>, transform_indices = @transform_2, window_bounds = array<i64: 1, 128>}, {transform_indices = @transform_3, window_bounds = array<i64: 128, 128>}]} {
    %c0 = arith.constant 0 : index
    %c0_0 = arith.constant 0 : index
    %0 = vector.load %arg1[%c0, %c0_0] : memref<128x128xbf16, #tpu.memory_space<vmem>>, vector<128x128xbf16>
    %1 = arith.extf %0 : vector<128x128xbf16> to vector<128x128xf32>
    %c0_1 = arith.constant 0 : index
    %c0_2 = arith.constant 0 : index
    %2 = vector.load %arg2[%c0_1, %c0_2] : memref<1x128xf32, #tpu.memory_space<vmem>>, vector<1x128xf32>
    %3 = vector.broadcast %2 : vector<1x128xf32> to vector<128x128xf32>
    %4 = arith.mulf %1, %3 : vector<128x128xf32>
    %c0_3 = arith.constant 0 : index
    %c0_4 = arith.constant 0 : index
    %5 = vector.load %arg3[%c0_3, %c0_4] : memref<1x128xf32, #tpu.memory_space<vmem>>, vector<1x128xf32>
    %6 = vector.broadcast %5 : vector<1x128xf32> to vector<128x128xf32>
    %7 = arith.addf %4, %6 : vector<128x128xf32>
    %cst = arith.constant 0.000000e+00 : f32
    %8 = vector.broadcast %cst : f32 to vector<128x128xf32>
    %9 = arith.cmpf oge, %7, %8 : vector<128x128xf32>
    %cst_5 = arith.constant 2.000000e-01 : f32
    %10 = vector.broadcast %cst_5 : f32 to vector<128x128xf32>
    %11 = arith.mulf %10, %7 : vector<128x128xf32>
    %12 = arith.select %9, %7, %11 : vector<128x128xi1>, vector<128x128xf32>
    %13 = arith.truncf %12 : vector<128x128xf32> to vector<128x128xbf16>
    %c0_6 = arith.constant 0 : index
    %c0_7 = arith.constant 0 : index
    %14 = vector.load %arg4[%c0_6, %c0_7] : memref<128x128xbf16, #tpu.memory_space<vmem>>, vector<128x128xbf16>
    tpu.vector_store %arg4[%c0_6, %c0_7], %13 {strides = array<i32>} : memref<128x128xbf16, #tpu.memory_space<vmem>>, vector<128x128xbf16>,
    return
  }
  func.func @transform_0(%arg0: i32) -> (i32, i32) {
    %c0_i32 = arith.constant 0 : i32
    %c0_i32_0 = arith.constant 0 : i32
    return %arg0, %c0_i32 : i32, i32
  }
  func.func @transform_1(%arg0: i32) -> (i32, i32) {
    %c0_i32 = arith.constant 0 : i32
    %c0_i32_0 = arith.constant 0 : i32
    %c0_i32_1 = arith.constant 0 : i32
    return %c0_i32, %c0_i32_0 : i32, i32
  }
  func.func @transform_2(%arg0: i32) -> (i32, i32) {
    %c0_i32 = arith.constant 0 : i32
    %c0_i32_0 = arith.constant 0 : i32
    %c0_i32_1 = arith.constant 0 : i32
    return %c0_i32, %c0_i32_0 : i32, i32
  }
  func.func @transform_3(%arg0: i32) -> (i32, i32) {
    %c0_i32 = arith.constant 0 : i32
    %c0_i32_0 = arith.constant 0 : i32
    return %arg0, %c0_i32 : i32, i32
  }
}

module attributes {stable_mosaic.version = 11 : i64} {
  func.func @kernel(%arg0: i32, %arg1: memref<128x128xbf16, #tpu.memory_space<vmem>>, %arg2: memref<1x128xf32, #tpu.memory_space<vmem>>, %arg3: memref<1x128xf32, #tpu.memory_space<vmem>>, %arg4: memref<128x128xf32, #tpu.memory_space<vmem>>) attributes {dimension_semantics = [#tpu.dimension_semantics<parallel>], iteration_bounds = array<i64: 1>, scalar_prefetch = 0 : i64, scratch_operands = 0 : i64, tpu.core_type = #tpu.core_type<tc>, window_params = [{transform_indices = @transform_0, window_bounds = array<i64: 128, 128>}, {pipeline_mode = #tpu.pipeline_mode<synchronous>, transform_indices = @transform_1, window_bounds = array<i64: 1, 128>}, {pipeline_mode = #tpu.pipeline_mode<synchronous>, transform_indices = @transform_2, window_bounds = array<i64: 1, 128>}, {transform_indices = @transform_3, window_bounds = array<i64: 128, 128>}]} {
    %c0 = arith.constant 0 : index
    %c0_0 = arith.constant 0 : index
    %0 = vector.load %arg1[%c0, %c0_0] : memref<128x128xbf16, #tpu.memory_space<vmem>>, vector<128x128xbf16>
    %1 = arith.extf %0 : vector<128x128xbf16> to vector<128x128xf32>
    %c0_1 = arith.constant 0 : index
    %c0_2 = arith.constant 0 : index
    %2 = vector.load %arg2[%c0_1, %c0_2] : memref<1x128xf32, #tpu.memory_space<vmem>>, vector<1x128xf32>
    %3 = vector.broadcast %2 : vector<1x128xf32> to vector<128x128xf32>
    %4 = arith.mulf %1, %3 : vector<128x128xf32>
    %c0_3 = arith.constant 0 : index
    %c0_4 = arith.constant 0 : index
    %5 = vector.load %arg3[%c0_3, %c0_4] : memref<1x128xf32, #tpu.memory_space<vmem>>, vector<1x128xf32>
    %6 = vector.broadcast %5 : vector<1x128xf32> to vector<128x128xf32>
    %7 = arith.addf %4, %6 : vector<128x128xf32>
    %cst = arith.constant 0.000000e+00 : f32
    %8 = vector.broadcast %cst : f32 to vector<128x128xf32>
    %9 = arith.cmpf oge, %7, %8 : vector<128x128xf32>
    %cst_5 = arith.constant 2.000000e-01 : f32
    %10 = vector.broadcast %cst_5 : f32 to vector<128x128xf32>
    %11 = arith.mulf %10, %7 : vector<128x128xf32>
    %12 = arith.select %9, %7, %11 : vector<128x128xi1>, vector<128x128xf32>
    %c0_6 = arith.constant 0 : index
    %c0_7 = arith.constant 0 : index
    %13 = vector.load %arg4[%c0_6, %c0_7] : memref<128x128xf32, #tpu.memory_space<vmem>>, vector<128x128xf32>
    tpu.vector_store %arg4[%c0_6, %c0_7], %12 {strides = array<i32>} : memref<128x128xf32, #tpu.memory_space<vmem>>, vector<128x128xf32>,
    return
  }
  func.func @transform_0(%arg0: i32) -> (i32, i32) {
    %c0_i32 = arith.constant 0 : i32
    %c0_i32_0 = arith.constant 0 : i32
    return %arg0, %c0_i32 : i32, i32
  }
  func.func @transform_1(%arg0: i32) -> (i32, i32) {
    %c0_i32 = arith.constant 0 : i32
    %c0_i32_0 = arith.constant 0 : i32
    %c0_i32_1 = arith.constant 0 : i32
    return %c0_i32, %c0_i32_0 : i32, i32
  }
  func.func @transform_2(%arg0: i32) -> (i32, i32) {
    %c0_i32 = arith.constant 0 : i32
    %c0_i32_0 = arith.constant 0 : i32
    %c0_i32_1 = arith.constant 0 : i32
    return %c0_i32, %c0_i32_0 : i32, i32
  }
  func.func @transform_3(%arg0: i32) -> (i32, i32) {
    %c0_i32 = arith.constant 0 : i32
    %c0_i32_0 = arith.constant 0 : i32
    return %arg0, %c0_i32 : i32, i32
  }
}

module attributes {stable_mosaic.version = 11 : i64} {
  func.func @kernel(%arg0: i32, %arg1: i32, %arg2: memref<1x10x10x128xbf16, #tpu.memory_space<vmem>>, %arg3: memref<9x128x128xbf16, #tpu.memory_space<vmem>>, %arg4: memref<1x8x8x128xbf16, #tpu.memory_space<vmem>>, %arg5: memref<1x1x2x128xf32, #tpu.memory_space<vmem>>, %arg6: memref<64x128xf32, #tpu.memory_space<vmem>>) attributes {dimension_semantics = [#tpu.dimension_semantics<parallel>, #tpu.dimension_semantics<parallel>], iteration_bounds = array<i64: 2, 1>, scalar_prefetch = 0 : i64, scratch_operands = 1 : i64, tpu.core_type = #tpu.core_type<tc>, window_params = [{transform_indices = @transform_0, window_bounds = array<i64: 1, 10, 10, 128>}, {pipeline_mode = #tpu.pipeline_mode<synchronous>, transform_indices = @transform_1, window_bounds = array<i64: 9, 128, 128>}, {transform_indices = @transform_2, window_bounds = array<i64: 1, 8, 8, 128>}, {transform_indices = @transform_3, window_bounds = array<i64: 1, 1, 2, 128>}]} {
    %c8_i32 = arith.constant 8 : i32
    %0 = arith.muli %arg1, %c8_i32 : i32
    %c0_i32 = arith.constant 0 : i32
    %1 = arith.addi %0, %c0_i32 : i32
    %c0 = arith.constant 0 : index
    %2 = arith.index_cast %1 : i32 to index
    %c0_0 = arith.constant 0 : index
    %c0_1 = arith.constant 0 : index
    %3 = vector.load %arg2[%c0, %2, %c0_0, %c0_1] : memref<1x10x10x128xbf16, #tpu.memory_space<vmem>>, vector<1x8x8x128xbf16>
    %4 = vector.shape_cast %3 : vector<1x8x8x128xbf16> to vector<8x8x128xbf16>
    %5 = vector.shape_cast %4 : vector<8x8x128xbf16> to vector<64x128xbf16>
    %c0_2 = arith.constant 0 : index
    %c0_3 = arith.constant 0 : index
    %c0_4 = arith.constant 0 : index
    %6 = vector.load %arg3[%c0_2, %c0_3, %c0_4] : memref<9x128x128xbf16, #tpu.memory_space<vmem>>, vector<1x128x128xbf16>
    %7 = vector.shape_cast %6 : vector<1x128x128xbf16> to vector<128x128xbf16>
    %cst = arith.constant dense<0.000000e+00> : vector<64x128xf32>
    %8 = tpu.matmul %5, %7, %cst {dimension_numbers = #tpu.dot_dimension_numbers<[1], [0], [0], [1], [0, 0, 1, 1], [], []>} : vector<64x128xbf16>, vector<128x128xbf16>, vector<64x128xf32> -> vector<64x128xf32>
    %c0_5 = arith.constant 0 : index
    %c0_6 = arith.constant 0 : index
    %9 = vector.load %arg6[%c0_5, %c0_6] : memref<64x128xf32, #tpu.memory_space<vmem>>, vector<64x128xf32>
    tpu.vector_store %arg6[%c0_5, %c0_6], %8 {strides = array<i32>} : memref<64x128xf32, #tpu.memory_space<vmem>>, vector<64x128xf32>,
    %c0_i32_7 = arith.constant 0 : i32
    %10 = arith.addi %0, %c0_i32_7 : i32
    %c0_8 = arith.constant 0 : index
    %11 = arith.index_cast %10 : i32 to index
    %c1 = arith.constant 1 : index
    %c0_9 = arith.constant 0 : index
    %12 = vector.load %arg2[%c0_8, %11, %c1, %c0_9] : memref<1x10x10x128xbf16, #tpu.memory_space<vmem>>, vector<1x8x8x128xbf16>
    %13 = vector.shape_cast %12 : vector<1x8x8x128xbf16> to vector<8x8x128xbf16>
    %14 = vector.shape_cast %13 : vector<8x8x128xbf16> to vector<64x128xbf16>
    %c1_10 = arith.constant 1 : index
    %c0_11 = arith.constant 0 : index
    %c0_12 = arith.constant 0 : index
    %15 = vector.load %arg3[%c1_10, %c0_11, %c0_12] : memref<9x128x128xbf16, #tpu.memory_space<vmem>>, vector<1x128x128xbf16>
    %16 = vector.shape_cast %15 : vector<1x128x128xbf16> to vector<128x128xbf16>
    %cst_13 = arith.constant dense<0.000000e+00> : vector<64x128xf32>
    %17 = tpu.matmul %14, %16, %cst_13 {dimension_numbers = #tpu.dot_dimension_numbers<[1], [0], [0], [1], [0, 0, 1, 1], [], []>} : vector<64x128xbf16>, vector<128x128xbf16>, vector<64x128xf32> -> vector<64x128xf32>
    %c0_14 = arith.constant 0 : index
    %c0_15 = arith.constant 0 : index
    %18 = vector.load %arg6[%c0_14, %c0_15] : memref<64x128xf32, #tpu.memory_space<vmem>>, vector<64x128xf32>
    %19 = arith.addf %18, %17 : vector<64x128xf32>
    %c0_16 = arith.constant 0 : index
    %c0_17 = arith.constant 0 : index
    %20 = vector.load %arg6[%c0_16, %c0_17] : memref<64x128xf32, #tpu.memory_space<vmem>>, vector<64x128xf32>
    tpu.vector_store %arg6[%c0_16, %c0_17], %19 {strides = array<i32>} : memref<64x128xf32, #tpu.memory_space<vmem>>, vector<64x128xf32>,
    %c0_i32_18 = arith.constant 0 : i32
    %21 = arith.addi %0, %c0_i32_18 : i32
    %c0_19 = arith.constant 0 : index
    %22 = arith.index_cast %21 : i32 to index
    %c2 = arith.constant 2 : index
    %c0_20 = arith.constant 0 : index
    %23 = vector.load %arg2[%c0_19, %22, %c2, %c0_20] : memref<1x10x10x128xbf16, #tpu.memory_space<vmem>>, vector<1x8x8x128xbf16>
    %24 = vector.shape_cast %23 : vector<1x8x8x128xbf16> to vector<8x8x128xbf16>
    %25 = vector.shape_cast %24 : vector<8x8x128xbf16> to vector<64x128xbf16>
    %c2_21 = arith.constant 2 : index
    %c0_22 = arith.constant 0 : index
    %c0_23 = arith.constant 0 : index
    %26 = vector.load %arg3[%c2_21, %c0_22, %c0_23] : memref<9x128x128xbf16, #tpu.memory_space<vmem>>, vector<1x128x128xbf16>
    %27 = vector.shape_cast %26 : vector<1x128x128xbf16> to vector<128x128xbf16>
    %cst_24 = arith.constant dense<0.000000e+00> : vector<64x128xf32>
    %28 = tpu.matmul %25, %27, %cst_24 {dimension_numbers = #tpu.dot_dimension_numbers<[1], [0], [0], [1], [0, 0, 1, 1], [], []>} : vector<64x128xbf16>, vector<128x128xbf16>, vector<64x128xf32> -> vector<64x128xf32>
    %c0_25 = arith.constant 0 : index
    %c0_26 = arith.constant 0 : index
    %29 = vector.load %arg6[%c0_25, %c0_26] : memref<64x128xf32, #tpu.memory_space<vmem>>, vector<64x128xf32>
    %30 = arith.addf %29, %28 : vector<64x128xf32>
    %c0_27 = arith.constant 0 : index
    %c0_28 = arith.constant 0 : index
    %31 = vector.load %arg6[%c0_27, %c0_28] : memref<64x128xf32, #tpu.memory_space<vmem>>, vector<64x128xf32>
    tpu.vector_store %arg6[%c0_27, %c0_28], %30 {strides = array<i32>} : memref<64x128xf32, #tpu.memory_space<vmem>>, vector<64x128xf32>,
    %c1_i32 = arith.constant 1 : i32
    %32 = arith.addi %0, %c1_i32 : i32
    %c0_29 = arith.constant 0 : index
    %33 = arith.index_cast %32 : i32 to index
    %c0_30 = arith.constant 0 : index
    %c0_31 = arith.constant 0 : index
    %34 = vector.load %arg2[%c0_29, %33, %c0_30, %c0_31] : memref<1x10x10x128xbf16, #tpu.memory_space<vmem>>, vector<1x8x8x128xbf16>
    %35 = vector.shape_cast %34 : vector<1x8x8x128xbf16> to vector<8x8x128xbf16>
    %36 = vector.shape_cast %35 : vector<8x8x128xbf16> to vector<64x128xbf16>
    %c3 = arith.constant 3 : index
    %c0_32 = arith.constant 0 : index
    %c0_33 = arith.constant 0 : index
    %37 = vector.load %arg3[%c3, %c0_32, %c0_33] : memref<9x128x128xbf16, #tpu.memory_space<vmem>>, vector<1x128x128xbf16>
    %38 = vector.shape_cast %37 : vector<1x128x128xbf16> to vector<128x128xbf16>
    %cst_34 = arith.constant dense<0.000000e+00> : vector<64x128xf32>
    %39 = tpu.matmul %36, %38, %cst_34 {dimension_numbers = #tpu.dot_dimension_numbers<[1], [0], [0], [1], [0, 0, 1, 1], [], []>} : vector<64x128xbf16>, vector<128x128xbf16>, vector<64x128xf32> -> vector<64x128xf32>
    %c0_35 = arith.constant 0 : index
    %c0_36 = arith.constant 0 : index
    %40 = vector.load %arg6[%c0_35, %c0_36] : memref<64x128xf32, #tpu.memory_space<vmem>>, vector<64x128xf32>
    %41 = arith.addf %40, %39 : vector<64x128xf32>
    %c0_37 = arith.constant 0 : index
    %c0_38 = arith.constant 0 : index
    %42 = vector.load %arg6[%c0_37, %c0_38] : memref<64x128xf32, #tpu.memory_space<vmem>>, vector<64x128xf32>
    tpu.vector_store %arg6[%c0_37, %c0_38], %41 {strides = array<i32>} : memref<64x128xf32, #tpu.memory_space<vmem>>, vector<64x128xf32>,
    %c1_i32_39 = arith.constant 1 : i32
    %43 = arith.addi %0, %c1_i32_39 : i32
    %c0_40 = arith.constant 0 : index
    %44 = arith.index_cast %43 : i32 to index
    %c1_41 = arith.constant 1 : index
    %c0_42 = arith.constant 0 : index
    %45 = vector.load %arg2[%c0_40, %44, %c1_41, %c0_42] : memref<1x10x10x128xbf16, #tpu.memory_space<vmem>>, vector<1x8x8x128xbf16>
    %46 = vector.shape_cast %45 : vector<1x8x8x128xbf16> to vector<8x8x128xbf16>
    %47 = vector.shape_cast %46 : vector<8x8x128xbf16> to vector<64x128xbf16>
    %c4 = arith.constant 4 : index
    %c0_43 = arith.constant 0 : index
    %c0_44 = arith.constant 0 : index
    %48 = vector.load %arg3[%c4, %c0_43, %c0_44] : memref<9x128x128xbf16, #tpu.memory_space<vmem>>, vector<1x128x128xbf16>
    %49 = vector.shape_cast %48 : vector<1x128x128xbf16> to vector<128x128xbf16>
    %cst_45 = arith.constant dense<0.000000e+00> : vector<64x128xf32>
    %50 = tpu.matmul %47, %49, %cst_45 {dimension_numbers = #tpu.dot_dimension_numbers<[1], [0], [0], [1], [0, 0, 1, 1], [], []>} : vector<64x128xbf16>, vector<128x128xbf16>, vector<64x128xf32> -> vector<64x128xf32>
    %c0_46 = arith.constant 0 : index
    %c0_47 = arith.constant 0 : index
    %51 = vector.load %arg6[%c0_46, %c0_47] : memref<64x128xf32, #tpu.memory_space<vmem>>, vector<64x128xf32>
    %52 = arith.addf %51, %50 : vector<64x128xf32>
    %c0_48 = arith.constant 0 : index
    %c0_49 = arith.constant 0 : index
    %53 = vector.load %arg6[%c0_48, %c0_49] : memref<64x128xf32, #tpu.memory_space<vmem>>, vector<64x128xf32>
    tpu.vector_store %arg6[%c0_48, %c0_49], %52 {strides = array<i32>} : memref<64x128xf32, #tpu.memory_space<vmem>>, vector<64x128xf32>,
    %c1_i32_50 = arith.constant 1 : i32
    %54 = arith.addi %0, %c1_i32_50 : i32
    %c0_51 = arith.constant 0 : index
    %55 = arith.index_cast %54 : i32 to index
    %c2_52 = arith.constant 2 : index
    %c0_53 = arith.constant 0 : index
    %56 = vector.load %arg2[%c0_51, %55, %c2_52, %c0_53] : memref<1x10x10x128xbf16, #tpu.memory_space<vmem>>, vector<1x8x8x128xbf16>
    %57 = vector.shape_cast %56 : vector<1x8x8x128xbf16> to vector<8x8x128xbf16>
    %58 = vector.shape_cast %57 : vector<8x8x128xbf16> to vector<64x128xbf16>
    %c5 = arith.constant 5 : index
    %c0_54 = arith.constant 0 : index
    %c0_55 = arith.constant 0 : index
    %59 = vector.load %arg3[%c5, %c0_54, %c0_55] : memref<9x128x128xbf16, #tpu.memory_space<vmem>>, vector<1x128x128xbf16>
    %60 = vector.shape_cast %59 : vector<1x128x128xbf16> to vector<128x128xbf16>
    %cst_56 = arith.constant dense<0.000000e+00> : vector<64x128xf32>
    %61 = tpu.matmul %58, %60, %cst_56 {dimension_numbers = #tpu.dot_dimension_numbers<[1], [0], [0], [1], [0, 0, 1, 1], [], []>} : vector<64x128xbf16>, vector<128x128xbf16>, vector<64x128xf32> -> vector<64x128xf32>
    %c0_57 = arith.constant 0 : index
    %c0_58 = arith.constant 0 : index
    %62 = vector.load %arg6[%c0_57, %c0_58] : memref<64x128xf32, #tpu.memory_space<vmem>>, vector<64x128xf32>
    %63 = arith.addf %62, %61 : vector<64x128xf32>
    %c0_59 = arith.constant 0 : index
    %c0_60 = arith.constant 0 : index
    %64 = vector.load %arg6[%c0_59, %c0_60] : memref<64x128xf32, #tpu.memory_space<vmem>>, vector<64x128xf32>
    tpu.vector_store %arg6[%c0_59, %c0_60], %63 {strides = array<i32>} : memref<64x128xf32, #tpu.memory_space<vmem>>, vector<64x128xf32>,
    %c2_i32 = arith.constant 2 : i32
    %65 = arith.addi %0, %c2_i32 : i32
    %c0_61 = arith.constant 0 : index
    %66 = arith.index_cast %65 : i32 to index
    %c0_62 = arith.constant 0 : index
    %c0_63 = arith.constant 0 : index
    %67 = vector.load %arg2[%c0_61, %66, %c0_62, %c0_63] : memref<1x10x10x128xbf16, #tpu.memory_space<vmem>>, vector<1x8x8x128xbf16>
    %68 = vector.shape_cast %67 : vector<1x8x8x128xbf16> to vector<8x8x128xbf16>
    %69 = vector.shape_cast %68 : vector<8x8x128xbf16> to vector<64x128xbf16>
    %c6 = arith.constant 6 : index
    %c0_64 = arith.constant 0 : index
    %c0_65 = arith.constant 0 : index
    %70 = vector.load %arg3[%c6, %c0_64, %c0_65] : memref<9x128x128xbf16, #tpu.memory_space<vmem>>, vector<1x128x128xbf16>
    %71 = vector.shape_cast %70 : vector<1x128x128xbf16> to vector<128x128xbf16>
    %cst_66 = arith.constant dense<0.000000e+00> : vector<64x128xf32>
    %72 = tpu.matmul %69, %71, %cst_66 {dimension_numbers = #tpu.dot_dimension_numbers<[1], [0], [0], [1], [0, 0, 1, 1], [], []>} : vector<64x128xbf16>, vector<128x128xbf16>, vector<64x128xf32> -> vector<64x128xf32>
    %c0_67 = arith.constant 0 : index
    %c0_68 = arith.constant 0 : index
    %73 = vector.load %arg6[%c0_67, %c0_68] : memref<64x128xf32, #tpu.memory_space<vmem>>, vector<64x128xf32>
    %74 = arith.addf %73, %72 : vector<64x128xf32>
    %c0_69 = arith.constant 0 : index
    %c0_70 = arith.constant 0 : index
    %75 = vector.load %arg6[%c0_69, %c0_70] : memref<64x128xf32, #tpu.memory_space<vmem>>, vector<64x128xf32>
    tpu.vector_store %arg6[%c0_69, %c0_70], %74 {strides = array<i32>} : memref<64x128xf32, #tpu.memory_space<vmem>>, vector<64x128xf32>,
    %c2_i32_71 = arith.constant 2 : i32
    %76 = arith.addi %0, %c2_i32_71 : i32
    %c0_72 = arith.constant 0 : index
    %77 = arith.index_cast %76 : i32 to index
    %c1_73 = arith.constant 1 : index
    %c0_74 = arith.constant 0 : index
    %78 = vector.load %arg2[%c0_72, %77, %c1_73, %c0_74] : memref<1x10x10x128xbf16, #tpu.memory_space<vmem>>, vector<1x8x8x128xbf16>
    %79 = vector.shape_cast %78 : vector<1x8x8x128xbf16> to vector<8x8x128xbf16>
    %80 = vector.shape_cast %79 : vector<8x8x128xbf16> to vector<64x128xbf16>
    %c7 = arith.constant 7 : index
    %c0_75 = arith.constant 0 : index
    %c0_76 = arith.constant 0 : index
    %81 = vector.load %arg3[%c7, %c0_75, %c0_76] : memref<9x128x128xbf16, #tpu.memory_space<vmem>>, vector<1x128x128xbf16>
    %82 = vector.shape_cast %81 : vector<1x128x128xbf16> to vector<128x128xbf16>
    %cst_77 = arith.constant dense<0.000000e+00> : vector<64x128xf32>
    %83 = tpu.matmul %80, %82, %cst_77 {dimension_numbers = #tpu.dot_dimension_numbers<[1], [0], [0], [1], [0, 0, 1, 1], [], []>} : vector<64x128xbf16>, vector<128x128xbf16>, vector<64x128xf32> -> vector<64x128xf32>
    %c0_78 = arith.constant 0 : index
    %c0_79 = arith.constant 0 : index
    %84 = vector.load %arg6[%c0_78, %c0_79] : memref<64x128xf32, #tpu.memory_space<vmem>>, vector<64x128xf32>
    %85 = arith.addf %84, %83 : vector<64x128xf32>
    %c0_80 = arith.constant 0 : index
    %c0_81 = arith.constant 0 : index
    %86 = vector.load %arg6[%c0_80, %c0_81] : memref<64x128xf32, #tpu.memory_space<vmem>>, vector<64x128xf32>
    tpu.vector_store %arg6[%c0_80, %c0_81], %85 {strides = array<i32>} : memref<64x128xf32, #tpu.memory_space<vmem>>, vector<64x128xf32>,
    %c2_i32_82 = arith.constant 2 : i32
    %87 = arith.addi %0, %c2_i32_82 : i32
    %c0_83 = arith.constant 0 : index
    %88 = arith.index_cast %87 : i32 to index
    %c2_84 = arith.constant 2 : index
    %c0_85 = arith.constant 0 : index
    %89 = vector.load %arg2[%c0_83, %88, %c2_84, %c0_85] : memref<1x10x10x128xbf16, #tpu.memory_space<vmem>>, vector<1x8x8x128xbf16>
    %90 = vector.shape_cast %89 : vector<1x8x8x128xbf16> to vector<8x8x128xbf16>
    %91 = vector.shape_cast %90 : vector<8x8x128xbf16> to vector<64x128xbf16>
    %c8 = arith.constant 8 : index
    %c0_86 = arith.constant 0 : index
    %c0_87 = arith.constant 0 : index
    %92 = vector.load %arg3[%c8, %c0_86, %c0_87] : memref<9x128x128xbf16, #tpu.memory_space<vmem>>, vector<1x128x128xbf16>
    %93 = vector.shape_cast %92 : vector<1x128x128xbf16> to vector<128x128xbf16>
    %cst_88 = arith.constant dense<0.000000e+00> : vector<64x128xf32>
    %94 = tpu.matmul %91, %93, %cst_88 {dimension_numbers = #tpu.dot_dimension_numbers<[1], [0], [0], [1], [0, 0, 1, 1], [], []>} : vector<64x128xbf16>, vector<128x128xbf16>, vector<64x128xf32> -> vector<64x128xf32>
    %c0_89 = arith.constant 0 : index
    %c0_90 = arith.constant 0 : index
    %95 = vector.load %arg6[%c0_89, %c0_90] : memref<64x128xf32, #tpu.memory_space<vmem>>, vector<64x128xf32>
    %96 = arith.addf %95, %94 : vector<64x128xf32>
    %c0_91 = arith.constant 0 : index
    %c0_92 = arith.constant 0 : index
    %97 = vector.load %arg6[%c0_91, %c0_92] : memref<64x128xf32, #tpu.memory_space<vmem>>, vector<64x128xf32>
    tpu.vector_store %arg6[%c0_91, %c0_92], %96 {strides = array<i32>} : memref<64x128xf32, #tpu.memory_space<vmem>>, vector<64x128xf32>,
    %c0_93 = arith.constant 0 : index
    %c0_94 = arith.constant 0 : index
    %98 = vector.load %arg6[%c0_93, %c0_94] : memref<64x128xf32, #tpu.memory_space<vmem>>, vector<64x128xf32>
    %99 = vector.shape_cast %98 : vector<64x128xf32> to vector<8x8x128xf32>
    %100 = arith.truncf %99 : vector<8x8x128xf32> to vector<8x8x128xbf16>
    %c0_95 = arith.constant 0 : index
    %c0_96 = arith.constant 0 : index
    %c0_97 = arith.constant 0 : index
    %c0_98 = arith.constant 0 : index
    %101 = vector.load %arg4[%c0_95, %c0_96, %c0_97, %c0_98] : memref<1x8x8x128xbf16, #tpu.memory_space<vmem>>, vector<1x8x8x128xbf16>
    %102 = vector.shape_cast %101 : vector<1x8x8x128xbf16> to vector<8x8x128xbf16>
    %103 = vector.shape_cast %100 : vector<8x8x128xbf16> to vector<1x8x8x128xbf16>
    tpu.vector_store %arg4[%c0_95, %c0_96, %c0_97, %c0_98], %103 {strides = array<i32>} : memref<1x8x8x128xbf16, #tpu.memory_space<vmem>>, vector<1x8x8x128xbf16>,
    %cst_99 = arith.constant dense<0.000000e+00> : vector<128xf32>
    %104 = vector.multi_reduction <add>, %98, %cst_99 [0] : vector<64x128xf32> to vector<128xf32>
    %105 = vector.shape_cast %104 : vector<128xf32> to vector<1x128xf32>
    %c0_100 = arith.constant 0 : index
    %c0_101 = arith.constant 0 : index
    %c0_102 = arith.constant 0 : index
    %c0_103 = arith.constant 0 : index
    %106 = vector.load %arg5[%c0_100, %c0_101, %c0_102, %c0_103] : memref<1x1x2x128xf32, #tpu.memory_space<vmem>>, vector<1x1x1x128xf32>
    %107 = vector.shape_cast %106 : vector<1x1x1x128xf32> to vector<1x128xf32>
    %108 = vector.shape_cast %105 : vector<1x128xf32> to vector<1x1x1x128xf32>
    tpu.vector_store %arg5[%c0_100, %c0_101, %c0_102, %c0_103], %108 {strides = array<i32>} : memref<1x1x2x128xf32, #tpu.memory_space<vmem>>, vector<1x1x1x128xf32>,
    %109 = arith.mulf %98, %98 : vector<64x128xf32>
    %cst_104 = arith.constant dense<0.000000e+00> : vector<128xf32>
    %110 = vector.multi_reduction <add>, %109, %cst_104 [0] : vector<64x128xf32> to vector<128xf32>
    %111 = vector.shape_cast %110 : vector<128xf32> to vector<1x128xf32>
    %c0_105 = arith.constant 0 : index
    %c0_106 = arith.constant 0 : index
    %c1_107 = arith.constant 1 : index
    %c0_108 = arith.constant 0 : index
    %112 = vector.load %arg5[%c0_105, %c0_106, %c1_107, %c0_108] : memref<1x1x2x128xf32, #tpu.memory_space<vmem>>, vector<1x1x1x128xf32>
    %113 = vector.shape_cast %112 : vector<1x1x1x128xf32> to vector<1x128xf32>
    %114 = vector.shape_cast %111 : vector<1x128xf32> to vector<1x1x1x128xf32>
    tpu.vector_store %arg5[%c0_105, %c0_106, %c1_107, %c0_108], %114 {strides = array<i32>} : memref<1x1x2x128xf32, #tpu.memory_space<vmem>>, vector<1x1x1x128xf32>,
    return
  }
  func.func @transform_0(%arg0: i32, %arg1: i32) -> (i32, i32, i32, i32) {
    %c0_i32 = arith.constant 0 : i32
    %c0_i32_0 = arith.constant 0 : i32
    %c0_i32_1 = arith.constant 0 : i32
    %c0_i32_2 = arith.constant 0 : i32
    return %arg0, %c0_i32, %c0_i32_0, %c0_i32_1 : i32, i32, i32, i32
  }
  func.func @transform_1(%arg0: i32, %arg1: i32) -> (i32, i32, i32) {
    %c0_i32 = arith.constant 0 : i32
    %c0_i32_0 = arith.constant 0 : i32
    %c0_i32_1 = arith.constant 0 : i32
    %c0_i32_2 = arith.constant 0 : i32
    return %c0_i32, %c0_i32_0, %c0_i32_1 : i32, i32, i32
  }
  func.func @transform_2(%arg0: i32, %arg1: i32) -> (i32, i32, i32, i32) {
    %c0_i32 = arith.constant 0 : i32
    %c0_i32_0 = arith.constant 0 : i32
    %c0_i32_1 = arith.constant 0 : i32
    return %arg0, %arg1, %c0_i32, %c0_i32_0 : i32, i32, i32, i32
  }
  func.func @transform_3(%arg0: i32, %arg1: i32) -> (i32, i32, i32, i32) {
    %c0_i32 = arith.constant 0 : i32
    %c0_i32_0 = arith.constant 0 : i32
    %c0_i32_1 = arith.constant 0 : i32
    return %arg0, %arg1, %c0_i32, %c0_i32_0 : i32, i32, i32, i32
  }
}

</mosaic_0001>

<llo_original>
// kernel: down_forward.7
$region0: #{down_forward.7}
  #allocation0 [shape = 'u32[]', space=smem, size = 0x4, offset = 0x4, fixed_abs, tag = 'smem constant byte address 0x4 - core index']
  #allocation1 [shape = 'u32[144,128]{1,0:T(1,128)}', space=vmem, size = 0x12000, scoped, tag = 'internal scratch']
  %s0 = inlined_call_operand.vmem [shape: bf16[128,128], index: 0, kind: input, shape index: {}]
  %s1 = inlined_call_operand.vmem [shape: f32[1,128], index: 1, kind: input, shape index: {}]
  %s2 = inlined_call_operand.vmem [shape: f32[1,128], index: 2, kind: input, shape index: {}]
  %s3 = inlined_call_operand.vmem [shape: bf16[128,128], index: 3, kind: output, shape index: {}]
  %s4 = sld [smem:[#allocation0]]
  $region22: #{down_forward.7} parent=0
    _
  %s6 = ssub.s32 1, %s4
  %s7 = scalar_select 0, %s6, %s4
  // Predicated region
  $region2: #{down_forward.7} parent=0 // pred_check
    _
  $region3: #{down_forward.7} parent=0 // pred_check_branch
    %9 = sbr.rel (0) target = $region5
  $region4: #{down_forward.7} parent=0 // pred_region
    _
  $region5: #{down_forward.7} parent=0 // pred_fallthru
    _
  // Predicated region
  $region6: #{down_forward.7} parent=0 // pred_check
    _
  $region7: #{down_forward.7} parent=0 // pred_check_branch
    %11 = sbr.rel (0) target = $region9
  $region8: #{down_forward.7} parent=0 // pred_region
    _
  $region9: #{down_forward.7} parent=0 // pred_fallthru
    _
  // Predicated region
  $region10: #{down_forward.7} parent=0 // pred_check
    _
  $region11: #{down_forward.7} parent=0 // pred_check_branch
    %13 = sbr.rel (0) target = $region13
  $region12: #{down_forward.7} parent=0 // pred_region
    _
  $region13: #{down_forward.7} parent=0 // pred_fallthru
    _
  %v14 = vld [vmem:[%s0] sm:$0xf]
  %v15 = vld [vmem:[%s0 + $0x4] sm:$0xf]
  %v16 = vld [vmem:[%s0 + $0x8] sm:$0xf]
  %v17 = vld [vmem:[%s0 + $0xc] sm:$0xf]
  %v18 = vld [vmem:[%s0 + $0x10] sm:$0xf]
  %v19 = vld [vmem:[%s0 + $0x14] sm:$0xf]
  %v20 = vld [vmem:[%s0 + $0x18] sm:$0xf]
  %v21 = vld [vmem:[%s0 + $0x1c] sm:$0xf]
  %v22 = vld [vmem:[%s0 + $0x20] sm:$0xf]
  %v23 = vld [vmem:[%s0 + $0x24] sm:$0xf]
  %v24 = vld [vmem:[%s0 + $0x28] sm:$0xf]
  %v25 = vld [vmem:[%s0 + $0x2c] sm:$0xf]
  %v26 = vld [vmem:[%s0 + $0x30] sm:$0xf]
  %v27 = vld [vmem:[%s0 + $0x34] sm:$0xf]
  %v28 = vld [vmem:[%s0 + $0x38] sm:$0xf]
  %v29 = vld [vmem:[%s0 + $0x3c] sm:$0xf]
  %v30 = vunpack.c.l.bf16 %v14
  %v31 = vunpack.c.l.bf16 %v15
  %v32 = vunpack.c.l.bf16 %v16
  %v33 = vunpack.c.l.bf16 %v17
  %v34 = vunpack.c.l.bf16 %v18
  %v35 = vunpack.c.l.bf16 %v19
  %v36 = vunpack.c.l.bf16 %v20
  %v37 = vunpack.c.l.bf16 %v21
  %v38 = vunpack.c.l.bf16 %v22
  %v39 = vunpack.c.l.bf16 %v23
  %v40 = vunpack.c.l.bf16 %v24
  %v41 = vunpack.c.l.bf16 %v25
  %v42 = vunpack.c.l.bf16 %v26
  %v43 = vunpack.c.l.bf16 %v27
  %v44 = vunpack.c.l.bf16 %v28
  %v45 = vunpack.c.l.bf16 %v29
  %v46 = vld [vmem:[%s1] sm:$0x1]
  %v48 = vlaneseq
  %v49 = vshrl.u32 %v48, 7
  %v50 = vsub.s32 0, %v49
  %v51 = vrot.slane %v46, %v50
  %v53 = vmul.f32 %v30, %v51
  %v54 = vmul.f32 %v31, %v51
  %v55 = vmul.f32 %v32, %v51
  %v56 = vmul.f32 %v33, %v51
  %v57 = vmul.f32 %v34, %v51
  %v58 = vmul.f32 %v35, %v51
  %v59 = vmul.f32 %v36, %v51
  %v60 = vmul.f32 %v37, %v51
  %v61 = vmul.f32 %v38, %v51
  %v62 = vmul.f32 %v39, %v51
  %v63 = vmul.f32 %v40, %v51
  %v64 = vmul.f32 %v41, %v51
  %v65 = vmul.f32 %v42, %v51
  %v66 = vmul.f32 %v43, %v51
  %v67 = vmul.f32 %v44, %v51
  %v68 = vmul.f32 %v45, %v51
  %v69 = vld [vmem:[%s2] sm:$0x1]
  %v71 = vlaneseq
  %v72 = vshrl.u32 %v71, 7
  %v73 = vsub.s32 0, %v72
  %v74 = vrot.slane %v69, %v73
  %v76 = vadd.f32 %v53, %v74
  %v77 = vadd.f32 %v54, %v74
  %v78 = vadd.f32 %v55, %v74
  %v79 = vadd.f32 %v56, %v74
  %v80 = vadd.f32 %v57, %v74
  %v81 = vadd.f32 %v58, %v74
  %v82 = vadd.f32 %v59, %v74
  %v83 = vadd.f32 %v60, %v74
  %v84 = vadd.f32 %v61, %v74
  %v85 = vadd.f32 %v62, %v74
  %v86 = vadd.f32 %v63, %v74
  %v87 = vadd.f32 %v64, %v74
  %v88 = vadd.f32 %v65, %v74
  %v89 = vadd.f32 %v66, %v74
  %v90 = vadd.f32 %v67, %v74
  %v91 = vadd.f32 %v68, %v74
  %vm92 = vcmp.ge.f32.partialorder %v76, 0.0
  %vm93 = vcmp.ge.f32.partialorder %v77, 0.0
  %vm94 = vcmp.ge.f32.partialorder %v78, 0.0
  %vm95 = vcmp.ge.f32.partialorder %v79, 0.0
  %vm96 = vcmp.ge.f32.partialorder %v80, 0.0
  %vm97 = vcmp.ge.f32.partialorder %v81, 0.0
  %vm98 = vcmp.ge.f32.partialorder %v82, 0.0
  %vm99 = vcmp.ge.f32.partialorder %v83, 0.0
  %vm100 = vcmp.ge.f32.partialorder %v84, 0.0
  %vm101 = vcmp.ge.f32.partialorder %v85, 0.0
  %vm102 = vcmp.ge.f32.partialorder %v86, 0.0
  %vm103 = vcmp.ge.f32.partialorder %v87, 0.0
  %vm104 = vcmp.ge.f32.partialorder %v88, 0.0
  %vm105 = vcmp.ge.f32.partialorder %v89, 0.0
  %vm106 = vcmp.ge.f32.partialorder %v90, 0.0
  %vm107 = vcmp.ge.f32.partialorder %v91, 0.0
  %v108 = vmul.f32 %v76, 0.2
  %v109 = vmul.f32 %v77, 0.2
  %v110 = vmul.f32 %v78, 0.2
  %v111 = vmul.f32 %v79, 0.2
  %v112 = vmul.f32 %v80, 0.2
  %v113 = vmul.f32 %v81, 0.2
  %v114 = vmul.f32 %v82, 0.2
  %v115 = vmul.f32 %v83, 0.2
  %v116 = vmul.f32 %v84, 0.2
  %v117 = vmul.f32 %v85, 0.2
  %v118 = vmul.f32 %v86, 0.2
  %v119 = vmul.f32 %v87, 0.2
  %v120 = vmul.f32 %v88, 0.2
  %v121 = vmul.f32 %v89, 0.2
  %v122 = vmul.f32 %v90, 0.2
  %v123 = vmul.f32 %v91, 0.2
  %v124 = vsel %vm92, %v76, %v108
  %v125 = vsel %vm93, %v77, %v109
  %v126 = vsel %vm94, %v78, %v110
  %v127 = vsel %vm95, %v79, %v111
  %v128 = vsel %vm96, %v80, %v112
  %v129 = vsel %vm97, %v81, %v113
  %v130 = vsel %vm98, %v82, %v114
  %v131 = vsel %vm99, %v83, %v115
  %v132 = vsel %vm100, %v84, %v116
  %v133 = vsel %vm101, %v85, %v117
  %v134 = vsel %vm102, %v86, %v118
  %v135 = vsel %vm103, %v87, %v119
  %v136 = vsel %vm104, %v88, %v120
  %v137 = vsel %vm105, %v89, %v121
  %v138 = vsel %vm106, %v90, %v122
  %v139 = vsel %vm107, %v91, %v123
  %v140 = vpack.c.bf16 %v125, %v124
  %v141 = vpack.c.bf16 %v127, %v126
  %v142 = vpack.c.bf16 %v129, %v128
  %v143 = vpack.c.bf16 %v131, %v130
  %v144 = vpack.c.bf16 %v133, %v132
  %v145 = vpack.c.bf16 %v135, %v134
  %v146 = vpack.c.bf16 %v137, %v136
  %v147 = vpack.c.bf16 %v139, %v138
  %v156 = vunpack.c.l.b16 %v140
  %v157 = vunpack.c.h.b16 %v140
  %v158 = vunpack.c.l.b16 %v141
  %v159 = vunpack.c.h.b16 %v141
  %v160 = vunpack.c.l.b16 %v142
  %v161 = vunpack.c.h.b16 %v142
  %v162 = vunpack.c.l.b16 %v143
  %v163 = vunpack.c.h.b16 %v143
  %v164 = vunpack.c.l.b16 %v144
  %v165 = vunpack.c.h.b16 %v144
  %v166 = vunpack.c.l.b16 %v145
  %v167 = vunpack.c.h.b16 %v145
  %v168 = vunpack.c.l.b16 %v146
  %v169 = vunpack.c.h.b16 %v146
  %v170 = vunpack.c.l.b16 %v147
  %v171 = vunpack.c.h.b16 %v147
  %v172 = vpack.c.b16 %v156, %v156
  %v173 = vpack.c.b16 %v157, %v157
  %v174 = vpack.c.b16 %v158, %v158
  %v175 = vpack.c.b16 %v159, %v159
  %v176 = vpack.c.b16 %v160, %v160
  %v177 = vpack.c.b16 %v161, %v161
  %v178 = vpack.c.b16 %v162, %v162
  %v179 = vpack.c.b16 %v163, %v163
  %v180 = vpack.c.b16 %v164, %v164
  %v181 = vpack.c.b16 %v165, %v165
  %v182 = vpack.c.b16 %v166, %v166
  %v183 = vpack.c.b16 %v167, %v167
  %v184 = vpack.c.b16 %v168, %v168
  %v185 = vpack.c.b16 %v169, %v169
  %v186 = vpack.c.b16 %v170, %v170
  %v187 = vpack.c.b16 %v171, %v171
  %204 = vst [vmem:[%s3] sm:$0xf] %v172
  %205 = vst [vmem:[%s3 + $0x4] sm:$0xf] %v173
  %206 = vst [vmem:[%s3 + $0x8] sm:$0xf] %v174
  %207 = vst [vmem:[%s3 + $0xc] sm:$0xf] %v175
  %208 = vst [vmem:[%s3 + $0x10] sm:$0xf] %v176
  %209 = vst [vmem:[%s3 + $0x14] sm:$0xf] %v177
  %210 = vst [vmem:[%s3 + $0x18] sm:$0xf] %v178
  %211 = vst [vmem:[%s3 + $0x1c] sm:$0xf] %v179
  %212 = vst [vmem:[%s3 + $0x20] sm:$0xf] %v180
  %213 = vst [vmem:[%s3 + $0x24] sm:$0xf] %v181
  %214 = vst [vmem:[%s3 + $0x28] sm:$0xf] %v182
  %215 = vst [vmem:[%s3 + $0x2c] sm:$0xf] %v183
  %216 = vst [vmem:[%s3 + $0x30] sm:$0xf] %v184
  %217 = vst [vmem:[%s3 + $0x34] sm:$0xf] %v185
  %218 = vst [vmem:[%s3 + $0x38] sm:$0xf] %v186
  %219 = vst [vmem:[%s3 + $0x3c] sm:$0xf] %v187
  // Predicated region
  $region14: #{down_forward.7} parent=0 // pred_check
    _
  $region15: #{down_forward.7} parent=0 // pred_check_branch
    %221 = sbr.rel (0) target = $region17
  $region16: #{down_forward.7} parent=0 // pred_region
    _
  $region17: #{down_forward.7} parent=0 // pred_fallthru
    _
  // Predicated region
  $region18: #{down_forward.7} parent=0 // pred_check
    _
  $region19: #{down_forward.7} parent=0 // pred_check_branch
    %223 = sbr.rel (0) target = $region21
  $region20: #{down_forward.7} parent=0 // pred_region
    _
  $region21: #{down_forward.7} parent=0 // pred_fallthru
    _

// kernel: down_forward.11
$region0: #{down_forward.11}
  #allocation0 [shape = 'u32[]', space=smem, size = 0x4, offset = 0x4, fixed_abs, tag = 'smem constant byte address 0x4 - core index']
  #allocation1 [shape = 'u32[144,128]{1,0:T(1,128)}', space=vmem, size = 0x12000, scoped, tag = 'internal scratch']
  %s0 = inlined_call_operand.vmem [shape: bf16[128,128], index: 0, kind: input, shape index: {}]
  %s1 = inlined_call_operand.vmem [shape: f32[1,128], index: 1, kind: input, shape index: {}]
  %s2 = inlined_call_operand.vmem [shape: f32[1,128], index: 2, kind: input, shape index: {}]
  %s3 = inlined_call_operand.vmem [shape: f32[128,128], index: 3, kind: output, shape index: {}]
  %s4 = sld [smem:[#allocation0]]
  $region22: #{down_forward.11} parent=0
    _
  %s6 = ssub.s32 1, %s4
  %s7 = scalar_select 0, %s6, %s4
  // Predicated region
  $region2: #{down_forward.11} parent=0 // pred_check
    _
  $region3: #{down_forward.11} parent=0 // pred_check_branch
    %9 = sbr.rel (0) target = $region5
  $region4: #{down_forward.11} parent=0 // pred_region
    _
  $region5: #{down_forward.11} parent=0 // pred_fallthru
    _
  // Predicated region
  $region6: #{down_forward.11} parent=0 // pred_check
    _
  $region7: #{down_forward.11} parent=0 // pred_check_branch
    %11 = sbr.rel (0) target = $region9
  $region8: #{down_forward.11} parent=0 // pred_region
    _
  $region9: #{down_forward.11} parent=0 // pred_fallthru
    _
  // Predicated region
  $region10: #{down_forward.11} parent=0 // pred_check
    _
  $region11: #{down_forward.11} parent=0 // pred_check_branch
    %13 = sbr.rel (0) target = $region13
  $region12: #{down_forward.11} parent=0 // pred_region
    _
  $region13: #{down_forward.11} parent=0 // pred_fallthru
    _
  %v14 = vld [vmem:[%s0] sm:$0xf]
  %v15 = vld [vmem:[%s0 + $0x4] sm:$0xf]
  %v16 = vld [vmem:[%s0 + $0x8] sm:$0xf]
  %v17 = vld [vmem:[%s0 + $0xc] sm:$0xf]
  %v18 = vld [vmem:[%s0 + $0x10] sm:$0xf]
  %v19 = vld [vmem:[%s0 + $0x14] sm:$0xf]
  %v20 = vld [vmem:[%s0 + $0x18] sm:$0xf]
  %v21 = vld [vmem:[%s0 + $0x1c] sm:$0xf]
  %v22 = vld [vmem:[%s0 + $0x20] sm:$0xf]
  %v23 = vld [vmem:[%s0 + $0x24] sm:$0xf]
  %v24 = vld [vmem:[%s0 + $0x28] sm:$0xf]
  %v25 = vld [vmem:[%s0 + $0x2c] sm:$0xf]
  %v26 = vld [vmem:[%s0 + $0x30] sm:$0xf]
  %v27 = vld [vmem:[%s0 + $0x34] sm:$0xf]
  %v28 = vld [vmem:[%s0 + $0x38] sm:$0xf]
  %v29 = vld [vmem:[%s0 + $0x3c] sm:$0xf]
  %v30 = vunpack.c.l.bf16 %v14
  %v31 = vunpack.c.l.bf16 %v15
  %v32 = vunpack.c.l.bf16 %v16
  %v33 = vunpack.c.l.bf16 %v17
  %v34 = vunpack.c.l.bf16 %v18
  %v35 = vunpack.c.l.bf16 %v19
  %v36 = vunpack.c.l.bf16 %v20
  %v37 = vunpack.c.l.bf16 %v21
  %v38 = vunpack.c.l.bf16 %v22
  %v39 = vunpack.c.l.bf16 %v23
  %v40 = vunpack.c.l.bf16 %v24
  %v41 = vunpack.c.l.bf16 %v25
  %v42 = vunpack.c.l.bf16 %v26
  %v43 = vunpack.c.l.bf16 %v27
  %v44 = vunpack.c.l.bf16 %v28
  %v45 = vunpack.c.l.bf16 %v29
  %v46 = vld [vmem:[%s1] sm:$0x1]
  %v48 = vlaneseq
  %v49 = vshrl.u32 %v48, 7
  %v50 = vsub.s32 0, %v49
  %v51 = vrot.slane %v46, %v50
  %v53 = vmul.f32 %v30, %v51
  %v54 = vmul.f32 %v31, %v51
  %v55 = vmul.f32 %v32, %v51
  %v56 = vmul.f32 %v33, %v51
  %v57 = vmul.f32 %v34, %v51
  %v58 = vmul.f32 %v35, %v51
  %v59 = vmul.f32 %v36, %v51
  %v60 = vmul.f32 %v37, %v51
  %v61 = vmul.f32 %v38, %v51
  %v62 = vmul.f32 %v39, %v51
  %v63 = vmul.f32 %v40, %v51
  %v64 = vmul.f32 %v41, %v51
  %v65 = vmul.f32 %v42, %v51
  %v66 = vmul.f32 %v43, %v51
  %v67 = vmul.f32 %v44, %v51
  %v68 = vmul.f32 %v45, %v51
  %v69 = vld [vmem:[%s2] sm:$0x1]
  %v71 = vlaneseq
  %v72 = vshrl.u32 %v71, 7
  %v73 = vsub.s32 0, %v72
  %v74 = vrot.slane %v69, %v73
  %v76 = vadd.f32 %v53, %v74
  %v77 = vadd.f32 %v54, %v74
  %v78 = vadd.f32 %v55, %v74
  %v79 = vadd.f32 %v56, %v74
  %v80 = vadd.f32 %v57, %v74
  %v81 = vadd.f32 %v58, %v74
  %v82 = vadd.f32 %v59, %v74
  %v83 = vadd.f32 %v60, %v74
  %v84 = vadd.f32 %v61, %v74
  %v85 = vadd.f32 %v62, %v74
  %v86 = vadd.f32 %v63, %v74
  %v87 = vadd.f32 %v64, %v74
  %v88 = vadd.f32 %v65, %v74
  %v89 = vadd.f32 %v66, %v74
  %v90 = vadd.f32 %v67, %v74
  %v91 = vadd.f32 %v68, %v74
  %vm92 = vcmp.ge.f32.partialorder %v76, 0.0
  %vm93 = vcmp.ge.f32.partialorder %v77, 0.0
  %vm94 = vcmp.ge.f32.partialorder %v78, 0.0
  %vm95 = vcmp.ge.f32.partialorder %v79, 0.0
  %vm96 = vcmp.ge.f32.partialorder %v80, 0.0
  %vm97 = vcmp.ge.f32.partialorder %v81, 0.0
  %vm98 = vcmp.ge.f32.partialorder %v82, 0.0
  %vm99 = vcmp.ge.f32.partialorder %v83, 0.0
  %vm100 = vcmp.ge.f32.partialorder %v84, 0.0
  %vm101 = vcmp.ge.f32.partialorder %v85, 0.0
  %vm102 = vcmp.ge.f32.partialorder %v86, 0.0
  %vm103 = vcmp.ge.f32.partialorder %v87, 0.0
  %vm104 = vcmp.ge.f32.partialorder %v88, 0.0
  %vm105 = vcmp.ge.f32.partialorder %v89, 0.0
  %vm106 = vcmp.ge.f32.partialorder %v90, 0.0
  %vm107 = vcmp.ge.f32.partialorder %v91, 0.0
  %v108 = vmul.f32 %v76, 0.2
  %v109 = vmul.f32 %v77, 0.2
  %v110 = vmul.f32 %v78, 0.2
  %v111 = vmul.f32 %v79, 0.2
  %v112 = vmul.f32 %v80, 0.2
  %v113 = vmul.f32 %v81, 0.2
  %v114 = vmul.f32 %v82, 0.2
  %v115 = vmul.f32 %v83, 0.2
  %v116 = vmul.f32 %v84, 0.2
  %v117 = vmul.f32 %v85, 0.2
  %v118 = vmul.f32 %v86, 0.2
  %v119 = vmul.f32 %v87, 0.2
  %v120 = vmul.f32 %v88, 0.2
  %v121 = vmul.f32 %v89, 0.2
  %v122 = vmul.f32 %v90, 0.2
  %v123 = vmul.f32 %v91, 0.2
  %v124 = vsel %vm92, %v76, %v108
  %v125 = vsel %vm93, %v77, %v109
  %v126 = vsel %vm94, %v78, %v110
  %v127 = vsel %vm95, %v79, %v111
  %v128 = vsel %vm96, %v80, %v112
  %v129 = vsel %vm97, %v81, %v113
  %v130 = vsel %vm98, %v82, %v114
  %v131 = vsel %vm99, %v83, %v115
  %v132 = vsel %vm100, %v84, %v116
  %v133 = vsel %vm101, %v85, %v117
  %v134 = vsel %vm102, %v86, %v118
  %v135 = vsel %vm103, %v87, %v119
  %v136 = vsel %vm104, %v88, %v120
  %v137 = vsel %vm105, %v89, %v121
  %v138 = vsel %vm106, %v90, %v122
  %v139 = vsel %vm107, %v91, %v123
  %140 = vst [vmem:[%s3] sm:$0xff] %v124
  %141 = vst [vmem:[%s3 + $0x8] sm:$0xff] %v125
  %142 = vst [vmem:[%s3 + $0x10] sm:$0xff] %v126
  %143 = vst [vmem:[%s3 + $0x18] sm:$0xff] %v127
  %144 = vst [vmem:[%s3 + $0x20] sm:$0xff] %v128
  %145 = vst [vmem:[%s3 + $0x28] sm:$0xff] %v129
  %146 = vst [vmem:[%s3 + $0x30] sm:$0xff] %v130
  %147 = vst [vmem:[%s3 + $0x38] sm:$0xff] %v131
  %148 = vst [vmem:[%s3 + $0x40] sm:$0xff] %v132
  %149 = vst [vmem:[%s3 + $0x48] sm:$0xff] %v133
  %150 = vst [vmem:[%s3 + $0x50] sm:$0xff] %v134
  %151 = vst [vmem:[%s3 + $0x58] sm:$0xff] %v135
  %152 = vst [vmem:[%s3 + $0x60] sm:$0xff] %v136
  %153 = vst [vmem:[%s3 + $0x68] sm:$0xff] %v137
  %154 = vst [vmem:[%s3 + $0x70] sm:$0xff] %v138
  %155 = vst [vmem:[%s3 + $0x78] sm:$0xff] %v139
  // Predicated region
  $region14: #{down_forward.11} parent=0 // pred_check
    _
  $region15: #{down_forward.11} parent=0 // pred_check_branch
    %157 = sbr.rel (0) target = $region17
  $region16: #{down_forward.11} parent=0 // pred_region
    _
  $region17: #{down_forward.11} parent=0 // pred_fallthru
    _
  // Predicated region
  $region18: #{down_forward.11} parent=0 // pred_check
    _
  $region19: #{down_forward.11} parent=0 // pred_check_branch
    %159 = sbr.rel (0) target = $region21
  $region20: #{down_forward.11} parent=0 // pred_region
    _
  $region21: #{down_forward.11} parent=0 // pred_fallthru
    _

// kernel: down_forward.6
$region0: #{down_forward.6}
  #allocation0 [shape = 'u32[]', space=smem, size = 0x4, offset = 0x4, fixed_abs, tag = 'smem constant byte address 0x4 - core index']
  #allocation1 [shape = 'u32[144,128]{1,0:T(1,128)}', space=vmem, size = 0x12000, scoped, tag = 'internal scratch']
  #allocation2 [shape = 'f32[64,128]{1,0:T(8,128)}', space=vmem, size = 0x8000, scoped, tag = 'scratch operand']
  %s0 = inlined_call_operand.vmem [shape: bf16[2,9,9,128], index: 0, kind: input, shape index: {}]
  %s1 = inlined_call_operand.vmem [shape: bf16[4,128,128], index: 1, kind: input, shape index: {}]
  %s2 = inlined_call_operand.vmem [shape: bf16[2,8,8,128], index: 2, kind: output, shape index: {0}]
  %s3 = inlined_call_operand.vmem [shape: f32[2,1,2,128], index: 3, kind: output, shape index: {1}]
  %4 = xla_tuple %s2, %s3
  %s5 = sld [smem:[#allocation0]]
  $region49: #{down_forward.6} parent=0
    _
  %s7 = ssub.s32 1, %s5
  %s8 = scalar_select 0, %s7, %s5
  loop: start=0, step=1, limit=4
  $region2: #{down_forward.6} parent=0 // loop_pre_header
    _
  $region3: #{down_forward.6} parent=0 // loop_header
    %s10 = sphi 0, %s14
    %p11 = scmp.ge.s32.totalorder %s10, 4
    %s17 = sphi 0, %s29
    %s18 = sphi 0, %s25
    %s19 = sphi 0, %s17
    %s20 = sphi 0, %s18
    %s21 = sphi 0, %s19
    %s22 = sphi 0, %s20
    %s32 = sphi 0, %s34
    %s35 = sphi 0, %s32
    %s36 = sphi 0, %s35
    %s52 = sphi 0, %s36
    %s56 = sphi 0, %s56
    %s58 = sphi 0, %s56
    %s59 = sphi 0, %s58
    %s73 = sphi 0, %s59
    %s81 = sphi 0, %s83
    %s84 = sphi 0, %s81
    %s85 = sphi 0, %s84
    %s101 = sphi 0, %s85
    %s109 = sphi 0, %s111
    %s112 = sphi 0, %s109
    %s113 = sphi 0, %s112
    %s129 = sphi 0, %s113
  $region4: #{down_forward.6} parent=0 // loop_header_branch
    %13 = sbr.rel (%p11) target = $region8
  $region5: #{down_forward.6} parent=0 // loop_body
    %s15 = ssub.s32 %s10, 1
    %s16 = ssub.s32 %s10, 2
    %s23 = sadd.s32 1, %s18
    %p24 = scmp.ge.s32.totalorder %s23, 1
    %s25 = scalar_select %p24, 0, %s23
    %s26 = sadd.s32 1, %s17
    %s27 = scalar_select %p24, %s26, %s17
    %p28 = scmp.ge.s32.totalorder %s27, 2
    %s29 = scalar_select %p28, 0, %s27
    %s30 = ssub.s32 %s17, %s29
    %p31 = scmp.eq.s32.totalorder %s30, 0
    %s33 = sadd.s32 %s32, 1
    %s34 = scalar_select %p31, %s32, %s33
    %p37 = pneg %p31
    %p38 = scmp.eq.s32.totalorder %s10, 1
    %p39 = por %p37, %p38
    %p40 = scmp.ne.s32.totalorder %s32, %s35
    %p41 = scmp.eq.s32.totalorder %s10, 0
    %p42 = por %p40, %p41
    %p43 = scmp.ne.s32.totalorder %s32, %s35
    %p44 = scmp.eq.s32.totalorder %s15, 1
    %p45 = por %p43, %p44
    %p46 = scmp.ne.s32.totalorder %s35, %s36
    %p47 = scmp.eq.s32.totalorder %s15, 0
    %p48 = por %p46, %p47
    %p49 = scmp.ne.s32.totalorder %s35, %s36
    %p50 = scmp.eq.s32.totalorder %s16, 1
    %p51 = por %p49, %p50
    %p53 = scmp.ne.s32.totalorder %s36, %s52
    %p54 = scmp.eq.s32.totalorder %s16, 0
    %p55 = por %p53, %p54
    %s57 = sadd.s32 %s56, 1
    %p60 = scmp.eq.s32.totalorder %s10, 1
    %p61 = scmp.ne.s32.totalorder %s56, %s58
    %p62 = scmp.eq.s32.totalorder %s10, 0
    %p63 = por %p61, %p62
    %p64 = scmp.ne.s32.totalorder %s56, %s58
    %p65 = scmp.eq.s32.totalorder %s15, 1
    %p66 = por %p64, %p65
    %p67 = scmp.ne.s32.totalorder %s58, %s59
    %p68 = scmp.eq.s32.totalorder %s15, 0
    %p69 = por %p67, %p68
    %p70 = scmp.ne.s32.totalorder %s58, %s59
    %p71 = scmp.eq.s32.totalorder %s16, 1
    %p72 = por %p70, %p71
    %p74 = scmp.ne.s32.totalorder %s59, %s73
    %p75 = scmp.eq.s32.totalorder %s16, 0
    %p76 = por %p74, %p75
    %s77 = ssub.s32 %s17, %s29
    %s78 = ssub.s32 %s18, %s25
    %s79 = sor.u32 %s77, %s78
    %p80 = scmp.eq.s32.totalorder %s79, 0
    %s82 = sadd.s32 %s81, 1
    %s83 = scalar_select %p80, %s81, %s82
    %p86 = pneg %p80
    %p87 = scmp.eq.s32.totalorder %s10, 1
    %p88 = por %p86, %p87
    %p89 = scmp.ne.s32.totalorder %s81, %s84
    %p90 = scmp.eq.s32.totalorder %s10, 0
    %p91 = por %p89, %p90
    %p92 = scmp.ne.s32.totalorder %s81, %s84
    %p93 = scmp.eq.s32.totalorder %s15, 1
    %p94 = por %p92, %p93
    %p95 = scmp.ne.s32.totalorder %s84, %s85
    %p96 = scmp.eq.s32.totalorder %s15, 0
    %p97 = por %p95, %p96
    %p98 = scmp.ne.s32.totalorder %s84, %s85
    %p99 = scmp.eq.s32.totalorder %s16, 1
    %p100 = por %p98, %p99
    %p102 = scmp.ne.s32.totalorder %s85, %s101
    %p103 = scmp.eq.s32.totalorder %s16, 0
    %p104 = por %p102, %p103
    %s105 = ssub.s32 %s17, %s29
    %s106 = ssub.s32 %s18, %s25
    %s107 = sor.u32 %s105, %s106
    %p108 = scmp.eq.s32.totalorder %s107, 0
    %s110 = sadd.s32 %s109, 1
    %s111 = scalar_select %p108, %s109, %s110
    %p114 = pneg %p108
    %p115 = scmp.eq.s32.totalorder %s10, 1
    %p116 = por %p114, %p115
    %p117 = scmp.ne.s32.totalorder %s109, %s112
    %p118 = scmp.eq.s32.totalorder %s10, 0
    %p119 = por %p117, %p118
    %p120 = scmp.ne.s32.totalorder %s109, %s112
    %p121 = scmp.eq.s32.totalorder %s15, 1
    %p122 = por %p120, %p121
    %p123 = scmp.ne.s32.totalorder %s112, %s113
    %p124 = scmp.eq.s32.totalorder %s15, 0
    %p125 = por %p123, %p124
    %p126 = scmp.ne.s32.totalorder %s112, %s113
    %p127 = scmp.eq.s32.totalorder %s16, 1
    %p128 = por %p126, %p127
    %p130 = scmp.ne.s32.totalorder %s113, %s129
    %p131 = scmp.eq.s32.totalorder %s16, 0
    %p132 = por %p130, %p131
    %p133 = scmp.le.s32.totalorder 1, %s10
    %p134 = scmp.lt.s32.totalorder %s10, 3
    %p135 = pnand %p133, %p134
    %p136 = pneg %p135
    // Predicated region
    $region9: #{down_forward.6} parent=5 // pred_check
      _
    $region10: #{down_forward.6} parent=5 // pred_check_branch
      %138 = sbr.rel (%p135) target = $region12
    $region11: #{down_forward.6} parent=5 // pred_region
      %s139 = ssub.s32 %s10, 1
      // Predicated region
      $region13: #{down_forward.6} parent=11 // pred_check
        %p140 = pneg %p69
      $region14: #{down_forward.6} parent=11 // pred_check_branch
        %142 = sbr.rel (%p140) target = $region16
      $region15: #{down_forward.6} parent=11 // pred_region
        _
      $region16: #{down_forward.6} parent=11 // pred_fallthru
        _
    $region12: #{down_forward.6} parent=5 // pred_fallthru
      _
    %p143 = scmp.lt.s32.totalorder %s10, 2
    // Predicated region
    $region17: #{down_forward.6} parent=5 // pred_check
      %p144 = pneg %p143
    $region18: #{down_forward.6} parent=5 // pred_check_branch
      %146 = sbr.rel (%p144) target = $region20
    $region19: #{down_forward.6} parent=5 // pred_region
      // Predicated region
      $region21: #{down_forward.6} parent=19 // pred_check
        %p147 = pneg %p42
      $region22: #{down_forward.6} parent=19 // pred_check_branch
        %149 = sbr.rel (%p147) target = $region24
      $region23: #{down_forward.6} parent=19 // pred_region
        %p150 = scmp.lt.s32.totalorder %s17, 1
        %s151 = scalar_select %p150, %s17, 1
        %s152 = smul.addr %s151, 18
        %s153 = smul.addr %s152, 4
        %s154 = scalar_lea.vmem %s0, %s153
      $region24: #{down_forward.6} parent=19 // pred_fallthru
        _
    $region20: #{down_forward.6} parent=5 // pred_fallthru
      _
    %p155 = scmp.le.s32.totalorder 1, %s10
    %p156 = scmp.lt.s32.totalorder %s10, 3
    %p157 = pnand %p155, %p156
    %p158 = pneg %p157
    // Predicated region
    $region25: #{down_forward.6} parent=5 // pred_check
      _
    $region26: #{down_forward.6} parent=5 // pred_check_branch
      %160 = sbr.rel (%p157) target = $region28
    $region27: #{down_forward.6} parent=5 // pred_region
      %s161 = ssub.s32 %s10, 1
      %p162 = scmp.lt.s32.totalorder %s19, 1
      %s163 = scalar_select %p162, %s19, 1
      %s164 = smul.addr %s163, 18
      %s165 = smul.addr %s164, 4
      %s166 = scalar_lea.vmem %s0, %s165
      %p167 = pneg %p48
      %p168 = pneg %p45
      %p169 = pneg %p69
      %p170 = pneg %p66
      %p171 = pneg %p97
      %p172 = pneg %p94
      %s173 = smul.u32 8, %s20
      %p174 = scmp.lt.s32.totalorder %s19, 1
      %s175 = scalar_select %p174, %s19, 1
      %p176 = scmp.lt.s32.totalorder %s173, 7
      %s177 = scalar_select %p176, %s173, 7
      %s178 = smul.addr %s175, 8
      %s179 = sadd.s32 %s177, %s178
      %s180 = smul.addr %s179, 4
      %s181 = scalar_lea.vmem %s2, %s180
      %p182 = pneg %p125
      %p183 = pneg %p122
      %p184 = scmp.lt.s32.totalorder %s19, 1
      %s185 = scalar_select %p184, %s19, 1
      %p186 = scmp.lt.s32.totalorder %s20, 0
      %s187 = scalar_select %p186, %s20, 0
      %s188 = sadd.s32 %s187, %s185
      %s189 = smul.addr %s188, 2
      %s190 = scalar_lea.vmem %s3, %s189
      %p191 = scmp.lt.s32.totalorder %s19, 1
      %s192 = scalar_select %p191, %s19, 1
      %s193 = smul.addr %s192, 18
      %s194 = smul.addr %s193, 4
      %s195 = scalar_lea.vmem %s0, %s194
      %s196 = smul.u32 8, %s20
      %p197 = scmp.lt.s32.totalorder %s19, 1
      %s198 = scalar_select %p197, %s19, 1
      %p199 = scmp.lt.s32.totalorder %s196, 7
      %s200 = scalar_select %p199, %s196, 7
      %s201 = smul.addr %s198, 8
      %s202 = sadd.s32 %s200, %s201
      %s203 = smul.addr %s202, 4
      %s204 = scalar_lea.vmem %s2, %s203
      %s205 = smul.u32 8, %s20
      %p206 = scmp.lt.s32.totalorder %s19, 1
      %s207 = scalar_select %p206, %s19, 1
      %p208 = scmp.lt.s32.totalorder %s20, 0
      %s209 = scalar_select %p208, %s20, 0
      %s210 = sadd.s32 %s209, %s207
      %s211 = smul.addr %s210, 2
      %s212 = scalar_lea.vmem %s3, %s211
      %s214 = smul.u32 %s20, 8
      %s215 = smul.u32 %s214, 2
      %s216 = smul.addr %s215, 4
      %s217 = scalar_lea.vmem %s195, %s216
      %v218 = vld [vmem:[%s217] sm:$0xf]
      %v219 = vld [vmem:[%s217 + $0x8] sm:$0xf]
      %v220 = vld [vmem:[%s217 + $0x10] sm:$0xf]
      %v221 = vld [vmem:[%s217 + $0x18] sm:$0xf]
      %v222 = vld [vmem:[%s217 + $0x20] sm:$0xf]
      %v223 = vld [vmem:[%s217 + $0x28] sm:$0xf]
      %v224 = vld [vmem:[%s217 + $0x30] sm:$0xf]
      %v225 = vld [vmem:[%s217 + $0x38] sm:$0xf]
      %v226 = vld [vmem:[%s1] sm:$0xf]
      %v227 = vld [vmem:[%s1 + $0x4] sm:$0xf]
      %v228 = vld [vmem:[%s1 + $0x8] sm:$0xf]
      %v229 = vld [vmem:[%s1 + $0xc] sm:$0xf]
      %v230 = vld [vmem:[%s1 + $0x10] sm:$0xf]
      %v231 = vld [vmem:[%s1 + $0x14] sm:$0xf]
      %v232 = vld [vmem:[%s1 + $0x18] sm:$0xf]
      %v233 = vld [vmem:[%s1 + $0x1c] sm:$0xf]
      %v234 = vld [vmem:[%s1 + $0x20] sm:$0xf]
      %v235 = vld [vmem:[%s1 + $0x24] sm:$0xf]
      %v236 = vld [vmem:[%s1 + $0x28] sm:$0xf]
      %v237 = vld [vmem:[%s1 + $0x2c] sm:$0xf]
      %v238 = vld [vmem:[%s1 + $0x30] sm:$0xf]
      %v239 = vld [vmem:[%s1 + $0x34] sm:$0xf]
      %v240 = vld [vmem:[%s1 + $0x38] sm:$0xf]
      %v241 = vld [vmem:[%s1 + $0x3c] sm:$0xf]
      %v250 = vunpack.c.l.b16 %v218
      %v251 = vunpack.c.l.b16 %v219
      %v252 = vunpack.c.l.b16 %v220
      %v253 = vunpack.c.l.b16 %v221
      %v254 = vunpack.c.l.b16 %v222
      %v255 = vunpack.c.l.b16 %v223
      %v256 = vunpack.c.l.b16 %v224
      %v257 = vunpack.c.l.b16 %v225
      %v258 = vpack.c.b16 %v251, %v250
      %v259 = vpack.c.b16 %v253, %v252
      %v260 = vpack.c.b16 %v255, %v254
      %v261 = vpack.c.b16 %v257, %v256
      %v282 = vunpack.c.l.b16 %v226
      %v283 = vunpack.c.l.b16 %v227
      %v284 = vunpack.c.l.b16 %v228
      %v285 = vunpack.c.l.b16 %v229
      %v286 = vunpack.c.l.b16 %v230
      %v287 = vunpack.c.l.b16 %v231
      %v288 = vunpack.c.l.b16 %v232
      %v289 = vunpack.c.l.b16 %v233
      %v290 = vunpack.c.l.b16 %v234
      %v291 = vunpack.c.l.b16 %v235
      %v292 = vunpack.c.l.b16 %v236
      %v293 = vunpack.c.l.b16 %v237
      %v294 = vunpack.c.l.b16 %v238
      %v295 = vunpack.c.l.b16 %v239
      %v296 = vunpack.c.l.b16 %v240
      %v297 = vunpack.c.l.b16 %v241
      %v298 = vpack.c.b16 %v283, %v282
      %v299 = vpack.c.b16 %v285, %v284
      %v300 = vpack.c.b16 %v287, %v286
      %v301 = vpack.c.b16 %v289, %v288
      %v302 = vpack.c.b16 %v291, %v290
      %v303 = vpack.c.b16 %v293, %v292
      %v304 = vpack.c.b16 %v295, %v294
      %v305 = vpack.c.b16 %v297, %v296
      %314 = vmatprep.subr.bf16.mxu0 0
      %315 = vmatpush1.bf16.msra.mxu0 %v298
      %316 = vmatprep.subr.bf16.mxu0 0
      %317 = vmatpush1.bf16.msra.mxu0 %v299
      %318 = vmatprep.subr.bf16.mxu0 0
      %319 = vmatpush1.bf16.msra.mxu0 %v300
      %320 = vmatprep.subr.bf16.mxu0 0
      %321 = vmatpush1.bf16.msra.mxu0 %v301
      %322 = vmatprep.subr.bf16.mxu0 0
      %323 = vmatpush1.bf16.msra.mxu0 %v302
      %324 = vmatprep.subr.bf16.mxu0 0
      %325 = vmatpush1.bf16.msra.mxu0 %v303
      %326 = vmatprep.subr.bf16.mxu0 0
      %327 = vmatpush1.bf16.msra.mxu0 %v304
      %328 = vmatprep.subr.bf16.mxu0 0
      %329 = vmatpush1.bf16.msra.mxu0 %v305
      %330 = vmatprep.subr.bf16.mxu0 0
      %331 = vmatpush1.bf16.msra.mxu0 0
      %332 = vmatprep.subr.bf16.mxu0 0
      %333 = vmatpush1.bf16.msra.mxu0 0
      %334 = vmatprep.subr.bf16.mxu0 0
      %335 = vmatpush1.bf16.msra.mxu0 0
      %336 = vmatprep.subr.bf16.mxu0 0
      %337 = vmatpush1.bf16.msra.mxu0 0
      %338 = vmatprep.subr.bf16.mxu0 0
      %339 = vmatpush1.bf16.msra.mxu0 0
      %340 = vmatprep.subr.bf16.mxu0 0
      %341 = vmatpush1.bf16.msra.mxu0 0
      %342 = vmatprep.subr.bf16.mxu0 0
      %343 = vmatpush1.bf16.msra.mxu0 0
      %344 = vmatprep.subr.bf16.mxu0 0
      %345 = vmatpush1.bf16.msra.mxu0 0
      %346 = vmatprep.mubr.bf16.mxu0 0
      %347 = vmatmul.mubr.bf16.gmra.mrb[0].mxu0 %v258
      %v348 = vpop.f32.mrb[0].mxu0
      %v349 = vadd.f32 0.0, %v348
      %v350 = vpop.f32.mrb[0].mxu0
      %v351 = vpop.f32.mrb[0].mxu0
      %v352 = vadd.f32 0.0, %v351
      %v353 = vpop.f32.mrb[0].mxu0
      %354 = vmatprep.mubr.bf16.mxu0 0
      %355 = vmatmul.mubr.bf16.gmra.mrb[0].mxu0 %v259
      %v356 = vpop.f32.mrb[0].mxu0
      %v357 = vadd.f32 0.0, %v356
      %v358 = vpop.f32.mrb[0].mxu0
      %v359 = vpop.f32.mrb[0].mxu0
      %v360 = vadd.f32 0.0, %v359
      %v361 = vpop.f32.mrb[0].mxu0
      %362 = vmatprep.mubr.bf16.mxu0 0
      %363 = vmatmul.mubr.bf16.gmra.mrb[0].mxu0 %v260
      %v364 = vpop.f32.mrb[0].mxu0
      %v365 = vadd.f32 0.0, %v364
      %v366 = vpop.f32.mrb[0].mxu0
      %v367 = vpop.f32.mrb[0].mxu0
      %v368 = vadd.f32 0.0, %v367
      %v369 = vpop.f32.mrb[0].mxu0
      %370 = vmatprep.mubr.bf16.mxu0 0
      %371 = vmatmul.mubr.bf16.gmra.mrb[0].mxu0 %v261
      %v372 = vpop.f32.mrb[0].mxu0
      %v373 = vadd.f32 0.0, %v372
      %v374 = vpop.f32.mrb[0].mxu0
      %v375 = vpop.f32.mrb[0].mxu0
      %v376 = vadd.f32 0.0, %v375
      %v377 = vpop.f32.mrb[0].mxu0
      %378 = vdwg.mxu0
      %379 = vst [vmem:[#allocation2] sm:$0xff] %v349
      %380 = vst [vmem:[#allocation2 + $0x8] sm:$0xff] %v352
      %381 = vst [vmem:[#allocation2 + $0x10] sm:$0xff] %v357
      %382 = vst [vmem:[#allocation2 + $0x18] sm:$0xff] %v360
      %383 = vst [vmem:[#allocation2 + $0x20] sm:$0xff] %v365
      %384 = vst [vmem:[#allocation2 + $0x28] sm:$0xff] %v368
      %385 = vst [vmem:[#allocation2 + $0x30] sm:$0xff] %v373
      %386 = vst [vmem:[#allocation2 + $0x38] sm:$0xff] %v376
      %v387 = vld [vmem:[%s217] sm:$0xf]
      %v388 = vld [vmem:[%s217 + $0x4] sm:$0x1]
      %v389 = vld [vmem:[%s217 + $0x8] sm:$0xf]
      %v390 = vld [vmem:[%s217 + $0xc] sm:$0x1]
      %v391 = vld [vmem:[%s217 + $0x10] sm:$0xf]
      %v392 = vld [vmem:[%s217 + $0x14] sm:$0x1]
      %v393 = vld [vmem:[%s217 + $0x18] sm:$0xf]
      %v394 = vld [vmem:[%s217 + $0x1c] sm:$0x1]
      %v395 = vld [vmem:[%s217 + $0x20] sm:$0xf]
      %v396 = vld [vmem:[%s217 + $0x24] sm:$0x1]
      %v397 = vld [vmem:[%s217 + $0x28] sm:$0xf]
      %v398 = vld [vmem:[%s217 + $0x2c] sm:$0x1]
      %v399 = vld [vmem:[%s217 + $0x30] sm:$0xf]
      %v400 = vld [vmem:[%s217 + $0x34] sm:$0x1]
      %v401 = vld [vmem:[%s217 + $0x38] sm:$0xf]
      %v402 = vld [vmem:[%s217 + $0x3c] sm:$0x1]
      %vm403 = vsmask.f32 3328
      %vm404 = vsmask.f32 7440
      %vm405 = vmor %vm403, %vm404
      %v407 = vshrl.u32 %v387, 16
      %v409 = vrot.slane %v407, 4
      %v410 = vshll.u32 %v387, 16
      %v412 = vrot.slane %v410, 5
      %v413 = vor.u32 %v409, %v412
      %v414 = vrot.slane %v413, 4
      %v416 = vshll.u32 %v388, 16
      %v418 = vrot.slane %v416, 5
      %v419 = vsel %vm405, %v414, %v418
      %v421 = vshrl.u32 %v389, 16
      %v423 = vrot.slane %v421, 4
      %v424 = vshll.u32 %v389, 16
      %v426 = vrot.slane %v424, 5
      %v427 = vor.u32 %v423, %v426
      %v428 = vrot.slane %v427, 4
      %v430 = vshll.u32 %v390, 16
      %v432 = vrot.slane %v430, 5
      %v433 = vsel %vm405, %v428, %v432
      %v435 = vshrl.u32 %v391, 16
      %v437 = vrot.slane %v435, 4
      %v438 = vshll.u32 %v391, 16
      %v440 = vrot.slane %v438, 5
      %v441 = vor.u32 %v437, %v440
      %v442 = vrot.slane %v441, 4
      %v444 = vshll.u32 %v392, 16
      %v446 = vrot.slane %v444, 5
      %v447 = vsel %vm405, %v442, %v446
      %v449 = vshrl.u32 %v393, 16
      %v451 = vrot.slane %v449, 4
      %v452 = vshll.u32 %v393, 16
      %v454 = vrot.slane %v452, 5
      %v455 = vor.u32 %v451, %v454
      %v456 = vrot.slane %v455, 4
      %v458 = vshll.u32 %v394, 16
      %v460 = vrot.slane %v458, 5
      %v461 = vsel %vm405, %v456, %v460
      %v463 = vshrl.u32 %v395, 16
      %v465 = vrot.slane %v463, 4
      %v466 = vshll.u32 %v395, 16
      %v468 = vrot.slane %v466, 5
      %v469 = vor.u32 %v465, %v468
      %v470 = vrot.slane %v469, 4
      %v472 = vshll.u32 %v396, 16
      %v474 = vrot.slane %v472, 5
      %v475 = vsel %vm405, %v470, %v474
      %v477 = vshrl.u32 %v397, 16
      %v479 = vrot.slane %v477, 4
      %v480 = vshll.u32 %v397, 16
      %v482 = vrot.slane %v480, 5
      %v483 = vor.u32 %v479, %v482
      %v484 = vrot.slane %v483, 4
      %v486 = vshll.u32 %v398, 16
      %v488 = vrot.slane %v486, 5
      %v489 = vsel %vm405, %v484, %v488
      %v491 = vshrl.u32 %v399, 16
      %v493 = vrot.slane %v491, 4
      %v494 = vshll.u32 %v399, 16
      %v496 = vrot.slane %v494, 5
      %v497 = vor.u32 %v493, %v496
      %v498 = vrot.slane %v497, 4
      %v500 = vshll.u32 %v400, 16
      %v502 = vrot.slane %v500, 5
      %v503 = vsel %vm405, %v498, %v502
      %v505 = vshrl.u32 %v401, 16
      %v507 = vrot.slane %v505, 4
      %v508 = vshll.u32 %v401, 16
      %v510 = vrot.slane %v508, 5
      %v511 = vor.u32 %v507, %v510
      %v512 = vrot.slane %v511, 4
      %v514 = vshll.u32 %v402, 16
      %v516 = vrot.slane %v514, 5
      %v517 = vsel %vm405, %v512, %v516
      %s518 = scalar_lea.vmem %s1, 64
      %v519 = vld [vmem:[%s518] sm:$0xf]
      %v520 = vld [vmem:[%s518 + $0x4] sm:$0xf]
      %v521 = vld [vmem:[%s518 + $0x8] sm:$0xf]
      %v522 = vld [vmem:[%s518 + $0xc] sm:$0xf]
      %v523 = vld [vmem:[%s518 + $0x10] sm:$0xf]
      %v524 = vld [vmem:[%s518 + $0x14] sm:$0xf]
      %v525 = vld [vmem:[%s518 + $0x18] sm:$0xf]
      %v526 = vld [vmem:[%s518 + $0x1c] sm:$0xf]
      %v527 = vld [vmem:[%s518 + $0x20] sm:$0xf]
      %v528 = vld [vmem:[%s518 + $0x24] sm:$0xf]
      %v529 = vld [vmem:[%s518 + $0x28] sm:$0xf]
      %v530 = vld [vmem:[%s518 + $0x2c] sm:$0xf]
      %v531 = vld [vmem:[%s518 + $0x30] sm:$0xf]
      %v532 = vld [vmem:[%s518 + $0x34] sm:$0xf]
      %v533 = vld [vmem:[%s518 + $0x38] sm:$0xf]
      %v534 = vld [vmem:[%s518 + $0x3c] sm:$0xf]
      %v535 = vunpack.c.l.b16 %v419
      %v536 = vunpack.c.l.b16 %v433
      %v537 = vunpack.c.l.b16 %v447
      %v538 = vunpack.c.l.b16 %v461
      %v539 = vunpack.c.l.b16 %v475
      %v540 = vunpack.c.l.b16 %v489
      %v541 = vunpack.c.l.b16 %v503
      %v542 = vunpack.c.l.b16 %v517
      %v543 = vpack.c.b16 %v536, %v535
      %v544 = vpack.c.b16 %v538, %v537
      %v545 = vpack.c.b16 %v540, %v539
      %v546 = vpack.c.b16 %v542, %v541
      %v567 = vunpack.c.l.b16 %v519
      %v568 = vunpack.c.l.b16 %v520
      %v569 = vunpack.c.l.b16 %v521
      %v570 = vunpack.c.l.b16 %v522
      %v571 = vunpack.c.l.b16 %v523
      %v572 = vunpack.c.l.b16 %v524
      %v573 = vunpack.c.l.b16 %v525
      %v574 = vunpack.c.l.b16 %v526
      %v575 = vunpack.c.l.b16 %v527
      %v576 = vunpack.c.l.b16 %v528
      %v577 = vunpack.c.l.b16 %v529
      %v578 = vunpack.c.l.b16 %v530
      %v579 = vunpack.c.l.b16 %v531
      %v580 = vunpack.c.l.b16 %v532
      %v581 = vunpack.c.l.b16 %v533
      %v582 = vunpack.c.l.b16 %v534
      %v583 = vpack.c.b16 %v568, %v567
      %v584 = vpack.c.b16 %v570, %v569
      %v585 = vpack.c.b16 %v572, %v571
      %v586 = vpack.c.b16 %v574, %v573
      %v587 = vpack.c.b16 %v576, %v575
      %v588 = vpack.c.b16 %v578, %v577
      %v589 = vpack.c.b16 %v580, %v579
      %v590 = vpack.c.b16 %v582, %v581
      %599 = vmatprep.subr.bf16.mxu0 0
      %600 = vmatpush1.bf16.msra.mxu0 %v583
      %601 = vmatprep.subr.bf16.mxu0 0
      %602 = vmatpush1.bf16.msra.mxu0 %v584
      %603 = vmatprep.subr.bf16.mxu0 0
      %604 = vmatpush1.bf16.msra.mxu0 %v585
      %605 = vmatprep.subr.bf16.mxu0 0
      %606 = vmatpush1.bf16.msra.mxu0 %v586
      %607 = vmatprep.subr.bf16.mxu0 0
      %608 = vmatpush1.bf16.msra.mxu0 %v587
      %609 = vmatprep.subr.bf16.mxu0 0
      %610 = vmatpush1.bf16.msra.mxu0 %v588
      %611 = vmatprep.subr.bf16.mxu0 0
      %612 = vmatpush1.bf16.msra.mxu0 %v589
      %613 = vmatprep.subr.bf16.mxu0 0
      %614 = vmatpush1.bf16.msra.mxu0 %v590
      %615 = vmatprep.subr.bf16.mxu0 0
      %616 = vmatpush1.bf16.msra.mxu0 0
      %617 = vmatprep.subr.bf16.mxu0 0
      %618 = vmatpush1.bf16.msra.mxu0 0
      %619 = vmatprep.subr.bf16.mxu0 0
      %620 = vmatpush1.bf16.msra.mxu0 0
      %621 = vmatprep.subr.bf16.mxu0 0
      %622 = vmatpush1.bf16.msra.mxu0 0
      %623 = vmatprep.subr.bf16.mxu0 0
      %624 = vmatpush1.bf16.msra.mxu0 0
      %625 = vmatprep.subr.bf16.mxu0 0
      %626 = vmatpush1.bf16.msra.mxu0 0
      %627 = vmatprep.subr.bf16.mxu0 0
      %628 = vmatpush1.bf16.msra.mxu0 0
      %629 = vmatprep.subr.bf16.mxu0 0
      %630 = vmatpush1.bf16.msra.mxu0 0
      %631 = vmatprep.mubr.bf16.mxu0 0
      %632 = vmatmul.mubr.bf16.gmra.mrb[0].mxu0 %v543
      %v633 = vpop.f32.mrb[0].mxu0
      %v634 = vadd.f32 0.0, %v633
      %v635 = vpop.f32.mrb[0].mxu0
      %v636 = vpop.f32.mrb[0].mxu0
      %v637 = vadd.f32 0.0, %v636
      %v638 = vpop.f32.mrb[0].mxu0
      %639 = vmatprep.mubr.bf16.mxu0 0
      %640 = vmatmul.mubr.bf16.gmra.mrb[0].mxu0 %v544
      %v641 = vpop.f32.mrb[0].mxu0
      %v642 = vadd.f32 0.0, %v641
      %v643 = vpop.f32.mrb[0].mxu0
      %v644 = vpop.f32.mrb[0].mxu0
      %v645 = vadd.f32 0.0, %v644
      %v646 = vpop.f32.mrb[0].mxu0
      %647 = vmatprep.mubr.bf16.mxu0 0
      %648 = vmatmul.mubr.bf16.gmra.mrb[0].mxu0 %v545
      %v649 = vpop.f32.mrb[0].mxu0
      %v650 = vadd.f32 0.0, %v649
      %v651 = vpop.f32.mrb[0].mxu0
      %v652 = vpop.f32.mrb[0].mxu0
      %v653 = vadd.f32 0.0, %v652
      %v654 = vpop.f32.mrb[0].mxu0
      %655 = vmatprep.mubr.bf16.mxu0 0
      %656 = vmatmul.mubr.bf16.gmra.mrb[0].mxu0 %v546
      %v657 = vpop.f32.mrb[0].mxu0
      %v658 = vadd.f32 0.0, %v657
      %v659 = vpop.f32.mrb[0].mxu0
      %v660 = vpop.f32.mrb[0].mxu0
      %v661 = vadd.f32 0.0, %v660
      %v662 = vpop.f32.mrb[0].mxu0
      %663 = vdwg.mxu0
      %v664 = vld [vmem:[#allocation2] sm:$0xff]
      %v665 = vld [vmem:[#allocation2 + $0x8] sm:$0xff]
      %v666 = vld [vmem:[#allocation2 + $0x10] sm:$0xff]
      %v667 = vld [vmem:[#allocation2 + $0x18] sm:$0xff]
      %v668 = vld [vmem:[#allocation2 + $0x20] sm:$0xff]
      %v669 = vld [vmem:[#allocation2 + $0x28] sm:$0xff]
      %v670 = vld [vmem:[#allocation2 + $0x30] sm:$0xff]
      %v671 = vld [vmem:[#allocation2 + $0x38] sm:$0xff]
      %v672 = vadd.f32 %v664, %v634
      %v673 = vadd.f32 %v665, %v637
      %v674 = vadd.f32 %v666, %v642
      %v675 = vadd.f32 %v667, %v645
      %v676 = vadd.f32 %v668, %v650
      %v677 = vadd.f32 %v669, %v653
      %v678 = vadd.f32 %v670, %v658
      %v679 = vadd.f32 %v671, %v661
      %680 = vst [vmem:[#allocation2] sm:$0xff] %v672
      %681 = vst [vmem:[#allocation2 + $0x8] sm:$0xff] %v673
      %682 = vst [vmem:[#allocation2 + $0x10] sm:$0xff] %v674
      %683 = vst [vmem:[#allocation2 + $0x18] sm:$0xff] %v675
      %684 = vst [vmem:[#allocation2 + $0x20] sm:$0xff] %v676
      %685 = vst [vmem:[#allocation2 + $0x28] sm:$0xff] %v677
      %686 = vst [vmem:[#allocation2 + $0x30] sm:$0xff] %v678
      %687 = vst [vmem:[#allocation2 + $0x38] sm:$0xff] %v679
      %s688 = sadd.s32 %s214, 1
      %s689 = smul.u32 %s688, 2
      %s690 = smul.addr %s689, 4
      %s691 = scalar_lea.vmem %s195, %s690
      %v692 = vld [vmem:[%s691] sm:$0xf]
      %v693 = vld [vmem:[%s691 + $0x8] sm:$0xf]
      %v694 = vld [vmem:[%s691 + $0x10] sm:$0xf]
      %v695 = vld [vmem:[%s691 + $0x18] sm:$0xf]
      %v696 = vld [vmem:[%s691 + $0x20] sm:$0xf]
      %v697 = vld [vmem:[%s691 + $0x28] sm:$0xf]
      %v698 = vld [vmem:[%s691 + $0x30] sm:$0xf]
      %v699 = vld [vmem:[%s691 + $0x38] sm:$0xf]
      %s700 = scalar_lea.vmem %s1, 128
      %v701 = vld [vmem:[%s700] sm:$0xf]
      %v702 = vld [vmem:[%s700 + $0x4] sm:$0xf]
      %v703 = vld [vmem:[%s700 + $0x8] sm:$0xf]
      %v704 = vld [vmem:[%s700 + $0xc] sm:$0xf]
      %v705 = vld [vmem:[%s700 + $0x10] sm:$0xf]
      %v706 = vld [vmem:[%s700 + $0x14] sm:$0xf]
      %v707 = vld [vmem:[%s700 + $0x18] sm:$0xf]
      %v708 = vld [vmem:[%s700 + $0x1c] sm:$0xf]
      %v709 = vld [vmem:[%s700 + $0x20] sm:$0xf]
      %v710 = vld [vmem:[%s700 + $0x24] sm:$0xf]
      %v711 = vld [vmem:[%s700 + $0x28] sm:$0xf]
      %v712 = vld [vmem:[%s700 + $0x2c] sm:$0xf]
      %v713 = vld [vmem:[%s700 + $0x30] sm:$0xf]
      %v714 = vld [vmem:[%s700 + $0x34] sm:$0xf]
      %v715 = vld [vmem:[%s700 + $0x38] sm:$0xf]
      %v716 = vld [vmem:[%s700 + $0x3c] sm:$0xf]
      %v725 = vunpack.c.l.b16 %v692
      %v726 = vunpack.c.l.b16 %v693
      %v727 = vunpack.c.l.b16 %v694
      %v728 = vunpack.c.l.b16 %v695
      %v729 = vunpack.c.l.b16 %v696
      %v730 = vunpack.c.l.b16 %v697
      %v731 = vunpack.c.l.b16 %v698
      %v732 = vunpack.c.l.b16 %v699
      %v733 = vpack.c.b16 %v726, %v725
      %v734 = vpack.c.b16 %v728, %v727
      %v735 = vpack.c.b16 %v730, %v729
      %v736 = vpack.c.b16 %v732, %v731
      %v757 = vunpack.c.l.b16 %v701
      %v758 = vunpack.c.l.b16 %v702
      %v759 = vunpack.c.l.b16 %v703
      %v760 = vunpack.c.l.b16 %v704
      %v761 = vunpack.c.l.b16 %v705
      %v762 = vunpack.c.l.b16 %v706
      %v763 = vunpack.c.l.b16 %v707
      %v764 = vunpack.c.l.b16 %v708
      %v765 = vunpack.c.l.b16 %v709
      %v766 = vunpack.c.l.b16 %v710
      %v767 = vunpack.c.l.b16 %v711
      %v768 = vunpack.c.l.b16 %v712
      %v769 = vunpack.c.l.b16 %v713
      %v770 = vunpack.c.l.b16 %v714
      %v771 = vunpack.c.l.b16 %v715
      %v772 = vunpack.c.l.b16 %v716
      %v773 = vpack.c.b16 %v758, %v757
      %v774 = vpack.c.b16 %v760, %v759
      %v775 = vpack.c.b16 %v762, %v761
      %v776 = vpack.c.b16 %v764, %v763
      %v777 = vpack.c.b16 %v766, %v765
      %v778 = vpack.c.b16 %v768, %v767
      %v779 = vpack.c.b16 %v770, %v769
      %v780 = vpack.c.b16 %v772, %v771
      %789 = vmatprep.subr.bf16.mxu0 0
      %790 = vmatpush1.bf16.msra.mxu0 %v773
      %791 = vmatprep.subr.bf16.mxu0 0
      %792 = vmatpush1.bf16.msra.mxu0 %v774
      %793 = vmatprep.subr.bf16.mxu0 0
      %794 = vmatpush1.bf16.msra.mxu0 %v775
      %795 = vmatprep.subr.bf16.mxu0 0
      %796 = vmatpush1.bf16.msra.mxu0 %v776
      %797 = vmatprep.subr.bf16.mxu0 0
      %798 = vmatpush1.bf16.msra.mxu0 %v777
      %799 = vmatprep.subr.bf16.mxu0 0
      %800 = vmatpush1.bf16.msra.mxu0 %v778
      %801 = vmatprep.subr.bf16.mxu0 0
      %802 = vmatpush1.bf16.msra.mxu0 %v779
      %803 = vmatprep.subr.bf16.mxu0 0
      %804 = vmatpush1.bf16.msra.mxu0 %v780
      %805 = vmatprep.subr.bf16.mxu0 0
      %806 = vmatpush1.bf16.msra.mxu0 0
      %807 = vmatprep.subr.bf16.mxu0 0
      %808 = vmatpush1.bf16.msra.mxu0 0
      %809 = vmatprep.subr.bf16.mxu0 0
      %810 = vmatpush1.bf16.msra.mxu0 0
      %811 = vmatprep.subr.bf16.mxu0 0
      %812 = vmatpush1.bf16.msra.mxu0 0
      %813 = vmatprep.subr.bf16.mxu0 0
      %814 = vmatpush1.bf16.msra.mxu0 0
      %815 = vmatprep.subr.bf16.mxu0 0
      %816 = vmatpush1.bf16.msra.mxu0 0
      %817 = vmatprep.subr.bf16.mxu0 0
      %818 = vmatpush1.bf16.msra.mxu0 0
      %819 = vmatprep.subr.bf16.mxu0 0
      %820 = vmatpush1.bf16.msra.mxu0 0
      %821 = vmatprep.mubr.bf16.mxu0 0
      %822 = vmatmul.mubr.bf16.gmra.mrb[0].mxu0 %v733
      %v823 = vpop.f32.mrb[0].mxu0
      %v824 = vadd.f32 0.0, %v823
      %v825 = vpop.f32.mrb[0].mxu0
      %v826 = vpop.f32.mrb[0].mxu0
      %v827 = vadd.f32 0.0, %v826
      %v828 = vpop.f32.mrb[0].mxu0
      %829 = vmatprep.mubr.bf16.mxu0 0
      %830 = vmatmul.mubr.bf16.gmra.mrb[0].mxu0 %v734
      %v831 = vpop.f32.mrb[0].mxu0
      %v832 = vadd.f32 0.0, %v831
      %v833 = vpop.f32.mrb[0].mxu0
      %v834 = vpop.f32.mrb[0].mxu0
      %v835 = vadd.f32 0.0, %v834
      %v836 = vpop.f32.mrb[0].mxu0
      %837 = vmatprep.mubr.bf16.mxu0 0
      %838 = vmatmul.mubr.bf16.gmra.mrb[0].mxu0 %v735
      %v839 = vpop.f32.mrb[0].mxu0
      %v840 = vadd.f32 0.0, %v839
      %v841 = vpop.f32.mrb[0].mxu0
      %v842 = vpop.f32.mrb[0].mxu0
      %v843 = vadd.f32 0.0, %v842
      %v844 = vpop.f32.mrb[0].mxu0
      %845 = vmatprep.mubr.bf16.mxu0 0
      %846 = vmatmul.mubr.bf16.gmra.mrb[0].mxu0 %v736
      %v847 = vpop.f32.mrb[0].mxu0
      %v848 = vadd.f32 0.0, %v847
      %v849 = vpop.f32.mrb[0].mxu0
      %v850 = vpop.f32.mrb[0].mxu0
      %v851 = vadd.f32 0.0, %v850
      %v852 = vpop.f32.mrb[0].mxu0
      %853 = vdwg.mxu0
      %v854 = vld [vmem:[#allocation2] sm:$0xff]
      %v855 = vld [vmem:[#allocation2 + $0x8] sm:$0xff]
      %v856 = vld [vmem:[#allocation2 + $0x10] sm:$0xff]
      %v857 = vld [vmem:[#allocation2 + $0x18] sm:$0xff]
      %v858 = vld [vmem:[#allocation2 + $0x20] sm:$0xff]
      %v859 = vld [vmem:[#allocation2 + $0x28] sm:$0xff]
      %v860 = vld [vmem:[#allocation2 + $0x30] sm:$0xff]
      %v861 = vld [vmem:[#allocation2 + $0x38] sm:$0xff]
      %v862 = vadd.f32 %v854, %v824
      %v863 = vadd.f32 %v855, %v827
      %v864 = vadd.f32 %v856, %v832
      %v865 = vadd.f32 %v857, %v835
      %v866 = vadd.f32 %v858, %v840
      %v867 = vadd.f32 %v859, %v843
      %v868 = vadd.f32 %v860, %v848
      %v869 = vadd.f32 %v861, %v851
      %870 = vst [vmem:[#allocation2] sm:$0xff] %v862
      %871 = vst [vmem:[#allocation2 + $0x8] sm:$0xff] %v863
      %872 = vst [vmem:[#allocation2 + $0x10] sm:$0xff] %v864
      %873 = vst [vmem:[#allocation2 + $0x18] sm:$0xff] %v865
      %874 = vst [vmem:[#allocation2 + $0x20] sm:$0xff] %v866
      %875 = vst [vmem:[#allocation2 + $0x28] sm:$0xff] %v867
      %876 = vst [vmem:[#allocation2 + $0x30] sm:$0xff] %v868
      %877 = vst [vmem:[#allocation2 + $0x38] sm:$0xff] %v869
      %v878 = vld [vmem:[%s691] sm:$0xf]
      %v879 = vld [vmem:[%s691 + $0x4] sm:$0x1]
      %v880 = vld [vmem:[%s691 + $0x8] sm:$0xf]
      %v881 = vld [vmem:[%s691 + $0xc] sm:$0x1]
      %v882 = vld [vmem:[%s691 + $0x10] sm:$0xf]
      %v883 = vld [vmem:[%s691 + $0x14] sm:$0x1]
      %v884 = vld [vmem:[%s691 + $0x18] sm:$0xf]
      %v885 = vld [vmem:[%s691 + $0x1c] sm:$0x1]
      %v886 = vld [vmem:[%s691 + $0x20] sm:$0xf]
      %v887 = vld [vmem:[%s691 + $0x24] sm:$0x1]
      %v888 = vld [vmem:[%s691 + $0x28] sm:$0xf]
      %v889 = vld [vmem:[%s691 + $0x2c] sm:$0x1]
      %v890 = vld [vmem:[%s691 + $0x30] sm:$0xf]
      %v891 = vld [vmem:[%s691 + $0x34] sm:$0x1]
      %v892 = vld [vmem:[%s691 + $0x38] sm:$0xf]
      %v893 = vld [vmem:[%s691 + $0x3c] sm:$0x1]
      %v895 = vshrl.u32 %v878, 16
      %v897 = vrot.slane %v895, 4
      %v898 = vshll.u32 %v878, 16
      %v900 = vrot.slane %v898, 5
      %v901 = vor.u32 %v897, %v900
      %v902 = vrot.slane %v901, 4
      %v904 = vshll.u32 %v879, 16
      %v906 = vrot.slane %v904, 5
      %v907 = vsel %vm405, %v902, %v906
      %v909 = vshrl.u32 %v880, 16
      %v911 = vrot.slane %v909, 4
      %v912 = vshll.u32 %v880, 16
      %v914 = vrot.slane %v912, 5
      %v915 = vor.u32 %v911, %v914
      %v916 = vrot.slane %v915, 4
      %v918 = vshll.u32 %v881, 16
      %v920 = vrot.slane %v918, 5
      %v921 = vsel %vm405, %v916, %v920
      %v923 = vshrl.u32 %v882, 16
      %v925 = vrot.slane %v923, 4
      %v926 = vshll.u32 %v882, 16
      %v928 = vrot.slane %v926, 5
      %v929 = vor.u32 %v925, %v928
      %v930 = vrot.slane %v929, 4
      %v932 = vshll.u32 %v883, 16
      %v934 = vrot.slane %v932, 5
      %v935 = vsel %vm405, %v930, %v934
      %v937 = vshrl.u32 %v884, 16
      %v939 = vrot.slane %v937, 4
      %v940 = vshll.u32 %v884, 16
      %v942 = vrot.slane %v940, 5
      %v943 = vor.u32 %v939, %v942
      %v944 = vrot.slane %v943, 4
      %v946 = vshll.u32 %v885, 16
      %v948 = vrot.slane %v946, 5
      %v949 = vsel %vm405, %v944, %v948
      %v951 = vshrl.u32 %v886, 16
      %v953 = vrot.slane %v951, 4
      %v954 = vshll.u32 %v886, 16
      %v956 = vrot.slane %v954, 5
      %v957 = vor.u32 %v953, %v956
      %v958 = vrot.slane %v957, 4
      %v960 = vshll.u32 %v887, 16
      %v962 = vrot.slane %v960, 5
      %v963 = vsel %vm405, %v958, %v962
      %v965 = vshrl.u32 %v888, 16
      %v967 = vrot.slane %v965, 4
      %v968 = vshll.u32 %v888, 16
      %v970 = vrot.slane %v968, 5
      %v971 = vor.u32 %v967, %v970
      %v972 = vrot.slane %v971, 4
      %v974 = vshll.u32 %v889, 16
      %v976 = vrot.slane %v974, 5
      %v977 = vsel %vm405, %v972, %v976
      %v979 = vshrl.u32 %v890, 16
      %v981 = vrot.slane %v979, 4
      %v982 = vshll.u32 %v890, 16
      %v984 = vrot.slane %v982, 5
      %v985 = vor.u32 %v981, %v984
      %v986 = vrot.slane %v985, 4
      %v988 = vshll.u32 %v891, 16
      %v990 = vrot.slane %v988, 5
      %v991 = vsel %vm405, %v986, %v990
      %v993 = vshrl.u32 %v892, 16
      %v995 = vrot.slane %v993, 4
      %v996 = vshll.u32 %v892, 16
      %v998 = vrot.slane %v996, 5
      %v999 = vor.u32 %v995, %v998
      %v1000 = vrot.slane %v999, 4
      %v1002 = vshll.u32 %v893, 16
      %v1004 = vrot.slane %v1002, 5
      %v1005 = vsel %vm405, %v1000, %v1004
      %s1006 = scalar_lea.vmem %s1, 192
      %v1007 = vld [vmem:[%s1006] sm:$0xf]
      %v1008 = vld [vmem:[%s1006 + $0x4] sm:$0xf]
      %v1009 = vld [vmem:[%s1006 + $0x8] sm:$0xf]
      %v1010 = vld [vmem:[%s1006 + $0xc] sm:$0xf]
      %v1011 = vld [vmem:[%s1006 + $0x10] sm:$0xf]
      %v1012 = vld [vmem:[%s1006 + $0x14] sm:$0xf]
      %v1013 = vld [vmem:[%s1006 + $0x18] sm:$0xf]
      %v1014 = vld [vmem:[%s1006 + $0x1c] sm:$0xf]
      %v1015 = vld [vmem:[%s1006 + $0x20] sm:$0xf]
      %v1016 = vld [vmem:[%s1006 + $0x24] sm:$0xf]
      %v1017 = vld [vmem:[%s1006 + $0x28] sm:$0xf]
      %v1018 = vld [vmem:[%s1006 + $0x2c] sm:$0xf]
      %v1019 = vld [vmem:[%s1006 + $0x30] sm:$0xf]
      %v1020 = vld [vmem:[%s1006 + $0x34] sm:$0xf]
      %v1021 = vld [vmem:[%s1006 + $0x38] sm:$0xf]
      %v1022 = vld [vmem:[%s1006 + $0x3c] sm:$0xf]
      %v1023 = vunpack.c.l.b16 %v907
      %v1024 = vunpack.c.l.b16 %v921
      %v1025 = vunpack.c.l.b16 %v935
      %v1026 = vunpack.c.l.b16 %v949
      %v1027 = vunpack.c.l.b16 %v963
      %v1028 = vunpack.c.l.b16 %v977
      %v1029 = vunpack.c.l.b16 %v991
      %v1030 = vunpack.c.l.b16 %v1005
      %v1031 = vpack.c.b16 %v1024, %v1023
      %v1032 = vpack.c.b16 %v1026, %v1025
      %v1033 = vpack.c.b16 %v1028, %v1027
      %v1034 = vpack.c.b16 %v1030, %v1029
      %v1055 = vunpack.c.l.b16 %v1007
      %v1056 = vunpack.c.l.b16 %v1008
      %v1057 = vunpack.c.l.b16 %v1009
      %v1058 = vunpack.c.l.b16 %v1010
      %v1059 = vunpack.c.l.b16 %v1011
      %v1060 = vunpack.c.l.b16 %v1012
      %v1061 = vunpack.c.l.b16 %v1013
      %v1062 = vunpack.c.l.b16 %v1014
      %v1063 = vunpack.c.l.b16 %v1015
      %v1064 = vunpack.c.l.b16 %v1016
      %v1065 = vunpack.c.l.b16 %v1017
      %v1066 = vunpack.c.l.b16 %v1018
      %v1067 = vunpack.c.l.b16 %v1019
      %v1068 = vunpack.c.l.b16 %v1020
      %v1069 = vunpack.c.l.b16 %v1021
      %v1070 = vunpack.c.l.b16 %v1022
      %v1071 = vpack.c.b16 %v1056, %v1055
      %v1072 = vpack.c.b16 %v1058, %v1057
      %v1073 = vpack.c.b16 %v1060, %v1059
      %v1074 = vpack.c.b16 %v1062, %v1061
      %v1075 = vpack.c.b16 %v1064, %v1063
      %v1076 = vpack.c.b16 %v1066, %v1065
      %v1077 = vpack.c.b16 %v1068, %v1067
      %v1078 = vpack.c.b16 %v1070, %v1069
      %1087 = vmatprep.subr.bf16.mxu0 0
      %1088 = vmatpush1.bf16.msra.mxu0 %v1071
      %1089 = vmatprep.subr.bf16.mxu0 0
      %1090 = vmatpush1.bf16.msra.mxu0 %v1072
      %1091 = vmatprep.subr.bf16.mxu0 0
      %1092 = vmatpush1.bf16.msra.mxu0 %v1073
      %1093 = vmatprep.subr.bf16.mxu0 0
      %1094 = vmatpush1.bf16.msra.mxu0 %v1074
      %1095 = vmatprep.subr.bf16.mxu0 0
      %1096 = vmatpush1.bf16.msra.mxu0 %v1075
      %1097 = vmatprep.subr.bf16.mxu0 0
      %1098 = vmatpush1.bf16.msra.mxu0 %v1076
      %1099 = vmatprep.subr.bf16.mxu0 0
      %1100 = vmatpush1.bf16.msra.mxu0 %v1077
      %1101 = vmatprep.subr.bf16.mxu0 0
      %1102 = vmatpush1.bf16.msra.mxu0 %v1078
      %1103 = vmatprep.subr.bf16.mxu0 0
      %1104 = vmatpush1.bf16.msra.mxu0 0
      %1105 = vmatprep.subr.bf16.mxu0 0
      %1106 = vmatpush1.bf16.msra.mxu0 0
      %1107 = vmatprep.subr.bf16.mxu0 0
      %1108 = vmatpush1.bf16.msra.mxu0 0
      %1109 = vmatprep.subr.bf16.mxu0 0
      %1110 = vmatpush1.bf16.msra.mxu0 0
      %1111 = vmatprep.subr.bf16.mxu0 0
      %1112 = vmatpush1.bf16.msra.mxu0 0
      %1113 = vmatprep.subr.bf16.mxu0 0
      %1114 = vmatpush1.bf16.msra.mxu0 0
      %1115 = vmatprep.subr.bf16.mxu0 0
      %1116 = vmatpush1.bf16.msra.mxu0 0
      %1117 = vmatprep.subr.bf16.mxu0 0
      %1118 = vmatpush1.bf16.msra.mxu0 0
      %1119 = vmatprep.mubr.bf16.mxu0 0
      %1120 = vmatmul.mubr.bf16.gmra.mrb[0].mxu0 %v1031
      %v1121 = vpop.f32.mrb[0].mxu0
      %v1122 = vadd.f32 0.0, %v1121
      %v1123 = vpop.f32.mrb[0].mxu0
      %v1124 = vpop.f32.mrb[0].mxu0
      %v1125 = vadd.f32 0.0, %v1124
      %v1126 = vpop.f32.mrb[0].mxu0
      %1127 = vmatprep.mubr.bf16.mxu0 0
      %1128 = vmatmul.mubr.bf16.gmra.mrb[0].mxu0 %v1032
      %v1129 = vpop.f32.mrb[0].mxu0
      %v1130 = vadd.f32 0.0, %v1129
      %v1131 = vpop.f32.mrb[0].mxu0
      %v1132 = vpop.f32.mrb[0].mxu0
      %v1133 = vadd.f32 0.0, %v1132
      %v1134 = vpop.f32.mrb[0].mxu0
      %1135 = vmatprep.mubr.bf16.mxu0 0
      %1136 = vmatmul.mubr.bf16.gmra.mrb[0].mxu0 %v1033
      %v1137 = vpop.f32.mrb[0].mxu0
      %v1138 = vadd.f32 0.0, %v1137
      %v1139 = vpop.f32.mrb[0].mxu0
      %v1140 = vpop.f32.mrb[0].mxu0
      %v1141 = vadd.f32 0.0, %v1140
      %v1142 = vpop.f32.mrb[0].mxu0
      %1143 = vmatprep.mubr.bf16.mxu0 0
      %1144 = vmatmul.mubr.bf16.gmra.mrb[0].mxu0 %v1034
      %v1145 = vpop.f32.mrb[0].mxu0
      %v1146 = vadd.f32 0.0, %v1145
      %v1147 = vpop.f32.mrb[0].mxu0
      %v1148 = vpop.f32.mrb[0].mxu0
      %v1149 = vadd.f32 0.0, %v1148
      %v1150 = vpop.f32.mrb[0].mxu0
      %1151 = vdwg.mxu0
      %v1152 = vld [vmem:[#allocation2] sm:$0xff]
      %v1153 = vld [vmem:[#allocation2 + $0x8] sm:$0xff]
      %v1154 = vld [vmem:[#allocation2 + $0x10] sm:$0xff]
      %v1155 = vld [vmem:[#allocation2 + $0x18] sm:$0xff]
      %v1156 = vld [vmem:[#allocation2 + $0x20] sm:$0xff]
      %v1157 = vld [vmem:[#allocation2 + $0x28] sm:$0xff]
      %v1158 = vld [vmem:[#allocation2 + $0x30] sm:$0xff]
      %v1159 = vld [vmem:[#allocation2 + $0x38] sm:$0xff]
      %v1160 = vadd.f32 %v1152, %v1122
      %v1161 = vadd.f32 %v1153, %v1125
      %v1162 = vadd.f32 %v1154, %v1130
      %v1163 = vadd.f32 %v1155, %v1133
      %v1164 = vadd.f32 %v1156, %v1138
      %v1165 = vadd.f32 %v1157, %v1141
      %v1166 = vadd.f32 %v1158, %v1146
      %v1167 = vadd.f32 %v1159, %v1149
      %1168 = vst [vmem:[#allocation2] sm:$0xff] %v1160
      %1169 = vst [vmem:[#allocation2 + $0x8] sm:$0xff] %v1161
      %1170 = vst [vmem:[#allocation2 + $0x10] sm:$0xff] %v1162
      %1171 = vst [vmem:[#allocation2 + $0x18] sm:$0xff] %v1163
      %1172 = vst [vmem:[#allocation2 + $0x20] sm:$0xff] %v1164
      %1173 = vst [vmem:[#allocation2 + $0x28] sm:$0xff] %v1165
      %1174 = vst [vmem:[#allocation2 + $0x30] sm:$0xff] %v1166
      %1175 = vst [vmem:[#allocation2 + $0x38] sm:$0xff] %v1167
      %v1176 = vld [vmem:[#allocation2] sm:$0xff]
      %v1177 = vld [vmem:[#allocation2 + $0x8] sm:$0xff]
      %v1178 = vld [vmem:[#allocation2 + $0x10] sm:$0xff]
      %v1179 = vld [vmem:[#allocation2 + $0x18] sm:$0xff]
      %v1180 = vld [vmem:[#allocation2 + $0x20] sm:$0xff]
      %v1181 = vld [vmem:[#allocation2 + $0x28] sm:$0xff]
      %v1182 = vld [vmem:[#allocation2 + $0x30] sm:$0xff]
      %v1183 = vld [vmem:[#allocation2 + $0x38] sm:$0xff]
      %v1184 = vpack.c.bf16 %v1176, %v1176
      %v1185 = vpack.c.bf16 %v1177, %v1177
      %v1186 = vpack.c.bf16 %v1178, %v1178
      %v1187 = vpack.c.bf16 %v1179, %v1179
      %v1188 = vpack.c.bf16 %v1180, %v1180
      %v1189 = vpack.c.bf16 %v1181, %v1181
      %v1190 = vpack.c.bf16 %v1182, %v1182
      %v1191 = vpack.c.bf16 %v1183, %v1183
      %1192 = vst [vmem:[%s204] sm:$0xf] %v1184
      %1193 = vst [vmem:[%s204 + $0x4] sm:$0xf] %v1185
      %1194 = vst [vmem:[%s204 + $0x8] sm:$0xf] %v1186
      %1195 = vst [vmem:[%s204 + $0xc] sm:$0xf] %v1187
      %1196 = vst [vmem:[%s204 + $0x10] sm:$0xf] %v1188
      %1197 = vst [vmem:[%s204 + $0x14] sm:$0xf] %v1189
      %1198 = vst [vmem:[%s204 + $0x18] sm:$0xf] %v1190
      %1199 = vst [vmem:[%s204 + $0x1c] sm:$0xf] %v1191
      %v1200 = vadd.f32 %v1176, %v1177
      %v1201 = vadd.f32 %v1200, %v1178
      %v1202 = vadd.f32 %v1201, %v1179
      %v1203 = vadd.f32 %v1202, %v1180
      %v1204 = vadd.f32 %v1203, %v1181
      %v1205 = vadd.f32 %v1204, %v1182
      %v1206 = vadd.f32 %v1205, %v1183
      %v1207 = vrot.slane %v1206, 4
      %v1208 = vadd.f32 %v1206, %v1207
      %v1209 = vrot.slane %v1208, 2
      %v1210 = vadd.f32 %v1208, %v1209
      %v1211 = vrot.slane %v1210, 1
      %v1212 = vadd.f32 %v1210, %v1211
      %1213 = vst [vmem:[%s212] sm:$0x1] %v1212
      %v1214 = vmul.f32 %v1176, %v1176
      %v1215 = vmul.f32 %v1177, %v1177
      %v1216 = vmul.f32 %v1178, %v1178
      %v1217 = vmul.f32 %v1179, %v1179
      %v1218 = vmul.f32 %v1180, %v1180
      %v1219 = vmul.f32 %v1181, %v1181
      %v1220 = vmul.f32 %v1182, %v1182
      %v1221 = vmul.f32 %v1183, %v1183
      %v1222 = vadd.f32 %v1214, %v1215
      %v1223 = vadd.f32 %v1222, %v1216
      %v1224 = vadd.f32 %v1223, %v1217
      %v1225 = vadd.f32 %v1224, %v1218
      %v1226 = vadd.f32 %v1225, %v1219
      %v1227 = vadd.f32 %v1226, %v1220
      %v1228 = vadd.f32 %v1227, %v1221
      %v1229 = vrot.slane %v1228, 4
      %v1230 = vadd.f32 %v1228, %v1229
      %v1231 = vrot.slane %v1230, 2
      %v1232 = vadd.f32 %v1230, %v1231
      %v1233 = vrot.slane %v1232, 1
      %v1234 = vadd.f32 %v1232, %v1233
      %1235 = vst [vmem:[%s212 + $0x1] sm:$0x1] %v1234
      %s1236 = smul.u32 8, %s20
      %p1237 = scmp.lt.s32.totalorder %s19, 1
      %s1238 = scalar_select %p1237, %s19, 1
      %p1239 = scmp.lt.s32.totalorder %s1236, 7
      %s1240 = scalar_select %p1239, %s1236, 7
      %s1241 = smul.addr %s1238, 8
      %s1242 = sadd.s32 %s1240, %s1241
      %s1243 = smul.addr %s1242, 4
      %s1244 = scalar_lea.vmem %s2, %s1243
      %p1245 = scmp.lt.s32.totalorder %s19, 1
      %s1246 = scalar_select %p1245, %s19, 1
      %p1247 = scmp.lt.s32.totalorder %s20, 0
      %s1248 = scalar_select %p1247, %s20, 0
      %s1249 = sadd.s32 %s1248, %s1246
      %s1250 = smul.addr %s1249, 2
      %s1251 = scalar_lea.vmem %s3, %s1250
      // Predicated region
      $region29: #{down_forward.6} parent=27 // pred_check
        %p1252 = pneg %p94
      $region30: #{down_forward.6} parent=27 // pred_check_branch
        %1254 = sbr.rel (%p1252) target = $region32
      $region31: #{down_forward.6} parent=27 // pred_region
        %s1255 = smul.u32 8, %s20
      $region32: #{down_forward.6} parent=27 // pred_fallthru
        _
      // Predicated region
      $region33: #{down_forward.6} parent=27 // pred_check
        %p1256 = pneg %p122
      $region34: #{down_forward.6} parent=27 // pred_check_branch
        %1258 = sbr.rel (%p1256) target = $region36
      $region35: #{down_forward.6} parent=27 // pred_region
        _
      $region36: #{down_forward.6} parent=27 // pred_fallthru
        _
    $region28: #{down_forward.6} parent=5 // pred_fallthru
      _
    %p1259 = scmp.le.s32.totalorder 2, %s10
    // Predicated region
    $region37: #{down_forward.6} parent=5 // pred_check
      %p1260 = pneg %p1259
    $region38: #{down_forward.6} parent=5 // pred_check_branch
      %1262 = sbr.rel (%p1260) target = $region40
    $region39: #{down_forward.6} parent=5 // pred_region
      %s1263 = ssub.s32 %s10, 2
      // Predicated region
      $region41: #{down_forward.6} parent=39 // pred_check
        %p1264 = pneg %p100
      $region42: #{down_forward.6} parent=39 // pred_check_branch
        %1266 = sbr.rel (%p1264) target = $region44
      $region43: #{down_forward.6} parent=39 // pred_region
        %s1267 = smul.u32 8, %s22
        %p1268 = scmp.lt.s32.totalorder %s21, 1
        %s1269 = scalar_select %p1268, %s21, 1
        %p1270 = scmp.lt.s32.totalorder %s1267, 7
        %s1271 = scalar_select %p1270, %s1267, 7
        %s1272 = smul.addr %s1269, 8
        %s1273 = sadd.s32 %s1271, %s1272
        %s1274 = smul.addr %s1273, 4
        %s1275 = scalar_lea.vmem %s2, %s1274
      $region44: #{down_forward.6} parent=39 // pred_fallthru
        _
      // Predicated region
      $region45: #{down_forward.6} parent=39 // pred_check
        %p1276 = pneg %p128
      $region46: #{down_forward.6} parent=39 // pred_check_branch
        %1278 = sbr.rel (%p1276) target = $region48
      $region47: #{down_forward.6} parent=39 // pred_region
        %p1279 = scmp.lt.s32.totalorder %s21, 1
        %s1280 = scalar_select %p1279, %s21, 1
        %p1281 = scmp.lt.s32.totalorder %s22, 0
        %s1282 = scalar_select %p1281, %s22, 0
        %s1283 = sadd.s32 %s1282, %s1280
        %s1284 = smul.addr %s1283, 2
        %s1285 = scalar_lea.vmem %s3, %s1284
      $region48: #{down_forward.6} parent=39 // pred_fallthru
        _
    $region40: #{down_forward.6} parent=5 // pred_fallthru
      _
  $region6: #{down_forward.6} parent=0 // loop_footer
    %s14 = sadd.s32 1, %s10
  $region7: #{down_forward.6} parent=0 // loop_footer_branch
    %9 = sbr.rel target = $region3
  $region8: #{down_forward.6} parent=0 // loop_exit
    _

// kernel: down_forward.8
$region0: #{down_forward.8}
  #allocation0 [shape = 'u32[]', space=smem, size = 0x4, offset = 0x4, fixed_abs, tag = 'smem constant byte address 0x4 - core index']
  #allocation1 [shape = 'u32[144,128]{1,0:T(1,128)}', space=vmem, size = 0x12000, scoped, tag = 'internal scratch']
  #allocation2 [shape = 'f32[64,128]{1,0:T(8,128)}', space=vmem, size = 0x8000, scoped, tag = 'scratch operand']
  %s0 = inlined_call_operand.vmem [shape: bf16[2,10,10,128], index: 0, kind: input, shape index: {}]
  %s1 = inlined_call_operand.vmem [shape: bf16[9,128,128], index: 1, kind: input, shape index: {}]
  %s2 = inlined_call_operand.vmem [shape: bf16[2,8,8,128], index: 2, kind: output, shape index: {0}]
  %s3 = inlined_call_operand.vmem [shape: f32[2,1,2,128], index: 3, kind: output, shape index: {1}]
  %4 = xla_tuple %s2, %s3
  %s5 = sld [smem:[#allocation0]]
  $region49: #{down_forward.8} parent=0
    _
  %s7 = ssub.s32 1, %s5
  %s8 = scalar_select 0, %s7, %s5
  loop: start=0, step=1, limit=4
  $region2: #{down_forward.8} parent=0 // loop_pre_header
    _
  $region3: #{down_forward.8} parent=0 // loop_header
    %s10 = sphi 0, %s14
    %p11 = scmp.ge.s32.totalorder %s10, 4
    %s17 = sphi 0, %s29
    %s18 = sphi 0, %s25
    %s19 = sphi 0, %s17
    %s20 = sphi 0, %s18
    %s21 = sphi 0, %s19
    %s22 = sphi 0, %s20
    %s32 = sphi 0, %s34
    %s35 = sphi 0, %s32
    %s36 = sphi 0, %s35
    %s52 = sphi 0, %s36
    %s56 = sphi 0, %s56
    %s58 = sphi 0, %s56
    %s59 = sphi 0, %s58
    %s73 = sphi 0, %s59
    %s81 = sphi 0, %s83
    %s84 = sphi 0, %s81
    %s85 = sphi 0, %s84
    %s101 = sphi 0, %s85
    %s109 = sphi 0, %s111
    %s112 = sphi 0, %s109
    %s113 = sphi 0, %s112
    %s129 = sphi 0, %s113
  $region4: #{down_forward.8} parent=0 // loop_header_branch
    %13 = sbr.rel (%p11) target = $region8
  $region5: #{down_forward.8} parent=0 // loop_body
    %s15 = ssub.s32 %s10, 1
    %s16 = ssub.s32 %s10, 2
    %s23 = sadd.s32 1, %s18
    %p24 = scmp.ge.s32.totalorder %s23, 1
    %s25 = scalar_select %p24, 0, %s23
    %s26 = sadd.s32 1, %s17
    %s27 = scalar_select %p24, %s26, %s17
    %p28 = scmp.ge.s32.totalorder %s27, 2
    %s29 = scalar_select %p28, 0, %s27
    %s30 = ssub.s32 %s17, %s29
    %p31 = scmp.eq.s32.totalorder %s30, 0
    %s33 = sadd.s32 %s32, 1
    %s34 = scalar_select %p31, %s32, %s33
    %p37 = pneg %p31
    %p38 = scmp.eq.s32.totalorder %s10, 1
    %p39 = por %p37, %p38
    %p40 = scmp.ne.s32.totalorder %s32, %s35
    %p41 = scmp.eq.s32.totalorder %s10, 0
    %p42 = por %p40, %p41
    %p43 = scmp.ne.s32.totalorder %s32, %s35
    %p44 = scmp.eq.s32.totalorder %s15, 1
    %p45 = por %p43, %p44
    %p46 = scmp.ne.s32.totalorder %s35, %s36
    %p47 = scmp.eq.s32.totalorder %s15, 0
    %p48 = por %p46, %p47
    %p49 = scmp.ne.s32.totalorder %s35, %s36
    %p50 = scmp.eq.s32.totalorder %s16, 1
    %p51 = por %p49, %p50
    %p53 = scmp.ne.s32.totalorder %s36, %s52
    %p54 = scmp.eq.s32.totalorder %s16, 0
    %p55 = por %p53, %p54
    %s57 = sadd.s32 %s56, 1
    %p60 = scmp.eq.s32.totalorder %s10, 1
    %p61 = scmp.ne.s32.totalorder %s56, %s58
    %p62 = scmp.eq.s32.totalorder %s10, 0
    %p63 = por %p61, %p62
    %p64 = scmp.ne.s32.totalorder %s56, %s58
    %p65 = scmp.eq.s32.totalorder %s15, 1
    %p66 = por %p64, %p65
    %p67 = scmp.ne.s32.totalorder %s58, %s59
    %p68 = scmp.eq.s32.totalorder %s15, 0
    %p69 = por %p67, %p68
    %p70 = scmp.ne.s32.totalorder %s58, %s59
    %p71 = scmp.eq.s32.totalorder %s16, 1
    %p72 = por %p70, %p71
    %p74 = scmp.ne.s32.totalorder %s59, %s73
    %p75 = scmp.eq.s32.totalorder %s16, 0
    %p76 = por %p74, %p75
    %s77 = ssub.s32 %s17, %s29
    %s78 = ssub.s32 %s18, %s25
    %s79 = sor.u32 %s77, %s78
    %p80 = scmp.eq.s32.totalorder %s79, 0
    %s82 = sadd.s32 %s81, 1
    %s83 = scalar_select %p80, %s81, %s82
    %p86 = pneg %p80
    %p87 = scmp.eq.s32.totalorder %s10, 1
    %p88 = por %p86, %p87
    %p89 = scmp.ne.s32.totalorder %s81, %s84
    %p90 = scmp.eq.s32.totalorder %s10, 0
    %p91 = por %p89, %p90
    %p92 = scmp.ne.s32.totalorder %s81, %s84
    %p93 = scmp.eq.s32.totalorder %s15, 1
    %p94 = por %p92, %p93
    %p95 = scmp.ne.s32.totalorder %s84, %s85
    %p96 = scmp.eq.s32.totalorder %s15, 0
    %p97 = por %p95, %p96
    %p98 = scmp.ne.s32.totalorder %s84, %s85
    %p99 = scmp.eq.s32.totalorder %s16, 1
    %p100 = por %p98, %p99
    %p102 = scmp.ne.s32.totalorder %s85, %s101
    %p103 = scmp.eq.s32.totalorder %s16, 0
    %p104 = por %p102, %p103
    %s105 = ssub.s32 %s17, %s29
    %s106 = ssub.s32 %s18, %s25
    %s107 = sor.u32 %s105, %s106
    %p108 = scmp.eq.s32.totalorder %s107, 0
    %s110 = sadd.s32 %s109, 1
    %s111 = scalar_select %p108, %s109, %s110
    %p114 = pneg %p108
    %p115 = scmp.eq.s32.totalorder %s10, 1
    %p116 = por %p114, %p115
    %p117 = scmp.ne.s32.totalorder %s109, %s112
    %p118 = scmp.eq.s32.totalorder %s10, 0
    %p119 = por %p117, %p118
    %p120 = scmp.ne.s32.totalorder %s109, %s112
    %p121 = scmp.eq.s32.totalorder %s15, 1
    %p122 = por %p120, %p121
    %p123 = scmp.ne.s32.totalorder %s112, %s113
    %p124 = scmp.eq.s32.totalorder %s15, 0
    %p125 = por %p123, %p124
    %p126 = scmp.ne.s32.totalorder %s112, %s113
    %p127 = scmp.eq.s32.totalorder %s16, 1
    %p128 = por %p126, %p127
    %p130 = scmp.ne.s32.totalorder %s113, %s129
    %p131 = scmp.eq.s32.totalorder %s16, 0
    %p132 = por %p130, %p131
    %p133 = scmp.le.s32.totalorder 1, %s10
    %p134 = scmp.lt.s32.totalorder %s10, 3
    %p135 = pnand %p133, %p134
    %p136 = pneg %p135
    // Predicated region
    $region9: #{down_forward.8} parent=5 // pred_check
      _
    $region10: #{down_forward.8} parent=5 // pred_check_branch
      %138 = sbr.rel (%p135) target = $region12
    $region11: #{down_forward.8} parent=5 // pred_region
      %s139 = ssub.s32 %s10, 1
      // Predicated region
      $region13: #{down_forward.8} parent=11 // pred_check
        %p140 = pneg %p69
      $region14: #{down_forward.8} parent=11 // pred_check_branch
        %142 = sbr.rel (%p140) target = $region16
      $region15: #{down_forward.8} parent=11 // pred_region
        _
      $region16: #{down_forward.8} parent=11 // pred_fallthru
        _
    $region12: #{down_forward.8} parent=5 // pred_fallthru
      _
    %p143 = scmp.lt.s32.totalorder %s10, 2
    // Predicated region
    $region17: #{down_forward.8} parent=5 // pred_check
      %p144 = pneg %p143
    $region18: #{down_forward.8} parent=5 // pred_check_branch
      %146 = sbr.rel (%p144) target = $region20
    $region19: #{down_forward.8} parent=5 // pred_region
      // Predicated region
      $region21: #{down_forward.8} parent=19 // pred_check
        %p147 = pneg %p42
      $region22: #{down_forward.8} parent=19 // pred_check_branch
        %149 = sbr.rel (%p147) target = $region24
      $region23: #{down_forward.8} parent=19 // pred_region
        %p150 = scmp.lt.s32.totalorder %s17, 1
        %s151 = scalar_select %p150, %s17, 1
        %s152 = smul.addr %s151, 20
        %s153 = smul.addr %s152, 4
        %s154 = scalar_lea.vmem %s0, %s153
      $region24: #{down_forward.8} parent=19 // pred_fallthru
        _
    $region20: #{down_forward.8} parent=5 // pred_fallthru
      _
    %p155 = scmp.le.s32.totalorder 1, %s10
    %p156 = scmp.lt.s32.totalorder %s10, 3
    %p157 = pnand %p155, %p156
    %p158 = pneg %p157
    // Predicated region
    $region25: #{down_forward.8} parent=5 // pred_check
      _
    $region26: #{down_forward.8} parent=5 // pred_check_branch
      %160 = sbr.rel (%p157) target = $region28
    $region27: #{down_forward.8} parent=5 // pred_region
      %s161 = ssub.s32 %s10, 1
      %p162 = scmp.lt.s32.totalorder %s19, 1
      %s163 = scalar_select %p162, %s19, 1
      %s164 = smul.addr %s163, 20
      %s165 = smul.addr %s164, 4
      %s166 = scalar_lea.vmem %s0, %s165
      %p167 = pneg %p48
      %p168 = pneg %p45
      %p169 = pneg %p69
      %p170 = pneg %p66
      %p171 = pneg %p97
      %p172 = pneg %p94
      %s173 = smul.u32 8, %s20
      %p174 = scmp.lt.s32.totalorder %s19, 1
      %s175 = scalar_select %p174, %s19, 1
      %p176 = scmp.lt.s32.totalorder %s173, 7
      %s177 = scalar_select %p176, %s173, 7
      %s178 = smul.addr %s175, 8
      %s179 = sadd.s32 %s177, %s178
      %s180 = smul.addr %s179, 4
      %s181 = scalar_lea.vmem %s2, %s180
      %p182 = pneg %p125
      %p183 = pneg %p122
      %p184 = scmp.lt.s32.totalorder %s19, 1
      %s185 = scalar_select %p184, %s19, 1
      %p186 = scmp.lt.s32.totalorder %s20, 0
      %s187 = scalar_select %p186, %s20, 0
      %s188 = sadd.s32 %s187, %s185
      %s189 = smul.addr %s188, 2
      %s190 = scalar_lea.vmem %s3, %s189
      %p191 = scmp.lt.s32.totalorder %s19, 1
      %s192 = scalar_select %p191, %s19, 1
      %s193 = smul.addr %s192, 20
      %s194 = smul.addr %s193, 4
      %s195 = scalar_lea.vmem %s0, %s194
      %s196 = smul.u32 8, %s20
      %p197 = scmp.lt.s32.totalorder %s19, 1
      %s198 = scalar_select %p197, %s19, 1
      %p199 = scmp.lt.s32.totalorder %s196, 7
      %s200 = scalar_select %p199, %s196, 7
      %s201 = smul.addr %s198, 8
      %s202 = sadd.s32 %s200, %s201
      %s203 = smul.addr %s202, 4
      %s204 = scalar_lea.vmem %s2, %s203
      %s205 = smul.u32 8, %s20
      %p206 = scmp.lt.s32.totalorder %s19, 1
      %s207 = scalar_select %p206, %s19, 1
      %p208 = scmp.lt.s32.totalorder %s20, 0
      %s209 = scalar_select %p208, %s20, 0
      %s210 = sadd.s32 %s209, %s207
      %s211 = smul.addr %s210, 2
      %s212 = scalar_lea.vmem %s3, %s211
      %s214 = smul.u32 %s20, 8
      %s215 = smul.u32 %s214, 2
      %s216 = smul.addr %s215, 4
      %s217 = scalar_lea.vmem %s195, %s216
      %v218 = vld [vmem:[%s217] sm:$0xf]
      %v219 = vld [vmem:[%s217 + $0x8] sm:$0xf]
      %v220 = vld [vmem:[%s217 + $0x10] sm:$0xf]
      %v221 = vld [vmem:[%s217 + $0x18] sm:$0xf]
      %v222 = vld [vmem:[%s217 + $0x20] sm:$0xf]
      %v223 = vld [vmem:[%s217 + $0x28] sm:$0xf]
      %v224 = vld [vmem:[%s217 + $0x30] sm:$0xf]
      %v225 = vld [vmem:[%s217 + $0x38] sm:$0xf]
      %v226 = vld [vmem:[%s1] sm:$0xf]
      %v227 = vld [vmem:[%s1 + $0x4] sm:$0xf]
      %v228 = vld [vmem:[%s1 + $0x8] sm:$0xf]
      %v229 = vld [vmem:[%s1 + $0xc] sm:$0xf]
      %v230 = vld [vmem:[%s1 + $0x10] sm:$0xf]
      %v231 = vld [vmem:[%s1 + $0x14] sm:$0xf]
      %v232 = vld [vmem:[%s1 + $0x18] sm:$0xf]
      %v233 = vld [vmem:[%s1 + $0x1c] sm:$0xf]
      %v234 = vld [vmem:[%s1 + $0x20] sm:$0xf]
      %v235 = vld [vmem:[%s1 + $0x24] sm:$0xf]
      %v236 = vld [vmem:[%s1 + $0x28] sm:$0xf]
      %v237 = vld [vmem:[%s1 + $0x2c] sm:$0xf]
      %v238 = vld [vmem:[%s1 + $0x30] sm:$0xf]
      %v239 = vld [vmem:[%s1 + $0x34] sm:$0xf]
      %v240 = vld [vmem:[%s1 + $0x38] sm:$0xf]
      %v241 = vld [vmem:[%s1 + $0x3c] sm:$0xf]
      %v250 = vunpack.c.l.b16 %v218
      %v251 = vunpack.c.l.b16 %v219
      %v252 = vunpack.c.l.b16 %v220
      %v253 = vunpack.c.l.b16 %v221
      %v254 = vunpack.c.l.b16 %v222
      %v255 = vunpack.c.l.b16 %v223
      %v256 = vunpack.c.l.b16 %v224
      %v257 = vunpack.c.l.b16 %v225
      %v258 = vpack.c.b16 %v251, %v250
      %v259 = vpack.c.b16 %v253, %v252
      %v260 = vpack.c.b16 %v255, %v254
      %v261 = vpack.c.b16 %v257, %v256
      %v282 = vunpack.c.l.b16 %v226
      %v283 = vunpack.c.l.b16 %v227
      %v284 = vunpack.c.l.b16 %v228
      %v285 = vunpack.c.l.b16 %v229
      %v286 = vunpack.c.l.b16 %v230
      %v287 = vunpack.c.l.b16 %v231
      %v288 = vunpack.c.l.b16 %v232
      %v289 = vunpack.c.l.b16 %v233
      %v290 = vunpack.c.l.b16 %v234
      %v291 = vunpack.c.l.b16 %v235
      %v292 = vunpack.c.l.b16 %v236
      %v293 = vunpack.c.l.b16 %v237
      %v294 = vunpack.c.l.b16 %v238
      %v295 = vunpack.c.l.b16 %v239
      %v296 = vunpack.c.l.b16 %v240
      %v297 = vunpack.c.l.b16 %v241
      %v298 = vpack.c.b16 %v283, %v282
      %v299 = vpack.c.b16 %v285, %v284
      %v300 = vpack.c.b16 %v287, %v286
      %v301 = vpack.c.b16 %v289, %v288
      %v302 = vpack.c.b16 %v291, %v290
      %v303 = vpack.c.b16 %v293, %v292
      %v304 = vpack.c.b16 %v295, %v294
      %v305 = vpack.c.b16 %v297, %v296
      %314 = vmatprep.subr.bf16.mxu0 0
      %315 = vmatpush1.bf16.msra.mxu0 %v298
      %316 = vmatprep.subr.bf16.mxu0 0
      %317 = vmatpush1.bf16.msra.mxu0 %v299
      %318 = vmatprep.subr.bf16.mxu0 0
      %319 = vmatpush1.bf16.msra.mxu0 %v300
      %320 = vmatprep.subr.bf16.mxu0 0
      %321 = vmatpush1.bf16.msra.mxu0 %v301
      %322 = vmatprep.subr.bf16.mxu0 0
      %323 = vmatpush1.bf16.msra.mxu0 %v302
      %324 = vmatprep.subr.bf16.mxu0 0
      %325 = vmatpush1.bf16.msra.mxu0 %v303
      %326 = vmatprep.subr.bf16.mxu0 0
      %327 = vmatpush1.bf16.msra.mxu0 %v304
      %328 = vmatprep.subr.bf16.mxu0 0
      %329 = vmatpush1.bf16.msra.mxu0 %v305
      %330 = vmatprep.subr.bf16.mxu0 0
      %331 = vmatpush1.bf16.msra.mxu0 0
      %332 = vmatprep.subr.bf16.mxu0 0
      %333 = vmatpush1.bf16.msra.mxu0 0
      %334 = vmatprep.subr.bf16.mxu0 0
      %335 = vmatpush1.bf16.msra.mxu0 0
      %336 = vmatprep.subr.bf16.mxu0 0
      %337 = vmatpush1.bf16.msra.mxu0 0
      %338 = vmatprep.subr.bf16.mxu0 0
      %339 = vmatpush1.bf16.msra.mxu0 0
      %340 = vmatprep.subr.bf16.mxu0 0
      %341 = vmatpush1.bf16.msra.mxu0 0
      %342 = vmatprep.subr.bf16.mxu0 0
      %343 = vmatpush1.bf16.msra.mxu0 0
      %344 = vmatprep.subr.bf16.mxu0 0
      %345 = vmatpush1.bf16.msra.mxu0 0
      %346 = vmatprep.mubr.bf16.mxu0 0
      %347 = vmatmul.mubr.bf16.gmra.mrb[0].mxu0 %v258
      %v348 = vpop.f32.mrb[0].mxu0
      %v349 = vadd.f32 0.0, %v348
      %v350 = vpop.f32.mrb[0].mxu0
      %v351 = vpop.f32.mrb[0].mxu0
      %v352 = vadd.f32 0.0, %v351
      %v353 = vpop.f32.mrb[0].mxu0
      %354 = vmatprep.mubr.bf16.mxu0 0
      %355 = vmatmul.mubr.bf16.gmra.mrb[0].mxu0 %v259
      %v356 = vpop.f32.mrb[0].mxu0
      %v357 = vadd.f32 0.0, %v356
      %v358 = vpop.f32.mrb[0].mxu0
      %v359 = vpop.f32.mrb[0].mxu0
      %v360 = vadd.f32 0.0, %v359
      %v361 = vpop.f32.mrb[0].mxu0
      %362 = vmatprep.mubr.bf16.mxu0 0
      %363 = vmatmul.mubr.bf16.gmra.mrb[0].mxu0 %v260
      %v364 = vpop.f32.mrb[0].mxu0
      %v365 = vadd.f32 0.0, %v364
      %v366 = vpop.f32.mrb[0].mxu0
      %v367 = vpop.f32.mrb[0].mxu0
      %v368 = vadd.f32 0.0, %v367
      %v369 = vpop.f32.mrb[0].mxu0
      %370 = vmatprep.mubr.bf16.mxu0 0
      %371 = vmatmul.mubr.bf16.gmra.mrb[0].mxu0 %v261
      %v372 = vpop.f32.mrb[0].mxu0
      %v373 = vadd.f32 0.0, %v372
      %v374 = vpop.f32.mrb[0].mxu0
      %v375 = vpop.f32.mrb[0].mxu0
      %v376 = vadd.f32 0.0, %v375
      %v377 = vpop.f32.mrb[0].mxu0
      %378 = vdwg.mxu0
      %379 = vst [vmem:[#allocation2] sm:$0xff] %v349
      %380 = vst [vmem:[#allocation2 + $0x8] sm:$0xff] %v352
      %381 = vst [vmem:[#allocation2 + $0x10] sm:$0xff] %v357
      %382 = vst [vmem:[#allocation2 + $0x18] sm:$0xff] %v360
      %383 = vst [vmem:[#allocation2 + $0x20] sm:$0xff] %v365
      %384 = vst [vmem:[#allocation2 + $0x28] sm:$0xff] %v368
      %385 = vst [vmem:[#allocation2 + $0x30] sm:$0xff] %v373
      %386 = vst [vmem:[#allocation2 + $0x38] sm:$0xff] %v376
      %v387 = vld [vmem:[%s217] sm:$0xf]
      %v388 = vld [vmem:[%s217 + $0x4] sm:$0x1]
      %v389 = vld [vmem:[%s217 + $0x8] sm:$0xf]
      %v390 = vld [vmem:[%s217 + $0xc] sm:$0x1]
      %v391 = vld [vmem:[%s217 + $0x10] sm:$0xf]
      %v392 = vld [vmem:[%s217 + $0x14] sm:$0x1]
      %v393 = vld [vmem:[%s217 + $0x18] sm:$0xf]
      %v394 = vld [vmem:[%s217 + $0x1c] sm:$0x1]
      %v395 = vld [vmem:[%s217 + $0x20] sm:$0xf]
      %v396 = vld [vmem:[%s217 + $0x24] sm:$0x1]
      %v397 = vld [vmem:[%s217 + $0x28] sm:$0xf]
      %v398 = vld [vmem:[%s217 + $0x2c] sm:$0x1]
      %v399 = vld [vmem:[%s217 + $0x30] sm:$0xf]
      %v400 = vld [vmem:[%s217 + $0x34] sm:$0x1]
      %v401 = vld [vmem:[%s217 + $0x38] sm:$0xf]
      %v402 = vld [vmem:[%s217 + $0x3c] sm:$0x1]
      %vm403 = vsmask.f32 3328
      %vm404 = vsmask.f32 7440
      %vm405 = vmor %vm403, %vm404
      %v407 = vshrl.u32 %v387, 16
      %v409 = vrot.slane %v407, 4
      %v410 = vshll.u32 %v387, 16
      %v412 = vrot.slane %v410, 5
      %v413 = vor.u32 %v409, %v412
      %v414 = vrot.slane %v413, 4
      %v416 = vshll.u32 %v388, 16
      %v418 = vrot.slane %v416, 5
      %v419 = vsel %vm405, %v414, %v418
      %v421 = vshrl.u32 %v389, 16
      %v423 = vrot.slane %v421, 4
      %v424 = vshll.u32 %v389, 16
      %v426 = vrot.slane %v424, 5
      %v427 = vor.u32 %v423, %v426
      %v428 = vrot.slane %v427, 4
      %v430 = vshll.u32 %v390, 16
      %v432 = vrot.slane %v430, 5
      %v433 = vsel %vm405, %v428, %v432
      %v435 = vshrl.u32 %v391, 16
      %v437 = vrot.slane %v435, 4
      %v438 = vshll.u32 %v391, 16
      %v440 = vrot.slane %v438, 5
      %v441 = vor.u32 %v437, %v440
      %v442 = vrot.slane %v441, 4
      %v444 = vshll.u32 %v392, 16
      %v446 = vrot.slane %v444, 5
      %v447 = vsel %vm405, %v442, %v446
      %v449 = vshrl.u32 %v393, 16
      %v451 = vrot.slane %v449, 4
      %v452 = vshll.u32 %v393, 16
      %v454 = vrot.slane %v452, 5
      %v455 = vor.u32 %v451, %v454
      %v456 = vrot.slane %v455, 4
      %v458 = vshll.u32 %v394, 16
      %v460 = vrot.slane %v458, 5
      %v461 = vsel %vm405, %v456, %v460
      %v463 = vshrl.u32 %v395, 16
      %v465 = vrot.slane %v463, 4
      %v466 = vshll.u32 %v395, 16
      %v468 = vrot.slane %v466, 5
      %v469 = vor.u32 %v465, %v468
      %v470 = vrot.slane %v469, 4
      %v472 = vshll.u32 %v396, 16
      %v474 = vrot.slane %v472, 5
      %v475 = vsel %vm405, %v470, %v474
      %v477 = vshrl.u32 %v397, 16
      %v479 = vrot.slane %v477, 4
      %v480 = vshll.u32 %v397, 16
      %v482 = vrot.slane %v480, 5
      %v483 = vor.u32 %v479, %v482
      %v484 = vrot.slane %v483, 4
      %v486 = vshll.u32 %v398, 16
      %v488 = vrot.slane %v486, 5
      %v489 = vsel %vm405, %v484, %v488
      %v491 = vshrl.u32 %v399, 16
      %v493 = vrot.slane %v491, 4
      %v494 = vshll.u32 %v399, 16
      %v496 = vrot.slane %v494, 5
      %v497 = vor.u32 %v493, %v496
      %v498 = vrot.slane %v497, 4
      %v500 = vshll.u32 %v400, 16
      %v502 = vrot.slane %v500, 5
      %v503 = vsel %vm405, %v498, %v502
      %v505 = vshrl.u32 %v401, 16
      %v507 = vrot.slane %v505, 4
      %v508 = vshll.u32 %v401, 16
      %v510 = vrot.slane %v508, 5
      %v511 = vor.u32 %v507, %v510
      %v512 = vrot.slane %v511, 4
      %v514 = vshll.u32 %v402, 16
      %v516 = vrot.slane %v514, 5
      %v517 = vsel %vm405, %v512, %v516
      %s518 = scalar_lea.vmem %s1, 64
      %v519 = vld [vmem:[%s518] sm:$0xf]
      %v520 = vld [vmem:[%s518 + $0x4] sm:$0xf]
      %v521 = vld [vmem:[%s518 + $0x8] sm:$0xf]
      %v522 = vld [vmem:[%s518 + $0xc] sm:$0xf]
      %v523 = vld [vmem:[%s518 + $0x10] sm:$0xf]
      %v524 = vld [vmem:[%s518 + $0x14] sm:$0xf]
      %v525 = vld [vmem:[%s518 + $0x18] sm:$0xf]
      %v526 = vld [vmem:[%s518 + $0x1c] sm:$0xf]
      %v527 = vld [vmem:[%s518 + $0x20] sm:$0xf]
      %v528 = vld [vmem:[%s518 + $0x24] sm:$0xf]
      %v529 = vld [vmem:[%s518 + $0x28] sm:$0xf]
      %v530 = vld [vmem:[%s518 + $0x2c] sm:$0xf]
      %v531 = vld [vmem:[%s518 + $0x30] sm:$0xf]
      %v532 = vld [vmem:[%s518 + $0x34] sm:$0xf]
      %v533 = vld [vmem:[%s518 + $0x38] sm:$0xf]
      %v534 = vld [vmem:[%s518 + $0x3c] sm:$0xf]
      %v535 = vunpack.c.l.b16 %v419
      %v536 = vunpack.c.l.b16 %v433
      %v537 = vunpack.c.l.b16 %v447
      %v538 = vunpack.c.l.b16 %v461
      %v539 = vunpack.c.l.b16 %v475
      %v540 = vunpack.c.l.b16 %v489
      %v541 = vunpack.c.l.b16 %v503
      %v542 = vunpack.c.l.b16 %v517
      %v543 = vpack.c.b16 %v536, %v535
      %v544 = vpack.c.b16 %v538, %v537
      %v545 = vpack.c.b16 %v540, %v539
      %v546 = vpack.c.b16 %v542, %v541
      %v567 = vunpack.c.l.b16 %v519
      %v568 = vunpack.c.l.b16 %v520
      %v569 = vunpack.c.l.b16 %v521
      %v570 = vunpack.c.l.b16 %v522
      %v571 = vunpack.c.l.b16 %v523
      %v572 = vunpack.c.l.b16 %v524
      %v573 = vunpack.c.l.b16 %v525
      %v574 = vunpack.c.l.b16 %v526
      %v575 = vunpack.c.l.b16 %v527
      %v576 = vunpack.c.l.b16 %v528
      %v577 = vunpack.c.l.b16 %v529
      %v578 = vunpack.c.l.b16 %v530
      %v579 = vunpack.c.l.b16 %v531
      %v580 = vunpack.c.l.b16 %v532
      %v581 = vunpack.c.l.b16 %v533
      %v582 = vunpack.c.l.b16 %v534
      %v583 = vpack.c.b16 %v568, %v567
      %v584 = vpack.c.b16 %v570, %v569
      %v585 = vpack.c.b16 %v572, %v571
      %v586 = vpack.c.b16 %v574, %v573
      %v587 = vpack.c.b16 %v576, %v575
      %v588 = vpack.c.b16 %v578, %v577
      %v589 = vpack.c.b16 %v580, %v579
      %v590 = vpack.c.b16 %v582, %v581
      %599 = vmatprep.subr.bf16.mxu0 0
      %600 = vmatpush1.bf16.msra.mxu0 %v583
      %601 = vmatprep.subr.bf16.mxu0 0
      %602 = vmatpush1.bf16.msra.mxu0 %v584
      %603 = vmatprep.subr.bf16.mxu0 0
      %604 = vmatpush1.bf16.msra.mxu0 %v585
      %605 = vmatprep.subr.bf16.mxu0 0
      %606 = vmatpush1.bf16.msra.mxu0 %v586
      %607 = vmatprep.subr.bf16.mxu0 0
      %608 = vmatpush1.bf16.msra.mxu0 %v587
      %609 = vmatprep.subr.bf16.mxu0 0
      %610 = vmatpush1.bf16.msra.mxu0 %v588
      %611 = vmatprep.subr.bf16.mxu0 0
      %612 = vmatpush1.bf16.msra.mxu0 %v589
      %613 = vmatprep.subr.bf16.mxu0 0
      %614 = vmatpush1.bf16.msra.mxu0 %v590
      %615 = vmatprep.subr.bf16.mxu0 0
      %616 = vmatpush1.bf16.msra.mxu0 0
      %617 = vmatprep.subr.bf16.mxu0 0
      %618 = vmatpush1.bf16.msra.mxu0 0
      %619 = vmatprep.subr.bf16.mxu0 0
      %620 = vmatpush1.bf16.msra.mxu0 0
      %621 = vmatprep.subr.bf16.mxu0 0
      %622 = vmatpush1.bf16.msra.mxu0 0
      %623 = vmatprep.subr.bf16.mxu0 0
      %624 = vmatpush1.bf16.msra.mxu0 0
      %625 = vmatprep.subr.bf16.mxu0 0
      %626 = vmatpush1.bf16.msra.mxu0 0
      %627 = vmatprep.subr.bf16.mxu0 0
      %628 = vmatpush1.bf16.msra.mxu0 0
      %629 = vmatprep.subr.bf16.mxu0 0
      %630 = vmatpush1.bf16.msra.mxu0 0
      %631 = vmatprep.mubr.bf16.mxu0 0
      %632 = vmatmul.mubr.bf16.gmra.mrb[0].mxu0 %v543
      %v633 = vpop.f32.mrb[0].mxu0
      %v634 = vadd.f32 0.0, %v633
      %v635 = vpop.f32.mrb[0].mxu0
      %v636 = vpop.f32.mrb[0].mxu0
      %v637 = vadd.f32 0.0, %v636
      %v638 = vpop.f32.mrb[0].mxu0
      %639 = vmatprep.mubr.bf16.mxu0 0
      %640 = vmatmul.mubr.bf16.gmra.mrb[0].mxu0 %v544
      %v641 = vpop.f32.mrb[0].mxu0
      %v642 = vadd.f32 0.0, %v641
      %v643 = vpop.f32.mrb[0].mxu0
      %v644 = vpop.f32.mrb[0].mxu0
      %v645 = vadd.f32 0.0, %v644
      %v646 = vpop.f32.mrb[0].mxu0
      %647 = vmatprep.mubr.bf16.mxu0 0
      %648 = vmatmul.mubr.bf16.gmra.mrb[0].mxu0 %v545
      %v649 = vpop.f32.mrb[0].mxu0
      %v650 = vadd.f32 0.0, %v649
      %v651 = vpop.f32.mrb[0].mxu0
      %v652 = vpop.f32.mrb[0].mxu0
      %v653 = vadd.f32 0.0, %v652
      %v654 = vpop.f32.mrb[0].mxu0
      %655 = vmatprep.mubr.bf16.mxu0 0
      %656 = vmatmul.mubr.bf16.gmra.mrb[0].mxu0 %v546
      %v657 = vpop.f32.mrb[0].mxu0
      %v658 = vadd.f32 0.0, %v657
      %v659 = vpop.f32.mrb[0].mxu0
      %v660 = vpop.f32.mrb[0].mxu0
      %v661 = vadd.f32 0.0, %v660
      %v662 = vpop.f32.mrb[0].mxu0
      %663 = vdwg.mxu0
      %v664 = vld [vmem:[#allocation2] sm:$0xff]
      %v665 = vld [vmem:[#allocation2 + $0x8] sm:$0xff]
      %v666 = vld [vmem:[#allocation2 + $0x10] sm:$0xff]
      %v667 = vld [vmem:[#allocation2 + $0x18] sm:$0xff]
      %v668 = vld [vmem:[#allocation2 + $0x20] sm:$0xff]
      %v669 = vld [vmem:[#allocation2 + $0x28] sm:$0xff]
      %v670 = vld [vmem:[#allocation2 + $0x30] sm:$0xff]
      %v671 = vld [vmem:[#allocation2 + $0x38] sm:$0xff]
      %v672 = vadd.f32 %v664, %v634
      %v673 = vadd.f32 %v665, %v637
      %v674 = vadd.f32 %v666, %v642
      %v675 = vadd.f32 %v667, %v645
      %v676 = vadd.f32 %v668, %v650
      %v677 = vadd.f32 %v669, %v653
      %v678 = vadd.f32 %v670, %v658
      %v679 = vadd.f32 %v671, %v661
      %680 = vst [vmem:[#allocation2] sm:$0xff] %v672
      %681 = vst [vmem:[#allocation2 + $0x8] sm:$0xff] %v673
      %682 = vst [vmem:[#allocation2 + $0x10] sm:$0xff] %v674
      %683 = vst [vmem:[#allocation2 + $0x18] sm:$0xff] %v675
      %684 = vst [vmem:[#allocation2 + $0x20] sm:$0xff] %v676
      %685 = vst [vmem:[#allocation2 + $0x28] sm:$0xff] %v677
      %686 = vst [vmem:[#allocation2 + $0x30] sm:$0xff] %v678
      %687 = vst [vmem:[#allocation2 + $0x38] sm:$0xff] %v679
      %v688 = vld [vmem:[%s217] sm:$0xe]
      %v689 = vld [vmem:[%s217 + $0x4] sm:$0x1]
      %v690 = vld [vmem:[%s217 + $0x8] sm:$0xe]
      %v691 = vld [vmem:[%s217 + $0xc] sm:$0x1]
      %v692 = vld [vmem:[%s217 + $0x10] sm:$0xe]
      %v693 = vld [vmem:[%s217 + $0x14] sm:$0x1]
      %v694 = vld [vmem:[%s217 + $0x18] sm:$0xe]
      %v695 = vld [vmem:[%s217 + $0x1c] sm:$0x1]
      %v696 = vld [vmem:[%s217 + $0x20] sm:$0xe]
      %v697 = vld [vmem:[%s217 + $0x24] sm:$0x1]
      %v698 = vld [vmem:[%s217 + $0x28] sm:$0xe]
      %v699 = vld [vmem:[%s217 + $0x2c] sm:$0x1]
      %v700 = vld [vmem:[%s217 + $0x30] sm:$0xe]
      %v701 = vld [vmem:[%s217 + $0x34] sm:$0x1]
      %v702 = vld [vmem:[%s217 + $0x38] sm:$0xe]
      %v703 = vld [vmem:[%s217 + $0x3c] sm:$0x1]
      %vm720 = vcmask 1042432
      %vm721 = vcmask 1046532
      %vm722 = vmor %vm720, %vm721
      %v723 = vrot.slane %v688, 5
      %v724 = vrot.slane %v723, 4
      %v725 = vrot.slane %v689, 5
      %v726 = vsel %vm722, %v724, %v725
      %v727 = vrot.slane %v690, 5
      %v728 = vrot.slane %v727, 4
      %v729 = vrot.slane %v691, 5
      %v730 = vsel %vm722, %v728, %v729
      %v731 = vrot.slane %v692, 5
      %v732 = vrot.slane %v731, 4
      %v733 = vrot.slane %v693, 5
      %v734 = vsel %vm722, %v732, %v733
      %v735 = vrot.slane %v694, 5
      %v736 = vrot.slane %v735, 4
      %v737 = vrot.slane %v695, 5
      %v738 = vsel %vm722, %v736, %v737
      %v739 = vrot.slane %v696, 5
      %v740 = vrot.slane %v739, 4
      %v741 = vrot.slane %v697, 5
      %v742 = vsel %vm722, %v740, %v741
      %v743 = vrot.slane %v698, 5
      %v744 = vrot.slane %v743, 4
      %v745 = vrot.slane %v699, 5
      %v746 = vsel %vm722, %v744, %v745
      %v747 = vrot.slane %v700, 5
      %v748 = vrot.slane %v747, 4
      %v749 = vrot.slane %v701, 5
      %v750 = vsel %vm722, %v748, %v749
      %v751 = vrot.slane %v702, 5
      %v752 = vrot.slane %v751, 4
      %v753 = vrot.slane %v703, 5
      %v754 = vsel %vm722, %v752, %v753
      %s755 = scalar_lea.vmem %s1, 128
      %v756 = vld [vmem:[%s755] sm:$0xf]
      %v757 = vld [vmem:[%s755 + $0x4] sm:$0xf]
      %v758 = vld [vmem:[%s755 + $0x8] sm:$0xf]
      %v759 = vld [vmem:[%s755 + $0xc] sm:$0xf]
      %v760 = vld [vmem:[%s755 + $0x10] sm:$0xf]
      %v761 = vld [vmem:[%s755 + $0x14] sm:$0xf]
      %v762 = vld [vmem:[%s755 + $0x18] sm:$0xf]
      %v763 = vld [vmem:[%s755 + $0x1c] sm:$0xf]
      %v764 = vld [vmem:[%s755 + $0x20] sm:$0xf]
      %v765 = vld [vmem:[%s755 + $0x24] sm:$0xf]
      %v766 = vld [vmem:[%s755 + $0x28] sm:$0xf]
      %v767 = vld [vmem:[%s755 + $0x2c] sm:$0xf]
      %v768 = vld [vmem:[%s755 + $0x30] sm:$0xf]
      %v769 = vld [vmem:[%s755 + $0x34] sm:$0xf]
      %v770 = vld [vmem:[%s755 + $0x38] sm:$0xf]
      %v771 = vld [vmem:[%s755 + $0x3c] sm:$0xf]
      %v772 = vunpack.c.l.b16 %v726
      %v773 = vunpack.c.l.b16 %v730
      %v774 = vunpack.c.l.b16 %v734
      %v775 = vunpack.c.l.b16 %v738
      %v776 = vunpack.c.l.b16 %v742
      %v777 = vunpack.c.l.b16 %v746
      %v778 = vunpack.c.l.b16 %v750
      %v779 = vunpack.c.l.b16 %v754
      %v780 = vpack.c.b16 %v773, %v772
      %v781 = vpack.c.b16 %v775, %v774
      %v782 = vpack.c.b16 %v777, %v776
      %v783 = vpack.c.b16 %v779, %v778
      %v804 = vunpack.c.l.b16 %v756
      %v805 = vunpack.c.l.b16 %v757
      %v806 = vunpack.c.l.b16 %v758
      %v807 = vunpack.c.l.b16 %v759
      %v808 = vunpack.c.l.b16 %v760
      %v809 = vunpack.c.l.b16 %v761
      %v810 = vunpack.c.l.b16 %v762
      %v811 = vunpack.c.l.b16 %v763
      %v812 = vunpack.c.l.b16 %v764
      %v813 = vunpack.c.l.b16 %v765
      %v814 = vunpack.c.l.b16 %v766
      %v815 = vunpack.c.l.b16 %v767
      %v816 = vunpack.c.l.b16 %v768
      %v817 = vunpack.c.l.b16 %v769
      %v818 = vunpack.c.l.b16 %v770
      %v819 = vunpack.c.l.b16 %v771
      %v820 = vpack.c.b16 %v805, %v804
      %v821 = vpack.c.b16 %v807, %v806
      %v822 = vpack.c.b16 %v809, %v808
      %v823 = vpack.c.b16 %v811, %v810
      %v824 = vpack.c.b16 %v813, %v812
      %v825 = vpack.c.b16 %v815, %v814
      %v826 = vpack.c.b16 %v817, %v816
      %v827 = vpack.c.b16 %v819, %v818
      %836 = vmatprep.subr.bf16.mxu0 0
      %837 = vmatpush1.bf16.msra.mxu0 %v820
      %838 = vmatprep.subr.bf16.mxu0 0
      %839 = vmatpush1.bf16.msra.mxu0 %v821
      %840 = vmatprep.subr.bf16.mxu0 0
      %841 = vmatpush1.bf16.msra.mxu0 %v822
      %842 = vmatprep.subr.bf16.mxu0 0
      %843 = vmatpush1.bf16.msra.mxu0 %v823
      %844 = vmatprep.subr.bf16.mxu0 0
      %845 = vmatpush1.bf16.msra.mxu0 %v824
      %846 = vmatprep.subr.bf16.mxu0 0
      %847 = vmatpush1.bf16.msra.mxu0 %v825
      %848 = vmatprep.subr.bf16.mxu0 0
      %849 = vmatpush1.bf16.msra.mxu0 %v826
      %850 = vmatprep.subr.bf16.mxu0 0
      %851 = vmatpush1.bf16.msra.mxu0 %v827
      %852 = vmatprep.subr.bf16.mxu0 0
      %853 = vmatpush1.bf16.msra.mxu0 0
      %854 = vmatprep.subr.bf16.mxu0 0
      %855 = vmatpush1.bf16.msra.mxu0 0
      %856 = vmatprep.subr.bf16.mxu0 0
      %857 = vmatpush1.bf16.msra.mxu0 0
      %858 = vmatprep.subr.bf16.mxu0 0
      %859 = vmatpush1.bf16.msra.mxu0 0
      %860 = vmatprep.subr.bf16.mxu0 0
      %861 = vmatpush1.bf16.msra.mxu0 0
      %862 = vmatprep.subr.bf16.mxu0 0
      %863 = vmatpush1.bf16.msra.mxu0 0
      %864 = vmatprep.subr.bf16.mxu0 0
      %865 = vmatpush1.bf16.msra.mxu0 0
      %866 = vmatprep.subr.bf16.mxu0 0
      %867 = vmatpush1.bf16.msra.mxu0 0
      %868 = vmatprep.mubr.bf16.mxu0 0
      %869 = vmatmul.mubr.bf16.gmra.mrb[0].mxu0 %v780
      %v870 = vpop.f32.mrb[0].mxu0
      %v871 = vadd.f32 0.0, %v870
      %v872 = vpop.f32.mrb[0].mxu0
      %v873 = vpop.f32.mrb[0].mxu0
      %v874 = vadd.f32 0.0, %v873
      %v875 = vpop.f32.mrb[0].mxu0
      %876 = vmatprep.mubr.bf16.mxu0 0
      %877 = vmatmul.mubr.bf16.gmra.mrb[0].mxu0 %v781
      %v878 = vpop.f32.mrb[0].mxu0
      %v879 = vadd.f32 0.0, %v878
      %v880 = vpop.f32.mrb[0].mxu0
      %v881 = vpop.f32.mrb[0].mxu0
      %v882 = vadd.f32 0.0, %v881
      %v883 = vpop.f32.mrb[0].mxu0
      %884 = vmatprep.mubr.bf16.mxu0 0
      %885 = vmatmul.mubr.bf16.gmra.mrb[0].mxu0 %v782
      %v886 = vpop.f32.mrb[0].mxu0
      %v887 = vadd.f32 0.0, %v886
      %v888 = vpop.f32.mrb[0].mxu0
      %v889 = vpop.f32.mrb[0].mxu0
      %v890 = vadd.f32 0.0, %v889
      %v891 = vpop.f32.mrb[0].mxu0
      %892 = vmatprep.mubr.bf16.mxu0 0
      %893 = vmatmul.mubr.bf16.gmra.mrb[0].mxu0 %v783
      %v894 = vpop.f32.mrb[0].mxu0
      %v895 = vadd.f32 0.0, %v894
      %v896 = vpop.f32.mrb[0].mxu0
      %v897 = vpop.f32.mrb[0].mxu0
      %v898 = vadd.f32 0.0, %v897
      %v899 = vpop.f32.mrb[0].mxu0
      %900 = vdwg.mxu0
      %v901 = vld [vmem:[#allocation2] sm:$0xff]
      %v902 = vld [vmem:[#allocation2 + $0x8] sm:$0xff]
      %v903 = vld [vmem:[#allocation2 + $0x10] sm:$0xff]
      %v904 = vld [vmem:[#allocation2 + $0x18] sm:$0xff]
      %v905 = vld [vmem:[#allocation2 + $0x20] sm:$0xff]
      %v906 = vld [vmem:[#allocation2 + $0x28] sm:$0xff]
      %v907 = vld [vmem:[#allocation2 + $0x30] sm:$0xff]
      %v908 = vld [vmem:[#allocation2 + $0x38] sm:$0xff]
      %v909 = vadd.f32 %v901, %v871
      %v910 = vadd.f32 %v902, %v874
      %v911 = vadd.f32 %v903, %v879
      %v912 = vadd.f32 %v904, %v882
      %v913 = vadd.f32 %v905, %v887
      %v914 = vadd.f32 %v906, %v890
      %v915 = vadd.f32 %v907, %v895
      %v916 = vadd.f32 %v908, %v898
      %917 = vst [vmem:[#allocation2] sm:$0xff] %v909
      %918 = vst [vmem:[#allocation2 + $0x8] sm:$0xff] %v910
      %919 = vst [vmem:[#allocation2 + $0x10] sm:$0xff] %v911
      %920 = vst [vmem:[#allocation2 + $0x18] sm:$0xff] %v912
      %921 = vst [vmem:[#allocation2 + $0x20] sm:$0xff] %v913
      %922 = vst [vmem:[#allocation2 + $0x28] sm:$0xff] %v914
      %923 = vst [vmem:[#allocation2 + $0x30] sm:$0xff] %v915
      %924 = vst [vmem:[#allocation2 + $0x38] sm:$0xff] %v916
      %s925 = sadd.s32 %s214, 1
      %s926 = smul.u32 %s925, 2
      %s927 = smul.addr %s926, 4
      %s928 = scalar_lea.vmem %s195, %s927
      %v929 = vld [vmem:[%s928] sm:$0xf]
      %v930 = vld [vmem:[%s928 + $0x8] sm:$0xf]
      %v931 = vld [vmem:[%s928 + $0x10] sm:$0xf]
      %v932 = vld [vmem:[%s928 + $0x18] sm:$0xf]
      %v933 = vld [vmem:[%s928 + $0x20] sm:$0xf]
      %v934 = vld [vmem:[%s928 + $0x28] sm:$0xf]
      %v935 = vld [vmem:[%s928 + $0x30] sm:$0xf]
      %v936 = vld [vmem:[%s928 + $0x38] sm:$0xf]
      %s937 = scalar_lea.vmem %s1, 192
      %v938 = vld [vmem:[%s937] sm:$0xf]
      %v939 = vld [vmem:[%s937 + $0x4] sm:$0xf]
      %v940 = vld [vmem:[%s937 + $0x8] sm:$0xf]
      %v941 = vld [vmem:[%s937 + $0xc] sm:$0xf]
      %v942 = vld [vmem:[%s937 + $0x10] sm:$0xf]
      %v943 = vld [vmem:[%s937 + $0x14] sm:$0xf]
      %v944 = vld [vmem:[%s937 + $0x18] sm:$0xf]
      %v945 = vld [vmem:[%s937 + $0x1c] sm:$0xf]
      %v946 = vld [vmem:[%s937 + $0x20] sm:$0xf]
      %v947 = vld [vmem:[%s937 + $0x24] sm:$0xf]
      %v948 = vld [vmem:[%s937 + $0x28] sm:$0xf]
      %v949 = vld [vmem:[%s937 + $0x2c] sm:$0xf]
      %v950 = vld [vmem:[%s937 + $0x30] sm:$0xf]
      %v951 = vld [vmem:[%s937 + $0x34] sm:$0xf]
      %v952 = vld [vmem:[%s937 + $0x38] sm:$0xf]
      %v953 = vld [vmem:[%s937 + $0x3c] sm:$0xf]
      %v962 = vunpack.c.l.b16 %v929
      %v963 = vunpack.c.l.b16 %v930
      %v964 = vunpack.c.l.b16 %v931
      %v965 = vunpack.c.l.b16 %v932
      %v966 = vunpack.c.l.b16 %v933
      %v967 = vunpack.c.l.b16 %v934
      %v968 = vunpack.c.l.b16 %v935
      %v969 = vunpack.c.l.b16 %v936
      %v970 = vpack.c.b16 %v963, %v962
      %v971 = vpack.c.b16 %v965, %v964
      %v972 = vpack.c.b16 %v967, %v966
      %v973 = vpack.c.b16 %v969, %v968
      %v994 = vunpack.c.l.b16 %v938
      %v995 = vunpack.c.l.b16 %v939
      %v996 = vunpack.c.l.b16 %v940
      %v997 = vunpack.c.l.b16 %v941
      %v998 = vunpack.c.l.b16 %v942
      %v999 = vunpack.c.l.b16 %v943
      %v1000 = vunpack.c.l.b16 %v944
      %v1001 = vunpack.c.l.b16 %v945
      %v1002 = vunpack.c.l.b16 %v946
      %v1003 = vunpack.c.l.b16 %v947
      %v1004 = vunpack.c.l.b16 %v948
      %v1005 = vunpack.c.l.b16 %v949
      %v1006 = vunpack.c.l.b16 %v950
      %v1007 = vunpack.c.l.b16 %v951
      %v1008 = vunpack.c.l.b16 %v952
      %v1009 = vunpack.c.l.b16 %v953
      %v1010 = vpack.c.b16 %v995, %v994
      %v1011 = vpack.c.b16 %v997, %v996
      %v1012 = vpack.c.b16 %v999, %v998
      %v1013 = vpack.c.b16 %v1001, %v1000
      %v1014 = vpack.c.b16 %v1003, %v1002
      %v1015 = vpack.c.b16 %v1005, %v1004
      %v1016 = vpack.c.b16 %v1007, %v1006
      %v1017 = vpack.c.b16 %v1009, %v1008
      %1026 = vmatprep.subr.bf16.mxu0 0
      %1027 = vmatpush1.bf16.msra.mxu0 %v1010
      %1028 = vmatprep.subr.bf16.mxu0 0
      %1029 = vmatpush1.bf16.msra.mxu0 %v1011
      %1030 = vmatprep.subr.bf16.mxu0 0
      %1031 = vmatpush1.bf16.msra.mxu0 %v1012
      %1032 = vmatprep.subr.bf16.mxu0 0
      %1033 = vmatpush1.bf16.msra.mxu0 %v1013
      %1034 = vmatprep.subr.bf16.mxu0 0
      %1035 = vmatpush1.bf16.msra.mxu0 %v1014
      %1036 = vmatprep.subr.bf16.mxu0 0
      %1037 = vmatpush1.bf16.msra.mxu0 %v1015
      %1038 = vmatprep.subr.bf16.mxu0 0
      %1039 = vmatpush1.bf16.msra.mxu0 %v1016
      %1040 = vmatprep.subr.bf16.mxu0 0
      %1041 = vmatpush1.bf16.msra.mxu0 %v1017
      %1042 = vmatprep.subr.bf16.mxu0 0
      %1043 = vmatpush1.bf16.msra.mxu0 0
      %1044 = vmatprep.subr.bf16.mxu0 0
      %1045 = vmatpush1.bf16.msra.mxu0 0
      %1046 = vmatprep.subr.bf16.mxu0 0
      %1047 = vmatpush1.bf16.msra.mxu0 0
      %1048 = vmatprep.subr.bf16.mxu0 0
      %1049 = vmatpush1.bf16.msra.mxu0 0
      %1050 = vmatprep.subr.bf16.mxu0 0
      %1051 = vmatpush1.bf16.msra.mxu0 0
      %1052 = vmatprep.subr.bf16.mxu0 0
      %1053 = vmatpush1.bf16.msra.mxu0 0
      %1054 = vmatprep.subr.bf16.mxu0 0
      %1055 = vmatpush1.bf16.msra.mxu0 0
      %1056 = vmatprep.subr.bf16.mxu0 0
      %1057 = vmatpush1.bf16.msra.mxu0 0
      %1058 = vmatprep.mubr.bf16.mxu0 0
      %1059 = vmatmul.mubr.bf16.gmra.mrb[0].mxu0 %v970
      %v1060 = vpop.f32.mrb[0].mxu0
      %v1061 = vadd.f32 0.0, %v1060
      %v1062 = vpop.f32.mrb[0].mxu0
      %v1063 = vpop.f32.mrb[0].mxu0
      %v1064 = vadd.f32 0.0, %v1063
      %v1065 = vpop.f32.mrb[0].mxu0
      %1066 = vmatprep.mubr.bf16.mxu0 0
      %1067 = vmatmul.mubr.bf16.gmra.mrb[0].mxu0 %v971
      %v1068 = vpop.f32.mrb[0].mxu0
      %v1069 = vadd.f32 0.0, %v1068
      %v1070 = vpop.f32.mrb[0].mxu0
      %v1071 = vpop.f32.mrb[0].mxu0
      %v1072 = vadd.f32 0.0, %v1071
      %v1073 = vpop.f32.mrb[0].mxu0
      %1074 = vmatprep.mubr.bf16.mxu0 0
      %1075 = vmatmul.mubr.bf16.gmra.mrb[0].mxu0 %v972
      %v1076 = vpop.f32.mrb[0].mxu0
      %v1077 = vadd.f32 0.0, %v1076
      %v1078 = vpop.f32.mrb[0].mxu0
      %v1079 = vpop.f32.mrb[0].mxu0
      %v1080 = vadd.f32 0.0, %v1079
      %v1081 = vpop.f32.mrb[0].mxu0
      %1082 = vmatprep.mubr.bf16.mxu0 0
      %1083 = vmatmul.mubr.bf16.gmra.mrb[0].mxu0 %v973
      %v1084 = vpop.f32.mrb[0].mxu0
      %v1085 = vadd.f32 0.0, %v1084
      %v1086 = vpop.f32.mrb[0].mxu0
      %v1087 = vpop.f32.mrb[0].mxu0
      %v1088 = vadd.f32 0.0, %v1087
      %v1089 = vpop.f32.mrb[0].mxu0
      %1090 = vdwg.mxu0
      %v1091 = vld [vmem:[#allocation2] sm:$0xff]
      %v1092 = vld [vmem:[#allocation2 + $0x8] sm:$0xff]
      %v1093 = vld [vmem:[#allocation2 + $0x10] sm:$0xff]
      %v1094 = vld [vmem:[#allocation2 + $0x18] sm:$0xff]
      %v1095 = vld [vmem:[#allocation2 + $0x20] sm:$0xff]
      %v1096 = vld [vmem:[#allocation2 + $0x28] sm:$0xff]
      %v1097 = vld [vmem:[#allocation2 + $0x30] sm:$0xff]
      %v1098 = vld [vmem:[#allocation2 + $0x38] sm:$0xff]
      %v1099 = vadd.f32 %v1091, %v1061
      %v1100 = vadd.f32 %v1092, %v1064
      %v1101 = vadd.f32 %v1093, %v1069
      %v1102 = vadd.f32 %v1094, %v1072
      %v1103 = vadd.f32 %v1095, %v1077
      %v1104 = vadd.f32 %v1096, %v1080
      %v1105 = vadd.f32 %v1097, %v1085
      %v1106 = vadd.f32 %v1098, %v1088
      %1107 = vst [vmem:[#allocation2] sm:$0xff] %v1099
      %1108 = vst [vmem:[#allocation2 + $0x8] sm:$0xff] %v1100
      %1109 = vst [vmem:[#allocation2 + $0x10] sm:$0xff] %v1101
      %1110 = vst [vmem:[#allocation2 + $0x18] sm:$0xff] %v1102
      %1111 = vst [vmem:[#allocation2 + $0x20] sm:$0xff] %v1103
      %1112 = vst [vmem:[#allocation2 + $0x28] sm:$0xff] %v1104
      %1113 = vst [vmem:[#allocation2 + $0x30] sm:$0xff] %v1105
      %1114 = vst [vmem:[#allocation2 + $0x38] sm:$0xff] %v1106
      %v1115 = vld [vmem:[%s928] sm:$0xf]
      %v1116 = vld [vmem:[%s928 + $0x4] sm:$0x1]
      %v1117 = vld [vmem:[%s928 + $0x8] sm:$0xf]
      %v1118 = vld [vmem:[%s928 + $0xc] sm:$0x1]
      %v1119 = vld [vmem:[%s928 + $0x10] sm:$0xf]
      %v1120 = vld [vmem:[%s928 + $0x14] sm:$0x1]
      %v1121 = vld [vmem:[%s928 + $0x18] sm:$0xf]
      %v1122 = vld [vmem:[%s928 + $0x1c] sm:$0x1]
      %v1123 = vld [vmem:[%s928 + $0x20] sm:$0xf]
      %v1124 = vld [vmem:[%s928 + $0x24] sm:$0x1]
      %v1125 = vld [vmem:[%s928 + $0x28] sm:$0xf]
      %v1126 = vld [vmem:[%s928 + $0x2c] sm:$0x1]
      %v1127 = vld [vmem:[%s928 + $0x30] sm:$0xf]
      %v1128 = vld [vmem:[%s928 + $0x34] sm:$0x1]
      %v1129 = vld [vmem:[%s928 + $0x38] sm:$0xf]
      %v1130 = vld [vmem:[%s928 + $0x3c] sm:$0x1]
      %v1132 = vshrl.u32 %v1115, 16
      %v1134 = vrot.slane %v1132, 4
      %v1135 = vshll.u32 %v1115, 16
      %v1137 = vrot.slane %v1135, 5
      %v1138 = vor.u32 %v1134, %v1137
      %v1139 = vrot.slane %v1138, 4
      %v1141 = vshll.u32 %v1116, 16
      %v1143 = vrot.slane %v1141, 5
      %v1144 = vsel %vm405, %v1139, %v1143
      %v1146 = vshrl.u32 %v1117, 16
      %v1148 = vrot.slane %v1146, 4
      %v1149 = vshll.u32 %v1117, 16
      %v1151 = vrot.slane %v1149, 5
      %v1152 = vor.u32 %v1148, %v1151
      %v1153 = vrot.slane %v1152, 4
      %v1155 = vshll.u32 %v1118, 16
      %v1157 = vrot.slane %v1155, 5
      %v1158 = vsel %vm405, %v1153, %v1157
      %v1160 = vshrl.u32 %v1119, 16
      %v1162 = vrot.slane %v1160, 4
      %v1163 = vshll.u32 %v1119, 16
      %v1165 = vrot.slane %v1163, 5
      %v1166 = vor.u32 %v1162, %v1165
      %v1167 = vrot.slane %v1166, 4
      %v1169 = vshll.u32 %v1120, 16
      %v1171 = vrot.slane %v1169, 5
      %v1172 = vsel %vm405, %v1167, %v1171
      %v1174 = vshrl.u32 %v1121, 16
      %v1176 = vrot.slane %v1174, 4
      %v1177 = vshll.u32 %v1121, 16
      %v1179 = vrot.slane %v1177, 5
      %v1180 = vor.u32 %v1176, %v1179
      %v1181 = vrot.slane %v1180, 4
      %v1183 = vshll.u32 %v1122, 16
      %v1185 = vrot.slane %v1183, 5
      %v1186 = vsel %vm405, %v1181, %v1185
      %v1188 = vshrl.u32 %v1123, 16
      %v1190 = vrot.slane %v1188, 4
      %v1191 = vshll.u32 %v1123, 16
      %v1193 = vrot.slane %v1191, 5
      %v1194 = vor.u32 %v1190, %v1193
      %v1195 = vrot.slane %v1194, 4
      %v1197 = vshll.u32 %v1124, 16
      %v1199 = vrot.slane %v1197, 5
      %v1200 = vsel %vm405, %v1195, %v1199
      %v1202 = vshrl.u32 %v1125, 16
      %v1204 = vrot.slane %v1202, 4
      %v1205 = vshll.u32 %v1125, 16
      %v1207 = vrot.slane %v1205, 5
      %v1208 = vor.u32 %v1204, %v1207
      %v1209 = vrot.slane %v1208, 4
      %v1211 = vshll.u32 %v1126, 16
      %v1213 = vrot.slane %v1211, 5
      %v1214 = vsel %vm405, %v1209, %v1213
      %v1216 = vshrl.u32 %v1127, 16
      %v1218 = vrot.slane %v1216, 4
      %v1219 = vshll.u32 %v1127, 16
      %v1221 = vrot.slane %v1219, 5
      %v1222 = vor.u32 %v1218, %v1221
      %v1223 = vrot.slane %v1222, 4
      %v1225 = vshll.u32 %v1128, 16
      %v1227 = vrot.slane %v1225, 5
      %v1228 = vsel %vm405, %v1223, %v1227
      %v1230 = vshrl.u32 %v1129, 16
      %v1232 = vrot.slane %v1230, 4
      %v1233 = vshll.u32 %v1129, 16
      %v1235 = vrot.slane %v1233, 5
      %v1236 = vor.u32 %v1232, %v1235
      %v1237 = vrot.slane %v1236, 4
      %v1239 = vshll.u32 %v1130, 16
      %v1241 = vrot.slane %v1239, 5
      %v1242 = vsel %vm405, %v1237, %v1241
      %s1243 = scalar_lea.vmem %s1, 256
      %v1244 = vld [vmem:[%s1243] sm:$0xf]
      %v1245 = vld [vmem:[%s1243 + $0x4] sm:$0xf]
      %v1246 = vld [vmem:[%s1243 + $0x8] sm:$0xf]
      %v1247 = vld [vmem:[%s1243 + $0xc] sm:$0xf]
      %v1248 = vld [vmem:[%s1243 + $0x10] sm:$0xf]
      %v1249 = vld [vmem:[%s1243 + $0x14] sm:$0xf]
      %v1250 = vld [vmem:[%s1243 + $0x18] sm:$0xf]
      %v1251 = vld [vmem:[%s1243 + $0x1c] sm:$0xf]
      %v1252 = vld [vmem:[%s1243 + $0x20] sm:$0xf]
      %v1253 = vld [vmem:[%s1243 + $0x24] sm:$0xf]
      %v1254 = vld [vmem:[%s1243 + $0x28] sm:$0xf]
      %v1255 = vld [vmem:[%s1243 + $0x2c] sm:$0xf]
      %v1256 = vld [vmem:[%s1243 + $0x30] sm:$0xf]
      %v1257 = vld [vmem:[%s1243 + $0x34] sm:$0xf]
      %v1258 = vld [vmem:[%s1243 + $0x38] sm:$0xf]
      %v1259 = vld [vmem:[%s1243 + $0x3c] sm:$0xf]
      %v1260 = vunpack.c.l.b16 %v1144
      %v1261 = vunpack.c.l.b16 %v1158
      %v1262 = vunpack.c.l.b16 %v1172
      %v1263 = vunpack.c.l.b16 %v1186
      %v1264 = vunpack.c.l.b16 %v1200
      %v1265 = vunpack.c.l.b16 %v1214
      %v1266 = vunpack.c.l.b16 %v1228
      %v1267 = vunpack.c.l.b16 %v1242
      %v1268 = vpack.c.b16 %v1261, %v1260
      %v1269 = vpack.c.b16 %v1263, %v1262
      %v1270 = vpack.c.b16 %v1265, %v1264
      %v1271 = vpack.c.b16 %v1267, %v1266
      %v1292 = vunpack.c.l.b16 %v1244
      %v1293 = vunpack.c.l.b16 %v1245
      %v1294 = vunpack.c.l.b16 %v1246
      %v1295 = vunpack.c.l.b16 %v1247
      %v1296 = vunpack.c.l.b16 %v1248
      %v1297 = vunpack.c.l.b16 %v1249
      %v1298 = vunpack.c.l.b16 %v1250
      %v1299 = vunpack.c.l.b16 %v1251
      %v1300 = vunpack.c.l.b16 %v1252
      %v1301 = vunpack.c.l.b16 %v1253
      %v1302 = vunpack.c.l.b16 %v1254
      %v1303 = vunpack.c.l.b16 %v1255
      %v1304 = vunpack.c.l.b16 %v1256
      %v1305 = vunpack.c.l.b16 %v1257
      %v1306 = vunpack.c.l.b16 %v1258
      %v1307 = vunpack.c.l.b16 %v1259
      %v1308 = vpack.c.b16 %v1293, %v1292
      %v1309 = vpack.c.b16 %v1295, %v1294
      %v1310 = vpack.c.b16 %v1297, %v1296
      %v1311 = vpack.c.b16 %v1299, %v1298
      %v1312 = vpack.c.b16 %v1301, %v1300
      %v1313 = vpack.c.b16 %v1303, %v1302
      %v1314 = vpack.c.b16 %v1305, %v1304
      %v1315 = vpack.c.b16 %v1307, %v1306
      %1324 = vmatprep.subr.bf16.mxu0 0
      %1325 = vmatpush1.bf16.msra.mxu0 %v1308
      %1326 = vmatprep.subr.bf16.mxu0 0
      %1327 = vmatpush1.bf16.msra.mxu0 %v1309
      %1328 = vmatprep.subr.bf16.mxu0 0
      %1329 = vmatpush1.bf16.msra.mxu0 %v1310
      %1330 = vmatprep.subr.bf16.mxu0 0
      %1331 = vmatpush1.bf16.msra.mxu0 %v1311
      %1332 = vmatprep.subr.bf16.mxu0 0
      %1333 = vmatpush1.bf16.msra.mxu0 %v1312
      %1334 = vmatprep.subr.bf16.mxu0 0
      %1335 = vmatpush1.bf16.msra.mxu0 %v1313
      %1336 = vmatprep.subr.bf16.mxu0 0
      %1337 = vmatpush1.bf16.msra.mxu0 %v1314
      %1338 = vmatprep.subr.bf16.mxu0 0
      %1339 = vmatpush1.bf16.msra.mxu0 %v1315
      %1340 = vmatprep.subr.bf16.mxu0 0
      %1341 = vmatpush1.bf16.msra.mxu0 0
      %1342 = vmatprep.subr.bf16.mxu0 0
      %1343 = vmatpush1.bf16.msra.mxu0 0
      %1344 = vmatprep.subr.bf16.mxu0 0
      %1345 = vmatpush1.bf16.msra.mxu0 0
      %1346 = vmatprep.subr.bf16.mxu0 0
      %1347 = vmatpush1.bf16.msra.mxu0 0
      %1348 = vmatprep.subr.bf16.mxu0 0
      %1349 = vmatpush1.bf16.msra.mxu0 0
      %1350 = vmatprep.subr.bf16.mxu0 0
      %1351 = vmatpush1.bf16.msra.mxu0 0
      %1352 = vmatprep.subr.bf16.mxu0 0
      %1353 = vmatpush1.bf16.msra.mxu0 0
      %1354 = vmatprep.subr.bf16.mxu0 0
      %1355 = vmatpush1.bf16.msra.mxu0 0
      %1356 = vmatprep.mubr.bf16.mxu0 0
      %1357 = vmatmul.mubr.bf16.gmra.mrb[0].mxu0 %v1268
      %v1358 = vpop.f32.mrb[0].mxu0
      %v1359 = vadd.f32 0.0, %v1358
      %v1360 = vpop.f32.mrb[0].mxu0
      %v1361 = vpop.f32.mrb[0].mxu0
      %v1362 = vadd.f32 0.0, %v1361
      %v1363 = vpop.f32.mrb[0].mxu0
      %1364 = vmatprep.mubr.bf16.mxu0 0
      %1365 = vmatmul.mubr.bf16.gmra.mrb[0].mxu0 %v1269
      %v1366 = vpop.f32.mrb[0].mxu0
      %v1367 = vadd.f32 0.0, %v1366
      %v1368 = vpop.f32.mrb[0].mxu0
      %v1369 = vpop.f32.mrb[0].mxu0
      %v1370 = vadd.f32 0.0, %v1369
      %v1371 = vpop.f32.mrb[0].mxu0
      %1372 = vmatprep.mubr.bf16.mxu0 0
      %1373 = vmatmul.mubr.bf16.gmra.mrb[0].mxu0 %v1270
      %v1374 = vpop.f32.mrb[0].mxu0
      %v1375 = vadd.f32 0.0, %v1374
      %v1376 = vpop.f32.mrb[0].mxu0
      %v1377 = vpop.f32.mrb[0].mxu0
      %v1378 = vadd.f32 0.0, %v1377
      %v1379 = vpop.f32.mrb[0].mxu0
      %1380 = vmatprep.mubr.bf16.mxu0 0
      %1381 = vmatmul.mubr.bf16.gmra.mrb[0].mxu0 %v1271
      %v1382 = vpop.f32.mrb[0].mxu0
      %v1383 = vadd.f32 0.0, %v1382
      %v1384 = vpop.f32.mrb[0].mxu0
      %v1385 = vpop.f32.mrb[0].mxu0
      %v1386 = vadd.f32 0.0, %v1385
      %v1387 = vpop.f32.mrb[0].mxu0
      %1388 = vdwg.mxu0
      %v1389 = vld [vmem:[#allocation2] sm:$0xff]
      %v1390 = vld [vmem:[#allocation2 + $0x8] sm:$0xff]
      %v1391 = vld [vmem:[#allocation2 + $0x10] sm:$0xff]
      %v1392 = vld [vmem:[#allocation2 + $0x18] sm:$0xff]
      %v1393 = vld [vmem:[#allocation2 + $0x20] sm:$0xff]
      %v1394 = vld [vmem:[#allocation2 + $0x28] sm:$0xff]
      %v1395 = vld [vmem:[#allocation2 + $0x30] sm:$0xff]
      %v1396 = vld [vmem:[#allocation2 + $0x38] sm:$0xff]
      %v1397 = vadd.f32 %v1389, %v1359
      %v1398 = vadd.f32 %v1390, %v1362
      %v1399 = vadd.f32 %v1391, %v1367
      %v1400 = vadd.f32 %v1392, %v1370
      %v1401 = vadd.f32 %v1393, %v1375
      %v1402 = vadd.f32 %v1394, %v1378
      %v1403 = vadd.f32 %v1395, %v1383
      %v1404 = vadd.f32 %v1396, %v1386
      %1405 = vst [vmem:[#allocation2] sm:$0xff] %v1397
      %1406 = vst [vmem:[#allocation2 + $0x8] sm:$0xff] %v1398
      %1407 = vst [vmem:[#allocation2 + $0x10] sm:$0xff] %v1399
      %1408 = vst [vmem:[#allocation2 + $0x18] sm:$0xff] %v1400
      %1409 = vst [vmem:[#allocation2 + $0x20] sm:$0xff] %v1401
      %1410 = vst [vmem:[#allocation2 + $0x28] sm:$0xff] %v1402
      %1411 = vst [vmem:[#allocation2 + $0x30] sm:$0xff] %v1403
      %1412 = vst [vmem:[#allocation2 + $0x38] sm:$0xff] %v1404
      %v1413 = vld [vmem:[%s928] sm:$0xe]
      %v1414 = vld [vmem:[%s928 + $0x4] sm:$0x1]
      %v1415 = vld [vmem:[%s928 + $0x8] sm:$0xe]
      %v1416 = vld [vmem:[%s928 + $0xc] sm:$0x1]
      %v1417 = vld [vmem:[%s928 + $0x10] sm:$0xe]
      %v1418 = vld [vmem:[%s928 + $0x14] sm:$0x1]
      %v1419 = vld [vmem:[%s928 + $0x18] sm:$0xe]
      %v1420 = vld [vmem:[%s928 + $0x1c] sm:$0x1]
      %v1421 = vld [vmem:[%s928 + $0x20] sm:$0xe]
      %v1422 = vld [vmem:[%s928 + $0x24] sm:$0x1]
      %v1423 = vld [vmem:[%s928 + $0x28] sm:$0xe]
      %v1424 = vld [vmem:[%s928 + $0x2c] sm:$0x1]
      %v1425 = vld [vmem:[%s928 + $0x30] sm:$0xe]
      %v1426 = vld [vmem:[%s928 + $0x34] sm:$0x1]
      %v1427 = vld [vmem:[%s928 + $0x38] sm:$0xe]
      %v1428 = vld [vmem:[%s928 + $0x3c] sm:$0x1]
      %v1445 = vrot.slane %v1413, 5
      %v1446 = vrot.slane %v1445, 4
      %v1447 = vrot.slane %v1414, 5
      %v1448 = vsel %vm722, %v1446, %v1447
      %v1449 = vrot.slane %v1415, 5
      %v1450 = vrot.slane %v1449, 4
      %v1451 = vrot.slane %v1416, 5
      %v1452 = vsel %vm722, %v1450, %v1451
      %v1453 = vrot.slane %v1417, 5
      %v1454 = vrot.slane %v1453, 4
      %v1455 = vrot.slane %v1418, 5
      %v1456 = vsel %vm722, %v1454, %v1455
      %v1457 = vrot.slane %v1419, 5
      %v1458 = vrot.slane %v1457, 4
      %v1459 = vrot.slane %v1420, 5
      %v1460 = vsel %vm722, %v1458, %v1459
      %v1461 = vrot.slane %v1421, 5
      %v1462 = vrot.slane %v1461, 4
      %v1463 = vrot.slane %v1422, 5
      %v1464 = vsel %vm722, %v1462, %v1463
      %v1465 = vrot.slane %v1423, 5
      %v1466 = vrot.slane %v1465, 4
      %v1467 = vrot.slane %v1424, 5
      %v1468 = vsel %vm722, %v1466, %v1467
      %v1469 = vrot.slane %v1425, 5
      %v1470 = vrot.slane %v1469, 4
      %v1471 = vrot.slane %v1426, 5
      %v1472 = vsel %vm722, %v1470, %v1471
      %v1473 = vrot.slane %v1427, 5
      %v1474 = vrot.slane %v1473, 4
      %v1475 = vrot.slane %v1428, 5
      %v1476 = vsel %vm722, %v1474, %v1475
      %s1477 = scalar_lea.vmem %s1, 320
      %v1478 = vld [vmem:[%s1477] sm:$0xf]
      %v1479 = vld [vmem:[%s1477 + $0x4] sm:$0xf]
      %v1480 = vld [vmem:[%s1477 + $0x8] sm:$0xf]
      %v1481 = vld [vmem:[%s1477 + $0xc] sm:$0xf]
      %v1482 = vld [vmem:[%s1477 + $0x10] sm:$0xf]
      %v1483 = vld [vmem:[%s1477 + $0x14] sm:$0xf]
      %v1484 = vld [vmem:[%s1477 + $0x18] sm:$0xf]
      %v1485 = vld [vmem:[%s1477 + $0x1c] sm:$0xf]
      %v1486 = vld [vmem:[%s1477 + $0x20] sm:$0xf]
      %v1487 = vld [vmem:[%s1477 + $0x24] sm:$0xf]
      %v1488 = vld [vmem:[%s1477 + $0x28] sm:$0xf]
      %v1489 = vld [vmem:[%s1477 + $0x2c] sm:$0xf]
      %v1490 = vld [vmem:[%s1477 + $0x30] sm:$0xf]
      %v1491 = vld [vmem:[%s1477 + $0x34] sm:$0xf]
      %v1492 = vld [vmem:[%s1477 + $0x38] sm:$0xf]
      %v1493 = vld [vmem:[%s1477 + $0x3c] sm:$0xf]
      %v1494 = vunpack.c.l.b16 %v1448
      %v1495 = vunpack.c.l.b16 %v1452
      %v1496 = vunpack.c.l.b16 %v1456
      %v1497 = vunpack.c.l.b16 %v1460
      %v1498 = vunpack.c.l.b16 %v1464
      %v1499 = vunpack.c.l.b16 %v1468
      %v1500 = vunpack.c.l.b16 %v1472
      %v1501 = vunpack.c.l.b16 %v1476
      %v1502 = vpack.c.b16 %v1495, %v1494
      %v1503 = vpack.c.b16 %v1497, %v1496
      %v1504 = vpack.c.b16 %v1499, %v1498
      %v1505 = vpack.c.b16 %v1501, %v1500
      %v1526 = vunpack.c.l.b16 %v1478
      %v1527 = vunpack.c.l.b16 %v1479
      %v1528 = vunpack.c.l.b16 %v1480
      %v1529 = vunpack.c.l.b16 %v1481
      %v1530 = vunpack.c.l.b16 %v1482
      %v1531 = vunpack.c.l.b16 %v1483
      %v1532 = vunpack.c.l.b16 %v1484
      %v1533 = vunpack.c.l.b16 %v1485
      %v1534 = vunpack.c.l.b16 %v1486
      %v1535 = vunpack.c.l.b16 %v1487
      %v1536 = vunpack.c.l.b16 %v1488
      %v1537 = vunpack.c.l.b16 %v1489
      %v1538 = vunpack.c.l.b16 %v1490
      %v1539 = vunpack.c.l.b16 %v1491
      %v1540 = vunpack.c.l.b16 %v1492
      %v1541 = vunpack.c.l.b16 %v1493
      %v1542 = vpack.c.b16 %v1527, %v1526
      %v1543 = vpack.c.b16 %v1529, %v1528
      %v1544 = vpack.c.b16 %v1531, %v1530
      %v1545 = vpack.c.b16 %v1533, %v1532
      %v1546 = vpack.c.b16 %v1535, %v1534
      %v1547 = vpack.c.b16 %v1537, %v1536
      %v1548 = vpack.c.b16 %v1539, %v1538
      %v1549 = vpack.c.b16 %v1541, %v1540
      %1558 = vmatprep.subr.bf16.mxu0 0
      %1559 = vmatpush1.bf16.msra.mxu0 %v1542
      %1560 = vmatprep.subr.bf16.mxu0 0
      %1561 = vmatpush1.bf16.msra.mxu0 %v1543
      %1562 = vmatprep.subr.bf16.mxu0 0
      %1563 = vmatpush1.bf16.msra.mxu0 %v1544
      %1564 = vmatprep.subr.bf16.mxu0 0
      %1565 = vmatpush1.bf16.msra.mxu0 %v1545
      %1566 = vmatprep.subr.bf16.mxu0 0
      %1567 = vmatpush1.bf16.msra.mxu0 %v1546
      %1568 = vmatprep.subr.bf16.mxu0 0
      %1569 = vmatpush1.bf16.msra.mxu0 %v1547
      %1570 = vmatprep.subr.bf16.mxu0 0
      %1571 = vmatpush1.bf16.msra.mxu0 %v1548
      %1572 = vmatprep.subr.bf16.mxu0 0
      %1573 = vmatpush1.bf16.msra.mxu0 %v1549
      %1574 = vmatprep.subr.bf16.mxu0 0
      %1575 = vmatpush1.bf16.msra.mxu0 0
      %1576 = vmatprep.subr.bf16.mxu0 0
      %1577 = vmatpush1.bf16.msra.mxu0 0
      %1578 = vmatprep.subr.bf16.mxu0 0
      %1579 = vmatpush1.bf16.msra.mxu0 0
      %1580 = vmatprep.subr.bf16.mxu0 0
      %1581 = vmatpush1.bf16.msra.mxu0 0
      %1582 = vmatprep.subr.bf16.mxu0 0
      %1583 = vmatpush1.bf16.msra.mxu0 0
      %1584 = vmatprep.subr.bf16.mxu0 0
      %1585 = vmatpush1.bf16.msra.mxu0 0
      %1586 = vmatprep.subr.bf16.mxu0 0
      %1587 = vmatpush1.bf16.msra.mxu0 0
      %1588 = vmatprep.subr.bf16.mxu0 0
      %1589 = vmatpush1.bf16.msra.mxu0 0
      %1590 = vmatprep.mubr.bf16.mxu0 0
      %1591 = vmatmul.mubr.bf16.gmra.mrb[0].mxu0 %v1502
      %v1592 = vpop.f32.mrb[0].mxu0
      %v1593 = vadd.f32 0.0, %v1592
      %v1594 = vpop.f32.mrb[0].mxu0
      %v1595 = vpop.f32.mrb[0].mxu0
      %v1596 = vadd.f32 0.0, %v1595
      %v1597 = vpop.f32.mrb[0].mxu0
      %1598 = vmatprep.mubr.bf16.mxu0 0
      %1599 = vmatmul.mubr.bf16.gmra.mrb[0].mxu0 %v1503
      %v1600 = vpop.f32.mrb[0].mxu0
      %v1601 = vadd.f32 0.0, %v1600
      %v1602 = vpop.f32.mrb[0].mxu0
      %v1603 = vpop.f32.mrb[0].mxu0
      %v1604 = vadd.f32 0.0, %v1603
      %v1605 = vpop.f32.mrb[0].mxu0
      %1606 = vmatprep.mubr.bf16.mxu0 0
      %1607 = vmatmul.mubr.bf16.gmra.mrb[0].mxu0 %v1504
      %v1608 = vpop.f32.mrb[0].mxu0
      %v1609 = vadd.f32 0.0, %v1608
      %v1610 = vpop.f32.mrb[0].mxu0
      %v1611 = vpop.f32.mrb[0].mxu0
      %v1612 = vadd.f32 0.0, %v1611
      %v1613 = vpop.f32.mrb[0].mxu0
      %1614 = vmatprep.mubr.bf16.mxu0 0
      %1615 = vmatmul.mubr.bf16.gmra.mrb[0].mxu0 %v1505
      %v1616 = vpop.f32.mrb[0].mxu0
      %v1617 = vadd.f32 0.0, %v1616
      %v1618 = vpop.f32.mrb[0].mxu0
      %v1619 = vpop.f32.mrb[0].mxu0
      %v1620 = vadd.f32 0.0, %v1619
      %v1621 = vpop.f32.mrb[0].mxu0
      %1622 = vdwg.mxu0
      %v1623 = vld [vmem:[#allocation2] sm:$0xff]
      %v1624 = vld [vmem:[#allocation2 + $0x8] sm:$0xff]
      %v1625 = vld [vmem:[#allocation2 + $0x10] sm:$0xff]
      %v1626 = vld [vmem:[#allocation2 + $0x18] sm:$0xff]
      %v1627 = vld [vmem:[#allocation2 + $0x20] sm:$0xff]
      %v1628 = vld [vmem:[#allocation2 + $0x28] sm:$0xff]
      %v1629 = vld [vmem:[#allocation2 + $0x30] sm:$0xff]
      %v1630 = vld [vmem:[#allocation2 + $0x38] sm:$0xff]
      %v1631 = vadd.f32 %v1623, %v1593
      %v1632 = vadd.f32 %v1624, %v1596
      %v1633 = vadd.f32 %v1625, %v1601
      %v1634 = vadd.f32 %v1626, %v1604
      %v1635 = vadd.f32 %v1627, %v1609
      %v1636 = vadd.f32 %v1628, %v1612
      %v1637 = vadd.f32 %v1629, %v1617
      %v1638 = vadd.f32 %v1630, %v1620
      %1639 = vst [vmem:[#allocation2] sm:$0xff] %v1631
      %1640 = vst [vmem:[#allocation2 + $0x8] sm:$0xff] %v1632
      %1641 = vst [vmem:[#allocation2 + $0x10] sm:$0xff] %v1633
      %1642 = vst [vmem:[#allocation2 + $0x18] sm:$0xff] %v1634
      %1643 = vst [vmem:[#allocation2 + $0x20] sm:$0xff] %v1635
      %1644 = vst [vmem:[#allocation2 + $0x28] sm:$0xff] %v1636
      %1645 = vst [vmem:[#allocation2 + $0x30] sm:$0xff] %v1637
      %1646 = vst [vmem:[#allocation2 + $0x38] sm:$0xff] %v1638
      %s1647 = sadd.s32 %s214, 2
      %s1648 = smul.u32 %s1647, 2
      %s1649 = smul.addr %s1648, 4
      %s1650 = scalar_lea.vmem %s195, %s1649
      %v1651 = vld [vmem:[%s1650] sm:$0xf]
      %v1652 = vld [vmem:[%s1650 + $0x8] sm:$0xf]
      %v1653 = vld [vmem:[%s1650 + $0x10] sm:$0xf]
      %v1654 = vld [vmem:[%s1650 + $0x18] sm:$0xf]
      %v1655 = vld [vmem:[%s1650 + $0x20] sm:$0xf]
      %v1656 = vld [vmem:[%s1650 + $0x28] sm:$0xf]
      %v1657 = vld [vmem:[%s1650 + $0x30] sm:$0xf]
      %v1658 = vld [vmem:[%s1650 + $0x38] sm:$0xf]
      %s1659 = scalar_lea.vmem %s1, 384
      %v1660 = vld [vmem:[%s1659] sm:$0xf]
      %v1661 = vld [vmem:[%s1659 + $0x4] sm:$0xf]
      %v1662 = vld [vmem:[%s1659 + $0x8] sm:$0xf]
      %v1663 = vld [vmem:[%s1659 + $0xc] sm:$0xf]
      %v1664 = vld [vmem:[%s1659 + $0x10] sm:$0xf]
      %v1665 = vld [vmem:[%s1659 + $0x14] sm:$0xf]
      %v1666 = vld [vmem:[%s1659 + $0x18] sm:$0xf]
      %v1667 = vld [vmem:[%s1659 + $0x1c] sm:$0xf]
      %v1668 = vld [vmem:[%s1659 + $0x20] sm:$0xf]
      %v1669 = vld [vmem:[%s1659 + $0x24] sm:$0xf]
      %v1670 = vld [vmem:[%s1659 + $0x28] sm:$0xf]
      %v1671 = vld [vmem:[%s1659 + $0x2c] sm:$0xf]
      %v1672 = vld [vmem:[%s1659 + $0x30] sm:$0xf]
      %v1673 = vld [vmem:[%s1659 + $0x34] sm:$0xf]
      %v1674 = vld [vmem:[%s1659 + $0x38] sm:$0xf]
      %v1675 = vld [vmem:[%s1659 + $0x3c] sm:$0xf]
      %v1684 = vunpack.c.l.b16 %v1651
      %v1685 = vunpack.c.l.b16 %v1652
      %v1686 = vunpack.c.l.b16 %v1653
      %v1687 = vunpack.c.l.b16 %v1654
      %v1688 = vunpack.c.l.b16 %v1655
      %v1689 = vunpack.c.l.b16 %v1656
      %v1690 = vunpack.c.l.b16 %v1657
      %v1691 = vunpack.c.l.b16 %v1658
      %v1692 = vpack.c.b16 %v1685, %v1684
      %v1693 = vpack.c.b16 %v1687, %v1686
      %v1694 = vpack.c.b16 %v1689, %v1688
      %v1695 = vpack.c.b16 %v1691, %v1690
      %v1716 = vunpack.c.l.b16 %v1660
      %v1717 = vunpack.c.l.b16 %v1661
      %v1718 = vunpack.c.l.b16 %v1662
      %v1719 = vunpack.c.l.b16 %v1663
      %v1720 = vunpack.c.l.b16 %v1664
      %v1721 = vunpack.c.l.b16 %v1665
      %v1722 = vunpack.c.l.b16 %v1666
      %v1723 = vunpack.c.l.b16 %v1667
      %v1724 = vunpack.c.l.b16 %v1668
      %v1725 = vunpack.c.l.b16 %v1669
      %v1726 = vunpack.c.l.b16 %v1670
      %v1727 = vunpack.c.l.b16 %v1671
      %v1728 = vunpack.c.l.b16 %v1672
      %v1729 = vunpack.c.l.b16 %v1673
      %v1730 = vunpack.c.l.b16 %v1674
      %v1731 = vunpack.c.l.b16 %v1675
      %v1732 = vpack.c.b16 %v1717, %v1716
      %v1733 = vpack.c.b16 %v1719, %v1718
      %v1734 = vpack.c.b16 %v1721, %v1720
      %v1735 = vpack.c.b16 %v1723, %v1722
      %v1736 = vpack.c.b16 %v1725, %v1724
      %v1737 = vpack.c.b16 %v1727, %v1726
      %v1738 = vpack.c.b16 %v1729, %v1728
      %v1739 = vpack.c.b16 %v1731, %v1730
      %1748 = vmatprep.subr.bf16.mxu0 0
      %1749 = vmatpush1.bf16.msra.mxu0 %v1732
      %1750 = vmatprep.subr.bf16.mxu0 0
      %1751 = vmatpush1.bf16.msra.mxu0 %v1733
      %1752 = vmatprep.subr.bf16.mxu0 0
      %1753 = vmatpush1.bf16.msra.mxu0 %v1734
      %1754 = vmatprep.subr.bf16.mxu0 0
      %1755 = vmatpush1.bf16.msra.mxu0 %v1735
      %1756 = vmatprep.subr.bf16.mxu0 0
      %1757 = vmatpush1.bf16.msra.mxu0 %v1736
      %1758 = vmatprep.subr.bf16.mxu0 0
      %1759 = vmatpush1.bf16.msra.mxu0 %v1737
      %1760 = vmatprep.subr.bf16.mxu0 0
      %1761 = vmatpush1.bf16.msra.mxu0 %v1738
      %1762 = vmatprep.subr.bf16.mxu0 0
      %1763 = vmatpush1.bf16.msra.mxu0 %v1739
      %1764 = vmatprep.subr.bf16.mxu0 0
      %1765 = vmatpush1.bf16.msra.mxu0 0
      %1766 = vmatprep.subr.bf16.mxu0 0
      %1767 = vmatpush1.bf16.msra.mxu0 0
      %1768 = vmatprep.subr.bf16.mxu0 0
      %1769 = vmatpush1.bf16.msra.mxu0 0
      %1770 = vmatprep.subr.bf16.mxu0 0
      %1771 = vmatpush1.bf16.msra.mxu0 0
      %1772 = vmatprep.subr.bf16.mxu0 0
      %1773 = vmatpush1.bf16.msra.mxu0 0
      %1774 = vmatprep.subr.bf16.mxu0 0
      %1775 = vmatpush1.bf16.msra.mxu0 0
      %1776 = vmatprep.subr.bf16.mxu0 0
      %1777 = vmatpush1.bf16.msra.mxu0 0
      %1778 = vmatprep.subr.bf16.mxu0 0
      %1779 = vmatpush1.bf16.msra.mxu0 0
      %1780 = vmatprep.mubr.bf16.mxu0 0
      %1781 = vmatmul.mubr.bf16.gmra.mrb[0].mxu0 %v1692
      %v1782 = vpop.f32.mrb[0].mxu0
      %v1783 = vadd.f32 0.0, %v1782
      %v1784 = vpop.f32.mrb[0].mxu0
      %v1785 = vpop.f32.mrb[0].mxu0
      %v1786 = vadd.f32 0.0, %v1785
      %v1787 = vpop.f32.mrb[0].mxu0
      %1788 = vmatprep.mubr.bf16.mxu0 0
      %1789 = vmatmul.mubr.bf16.gmra.mrb[0].mxu0 %v1693
      %v1790 = vpop.f32.mrb[0].mxu0
      %v1791 = vadd.f32 0.0, %v1790
      %v1792 = vpop.f32.mrb[0].mxu0
      %v1793 = vpop.f32.mrb[0].mxu0
      %v1794 = vadd.f32 0.0, %v1793
      %v1795 = vpop.f32.mrb[0].mxu0
      %1796 = vmatprep.mubr.bf16.mxu0 0
      %1797 = vmatmul.mubr.bf16.gmra.mrb[0].mxu0 %v1694
      %v1798 = vpop.f32.mrb[0].mxu0
      %v1799 = vadd.f32 0.0, %v1798
      %v1800 = vpop.f32.mrb[0].mxu0
      %v1801 = vpop.f32.mrb[0].mxu0
      %v1802 = vadd.f32 0.0, %v1801
      %v1803 = vpop.f32.mrb[0].mxu0
      %1804 = vmatprep.mubr.bf16.mxu0 0
      %1805 = vmatmul.mubr.bf16.gmra.mrb[0].mxu0 %v1695
      %v1806 = vpop.f32.mrb[0].mxu0
      %v1807 = vadd.f32 0.0, %v1806
      %v1808 = vpop.f32.mrb[0].mxu0
      %v1809 = vpop.f32.mrb[0].mxu0
      %v1810 = vadd.f32 0.0, %v1809
      %v1811 = vpop.f32.mrb[0].mxu0
      %1812 = vdwg.mxu0
      %v1813 = vld [vmem:[#allocation2] sm:$0xff]
      %v1814 = vld [vmem:[#allocation2 + $0x8] sm:$0xff]
      %v1815 = vld [vmem:[#allocation2 + $0x10] sm:$0xff]
      %v1816 = vld [vmem:[#allocation2 + $0x18] sm:$0xff]
      %v1817 = vld [vmem:[#allocation2 + $0x20] sm:$0xff]
      %v1818 = vld [vmem:[#allocation2 + $0x28] sm:$0xff]
      %v1819 = vld [vmem:[#allocation2 + $0x30] sm:$0xff]
      %v1820 = vld [vmem:[#allocation2 + $0x38] sm:$0xff]
      %v1821 = vadd.f32 %v1813, %v1783
      %v1822 = vadd.f32 %v1814, %v1786
      %v1823 = vadd.f32 %v1815, %v1791
      %v1824 = vadd.f32 %v1816, %v1794
      %v1825 = vadd.f32 %v1817, %v1799
      %v1826 = vadd.f32 %v1818, %v1802
      %v1827 = vadd.f32 %v1819, %v1807
      %v1828 = vadd.f32 %v1820, %v1810
      %1829 = vst [vmem:[#allocation2] sm:$0xff] %v1821
      %1830 = vst [vmem:[#allocation2 + $0x8] sm:$0xff] %v1822
      %1831 = vst [vmem:[#allocation2 + $0x10] sm:$0xff] %v1823
      %1832 = vst [vmem:[#allocation2 + $0x18] sm:$0xff] %v1824
      %1833 = vst [vmem:[#allocation2 + $0x20] sm:$0xff] %v1825
      %1834 = vst [vmem:[#allocation2 + $0x28] sm:$0xff] %v1826
      %1835 = vst [vmem:[#allocation2 + $0x30] sm:$0xff] %v1827
      %1836 = vst [vmem:[#allocation2 + $0x38] sm:$0xff] %v1828
      %v1837 = vld [vmem:[%s1650] sm:$0xf]
      %v1838 = vld [vmem:[%s1650 + $0x4] sm:$0x1]
      %v1839 = vld [vmem:[%s1650 + $0x8] sm:$0xf]
      %v1840 = vld [vmem:[%s1650 + $0xc] sm:$0x1]
      %v1841 = vld [vmem:[%s1650 + $0x10] sm:$0xf]
      %v1842 = vld [vmem:[%s1650 + $0x14] sm:$0x1]
      %v1843 = vld [vmem:[%s1650 + $0x18] sm:$0xf]
      %v1844 = vld [vmem:[%s1650 + $0x1c] sm:$0x1]
      %v1845 = vld [vmem:[%s1650 + $0x20] sm:$0xf]
      %v1846 = vld [vmem:[%s1650 + $0x24] sm:$0x1]
      %v1847 = vld [vmem:[%s1650 + $0x28] sm:$0xf]
      %v1848 = vld [vmem:[%s1650 + $0x2c] sm:$0x1]
      %v1849 = vld [vmem:[%s1650 + $0x30] sm:$0xf]
      %v1850 = vld [vmem:[%s1650 + $0x34] sm:$0x1]
      %v1851 = vld [vmem:[%s1650 + $0x38] sm:$0xf]
      %v1852 = vld [vmem:[%s1650 + $0x3c] sm:$0x1]
      %v1854 = vshrl.u32 %v1837, 16
      %v1856 = vrot.slane %v1854, 4
      %v1857 = vshll.u32 %v1837, 16
      %v1859 = vrot.slane %v1857, 5
      %v1860 = vor.u32 %v1856, %v1859
      %v1861 = vrot.slane %v1860, 4
      %v1863 = vshll.u32 %v1838, 16
      %v1865 = vrot.slane %v1863, 5
      %v1866 = vsel %vm405, %v1861, %v1865
      %v1868 = vshrl.u32 %v1839, 16
      %v1870 = vrot.slane %v1868, 4
      %v1871 = vshll.u32 %v1839, 16
      %v1873 = vrot.slane %v1871, 5
      %v1874 = vor.u32 %v1870, %v1873
      %v1875 = vrot.slane %v1874, 4
      %v1877 = vshll.u32 %v1840, 16
      %v1879 = vrot.slane %v1877, 5
      %v1880 = vsel %vm405, %v1875, %v1879
      %v1882 = vshrl.u32 %v1841, 16
      %v1884 = vrot.slane %v1882, 4
      %v1885 = vshll.u32 %v1841, 16
      %v1887 = vrot.slane %v1885, 5
      %v1888 = vor.u32 %v1884, %v1887
      %v1889 = vrot.slane %v1888, 4
      %v1891 = vshll.u32 %v1842, 16
      %v1893 = vrot.slane %v1891, 5
      %v1894 = vsel %vm405, %v1889, %v1893
      %v1896 = vshrl.u32 %v1843, 16
      %v1898 = vrot.slane %v1896, 4
      %v1899 = vshll.u32 %v1843, 16
      %v1901 = vrot.slane %v1899, 5
      %v1902 = vor.u32 %v1898, %v1901
      %v1903 = vrot.slane %v1902, 4
      %v1905 = vshll.u32 %v1844, 16
      %v1907 = vrot.slane %v1905, 5
      %v1908 = vsel %vm405, %v1903, %v1907
      %v1910 = vshrl.u32 %v1845, 16
      %v1912 = vrot.slane %v1910, 4
      %v1913 = vshll.u32 %v1845, 16
      %v1915 = vrot.slane %v1913, 5
      %v1916 = vor.u32 %v1912, %v1915
      %v1917 = vrot.slane %v1916, 4
      %v1919 = vshll.u32 %v1846, 16
      %v1921 = vrot.slane %v1919, 5
      %v1922 = vsel %vm405, %v1917, %v1921
      %v1924 = vshrl.u32 %v1847, 16
      %v1926 = vrot.slane %v1924, 4
      %v1927 = vshll.u32 %v1847, 16
      %v1929 = vrot.slane %v1927, 5
      %v1930 = vor.u32 %v1926, %v1929
      %v1931 = vrot.slane %v1930, 4
      %v1933 = vshll.u32 %v1848, 16
      %v1935 = vrot.slane %v1933, 5
      %v1936 = vsel %vm405, %v1931, %v1935
      %v1938 = vshrl.u32 %v1849, 16
      %v1940 = vrot.slane %v1938, 4
      %v1941 = vshll.u32 %v1849, 16
      %v1943 = vrot.slane %v1941, 5
      %v1944 = vor.u32 %v1940, %v1943
      %v1945 = vrot.slane %v1944, 4
      %v1947 = vshll.u32 %v1850, 16
      %v1949 = vrot.slane %v1947, 5
      %v1950 = vsel %vm405, %v1945, %v1949
      %v1952 = vshrl.u32 %v1851, 16
      %v1954 = vrot.slane %v1952, 4
      %v1955 = vshll.u32 %v1851, 16
      %v1957 = vrot.slane %v1955, 5
      %v1958 = vor.u32 %v1954, %v1957
      %v1959 = vrot.slane %v1958, 4
      %v1961 = vshll.u32 %v1852, 16
      %v1963 = vrot.slane %v1961, 5
      %v1964 = vsel %vm405, %v1959, %v1963
      %s1965 = scalar_lea.vmem %s1, 448
      %v1966 = vld [vmem:[%s1965] sm:$0xf]
      %v1967 = vld [vmem:[%s1965 + $0x4] sm:$0xf]
      %v1968 = vld [vmem:[%s1965 + $0x8] sm:$0xf]
      %v1969 = vld [vmem:[%s1965 + $0xc] sm:$0xf]
      %v1970 = vld [vmem:[%s1965 + $0x10] sm:$0xf]
      %v1971 = vld [vmem:[%s1965 + $0x14] sm:$0xf]
      %v1972 = vld [vmem:[%s1965 + $0x18] sm:$0xf]
      %v1973 = vld [vmem:[%s1965 + $0x1c] sm:$0xf]
      %v1974 = vld [vmem:[%s1965 + $0x20] sm:$0xf]
      %v1975 = vld [vmem:[%s1965 + $0x24] sm:$0xf]
      %v1976 = vld [vmem:[%s1965 + $0x28] sm:$0xf]
      %v1977 = vld [vmem:[%s1965 + $0x2c] sm:$0xf]
      %v1978 = vld [vmem:[%s1965 + $0x30] sm:$0xf]
      %v1979 = vld [vmem:[%s1965 + $0x34] sm:$0xf]
      %v1980 = vld [vmem:[%s1965 + $0x38] sm:$0xf]
      %v1981 = vld [vmem:[%s1965 + $0x3c] sm:$0xf]
      %v1982 = vunpack.c.l.b16 %v1866
      %v1983 = vunpack.c.l.b16 %v1880
      %v1984 = vunpack.c.l.b16 %v1894
      %v1985 = vunpack.c.l.b16 %v1908
      %v1986 = vunpack.c.l.b16 %v1922
      %v1987 = vunpack.c.l.b16 %v1936
      %v1988 = vunpack.c.l.b16 %v1950
      %v1989 = vunpack.c.l.b16 %v1964
      %v1990 = vpack.c.b16 %v1983, %v1982
      %v1991 = vpack.c.b16 %v1985, %v1984
      %v1992 = vpack.c.b16 %v1987, %v1986
      %v1993 = vpack.c.b16 %v1989, %v1988
      %v2014 = vunpack.c.l.b16 %v1966
      %v2015 = vunpack.c.l.b16 %v1967
      %v2016 = vunpack.c.l.b16 %v1968
      %v2017 = vunpack.c.l.b16 %v1969
      %v2018 = vunpack.c.l.b16 %v1970
      %v2019 = vunpack.c.l.b16 %v1971
      %v2020 = vunpack.c.l.b16 %v1972
      %v2021 = vunpack.c.l.b16 %v1973
      %v2022 = vunpack.c.l.b16 %v1974
      %v2023 = vunpack.c.l.b16 %v1975
      %v2024 = vunpack.c.l.b16 %v1976
      %v2025 = vunpack.c.l.b16 %v1977
      %v2026 = vunpack.c.l.b16 %v1978
      %v2027 = vunpack.c.l.b16 %v1979
      %v2028 = vunpack.c.l.b16 %v1980
      %v2029 = vunpack.c.l.b16 %v1981
      %v2030 = vpack.c.b16 %v2015, %v2014
      %v2031 = vpack.c.b16 %v2017, %v2016
      %v2032 = vpack.c.b16 %v2019, %v2018
      %v2033 = vpack.c.b16 %v2021, %v2020
      %v2034 = vpack.c.b16 %v2023, %v2022
      %v2035 = vpack.c.b16 %v2025, %v2024
      %v2036 = vpack.c.b16 %v2027, %v2026
      %v2037 = vpack.c.b16 %v2029, %v2028
      %2046 = vmatprep.subr.bf16.mxu0 0
      %2047 = vmatpush1.bf16.msra.mxu0 %v2030
      %2048 = vmatprep.subr.bf16.mxu0 0
      %2049 = vmatpush1.bf16.msra.mxu0 %v2031
      %2050 = vmatprep.subr.bf16.mxu0 0
      %2051 = vmatpush1.bf16.msra.mxu0 %v2032
      %2052 = vmatprep.subr.bf16.mxu0 0
      %2053 = vmatpush1.bf16.msra.mxu0 %v2033
      %2054 = vmatprep.subr.bf16.mxu0 0
      %2055 = vmatpush1.bf16.msra.mxu0 %v2034
      %2056 = vmatprep.subr.bf16.mxu0 0
      %2057 = vmatpush1.bf16.msra.mxu0 %v2035
      %2058 = vmatprep.subr.bf16.mxu0 0
      %2059 = vmatpush1.bf16.msra.mxu0 %v2036
      %2060 = vmatprep.subr.bf16.mxu0 0
      %2061 = vmatpush1.bf16.msra.mxu0 %v2037
      %2062 = vmatprep.subr.bf16.mxu0 0
      %2063 = vmatpush1.bf16.msra.mxu0 0
      %2064 = vmatprep.subr.bf16.mxu0 0
      %2065 = vmatpush1.bf16.msra.mxu0 0
      %2066 = vmatprep.subr.bf16.mxu0 0
      %2067 = vmatpush1.bf16.msra.mxu0 0
      %2068 = vmatprep.subr.bf16.mxu0 0
      %2069 = vmatpush1.bf16.msra.mxu0 0
      %2070 = vmatprep.subr.bf16.mxu0 0
      %2071 = vmatpush1.bf16.msra.mxu0 0
      %2072 = vmatprep.subr.bf16.mxu0 0
      %2073 = vmatpush1.bf16.msra.mxu0 0
      %2074 = vmatprep.subr.bf16.mxu0 0
      %2075 = vmatpush1.bf16.msra.mxu0 0
      %2076 = vmatprep.subr.bf16.mxu0 0
      %2077 = vmatpush1.bf16.msra.mxu0 0
      %2078 = vmatprep.mubr.bf16.mxu0 0
      %2079 = vmatmul.mubr.bf16.gmra.mrb[0].mxu0 %v1990
      %v2080 = vpop.f32.mrb[0].mxu0
      %v2081 = vadd.f32 0.0, %v2080
      %v2082 = vpop.f32.mrb[0].mxu0
      %v2083 = vpop.f32.mrb[0].mxu0
      %v2084 = vadd.f32 0.0, %v2083
      %v2085 = vpop.f32.mrb[0].mxu0
      %2086 = vmatprep.mubr.bf16.mxu0 0
      %2087 = vmatmul.mubr.bf16.gmra.mrb[0].mxu0 %v1991
      %v2088 = vpop.f32.mrb[0].mxu0
      %v2089 = vadd.f32 0.0, %v2088
      %v2090 = vpop.f32.mrb[0].mxu0
      %v2091 = vpop.f32.mrb[0].mxu0
      %v2092 = vadd.f32 0.0, %v2091
      %v2093 = vpop.f32.mrb[0].mxu0
      %2094 = vmatprep.mubr.bf16.mxu0 0
      %2095 = vmatmul.mubr.bf16.gmra.mrb[0].mxu0 %v1992
      %v2096 = vpop.f32.mrb[0].mxu0
      %v2097 = vadd.f32 0.0, %v2096
      %v2098 = vpop.f32.mrb[0].mxu0
      %v2099 = vpop.f32.mrb[0].mxu0
      %v2100 = vadd.f32 0.0, %v2099
      %v2101 = vpop.f32.mrb[0].mxu0
      %2102 = vmatprep.mubr.bf16.mxu0 0
      %2103 = vmatmul.mubr.bf16.gmra.mrb[0].mxu0 %v1993
      %v2104 = vpop.f32.mrb[0].mxu0
      %v2105 = vadd.f32 0.0, %v2104
      %v2106 = vpop.f32.mrb[0].mxu0
      %v2107 = vpop.f32.mrb[0].mxu0
      %v2108 = vadd.f32 0.0, %v2107
      %v2109 = vpop.f32.mrb[0].mxu0
      %2110 = vdwg.mxu0
      %v2111 = vld [vmem:[#allocation2] sm:$0xff]
      %v2112 = vld [vmem:[#allocation2 + $0x8] sm:$0xff]
      %v2113 = vld [vmem:[#allocation2 + $0x10] sm:$0xff]
      %v2114 = vld [vmem:[#allocation2 + $0x18] sm:$0xff]
      %v2115 = vld [vmem:[#allocation2 + $0x20] sm:$0xff]
      %v2116 = vld [vmem:[#allocation2 + $0x28] sm:$0xff]
      %v2117 = vld [vmem:[#allocation2 + $0x30] sm:$0xff]
      %v2118 = vld [vmem:[#allocation2 + $0x38] sm:$0xff]
      %v2119 = vadd.f32 %v2111, %v2081
      %v2120 = vadd.f32 %v2112, %v2084
      %v2121 = vadd.f32 %v2113, %v2089
      %v2122 = vadd.f32 %v2114, %v2092
      %v2123 = vadd.f32 %v2115, %v2097
      %v2124 = vadd.f32 %v2116, %v2100
      %v2125 = vadd.f32 %v2117, %v2105
      %v2126 = vadd.f32 %v2118, %v2108
      %2127 = vst [vmem:[#allocation2] sm:$0xff] %v2119
      %2128 = vst [vmem:[#allocation2 + $0x8] sm:$0xff] %v2120
      %2129 = vst [vmem:[#allocation2 + $0x10] sm:$0xff] %v2121
      %2130 = vst [vmem:[#allocation2 + $0x18] sm:$0xff] %v2122
      %2131 = vst [vmem:[#allocation2 + $0x20] sm:$0xff] %v2123
      %2132 = vst [vmem:[#allocation2 + $0x28] sm:$0xff] %v2124
      %2133 = vst [vmem:[#allocation2 + $0x30] sm:$0xff] %v2125
      %2134 = vst [vmem:[#allocation2 + $0x38] sm:$0xff] %v2126
      %v2135 = vld [vmem:[%s1650] sm:$0xe]
      %v2136 = vld [vmem:[%s1650 + $0x4] sm:$0x1]
      %v2137 = vld [vmem:[%s1650 + $0x8] sm:$0xe]
      %v2138 = vld [vmem:[%s1650 + $0xc] sm:$0x1]
      %v2139 = vld [vmem:[%s1650 + $0x10] sm:$0xe]
      %v2140 = vld [vmem:[%s1650 + $0x14] sm:$0x1]
      %v2141 = vld [vmem:[%s1650 + $0x18] sm:$0xe]
      %v2142 = vld [vmem:[%s1650 + $0x1c] sm:$0x1]
      %v2143 = vld [vmem:[%s1650 + $0x20] sm:$0xe]
      %v2144 = vld [vmem:[%s1650 + $0x24] sm:$0x1]
      %v2145 = vld [vmem:[%s1650 + $0x28] sm:$0xe]
      %v2146 = vld [vmem:[%s1650 + $0x2c] sm:$0x1]
      %v2147 = vld [vmem:[%s1650 + $0x30] sm:$0xe]
      %v2148 = vld [vmem:[%s1650 + $0x34] sm:$0x1]
      %v2149 = vld [vmem:[%s1650 + $0x38] sm:$0xe]
      %v2150 = vld [vmem:[%s1650 + $0x3c] sm:$0x1]
      %v2167 = vrot.slane %v2135, 5
      %v2168 = vrot.slane %v2167, 4
      %v2169 = vrot.slane %v2136, 5
      %v2170 = vsel %vm722, %v2168, %v2169
      %v2171 = vrot.slane %v2137, 5
      %v2172 = vrot.slane %v2171, 4
      %v2173 = vrot.slane %v2138, 5
      %v2174 = vsel %vm722, %v2172, %v2173
      %v2175 = vrot.slane %v2139, 5
      %v2176 = vrot.slane %v2175, 4
      %v2177 = vrot.slane %v2140, 5
      %v2178 = vsel %vm722, %v2176, %v2177
      %v2179 = vrot.slane %v2141, 5
      %v2180 = vrot.slane %v2179, 4
      %v2181 = vrot.slane %v2142, 5
      %v2182 = vsel %vm722, %v2180, %v2181
      %v2183 = vrot.slane %v2143, 5
      %v2184 = vrot.slane %v2183, 4
      %v2185 = vrot.slane %v2144, 5
      %v2186 = vsel %vm722, %v2184, %v2185
      %v2187 = vrot.slane %v2145, 5
      %v2188 = vrot.slane %v2187, 4
      %v2189 = vrot.slane %v2146, 5
      %v2190 = vsel %vm722, %v2188, %v2189
      %v2191 = vrot.slane %v2147, 5
      %v2192 = vrot.slane %v2191, 4
      %v2193 = vrot.slane %v2148, 5
      %v2194 = vsel %vm722, %v2192, %v2193
      %v2195 = vrot.slane %v2149, 5
      %v2196 = vrot.slane %v2195, 4
      %v2197 = vrot.slane %v2150, 5
      %v2198 = vsel %vm722, %v2196, %v2197
      %s2199 = scalar_lea.vmem %s1, 512
      %v2200 = vld [vmem:[%s2199] sm:$0xf]
      %v2201 = vld [vmem:[%s2199 + $0x4] sm:$0xf]
      %v2202 = vld [vmem:[%s2199 + $0x8] sm:$0xf]
      %v2203 = vld [vmem:[%s2199 + $0xc] sm:$0xf]
      %v2204 = vld [vmem:[%s2199 + $0x10] sm:$0xf]
      %v2205 = vld [vmem:[%s2199 + $0x14] sm:$0xf]
      %v2206 = vld [vmem:[%s2199 + $0x18] sm:$0xf]
      %v2207 = vld [vmem:[%s2199 + $0x1c] sm:$0xf]
      %v2208 = vld [vmem:[%s2199 + $0x20] sm:$0xf]
      %v2209 = vld [vmem:[%s2199 + $0x24] sm:$0xf]
      %v2210 = vld [vmem:[%s2199 + $0x28] sm:$0xf]
      %v2211 = vld [vmem:[%s2199 + $0x2c] sm:$0xf]
      %v2212 = vld [vmem:[%s2199 + $0x30] sm:$0xf]
      %v2213 = vld [vmem:[%s2199 + $0x34] sm:$0xf]
      %v2214 = vld [vmem:[%s2199 + $0x38] sm:$0xf]
      %v2215 = vld [vmem:[%s2199 + $0x3c] sm:$0xf]
      %v2216 = vunpack.c.l.b16 %v2170
      %v2217 = vunpack.c.l.b16 %v2174
      %v2218 = vunpack.c.l.b16 %v2178
      %v2219 = vunpack.c.l.b16 %v2182
      %v2220 = vunpack.c.l.b16 %v2186
      %v2221 = vunpack.c.l.b16 %v2190
      %v2222 = vunpack.c.l.b16 %v2194
      %v2223 = vunpack.c.l.b16 %v2198
      %v2224 = vpack.c.b16 %v2217, %v2216
      %v2225 = vpack.c.b16 %v2219, %v2218
      %v2226 = vpack.c.b16 %v2221, %v2220
      %v2227 = vpack.c.b16 %v2223, %v2222
      %v2248 = vunpack.c.l.b16 %v2200
      %v2249 = vunpack.c.l.b16 %v2201
      %v2250 = vunpack.c.l.b16 %v2202
      %v2251 = vunpack.c.l.b16 %v2203
      %v2252 = vunpack.c.l.b16 %v2204
      %v2253 = vunpack.c.l.b16 %v2205
      %v2254 = vunpack.c.l.b16 %v2206
      %v2255 = vunpack.c.l.b16 %v2207
      %v2256 = vunpack.c.l.b16 %v2208
      %v2257 = vunpack.c.l.b16 %v2209
      %v2258 = vunpack.c.l.b16 %v2210
      %v2259 = vunpack.c.l.b16 %v2211
      %v2260 = vunpack.c.l.b16 %v2212
      %v2261 = vunpack.c.l.b16 %v2213
      %v2262 = vunpack.c.l.b16 %v2214
      %v2263 = vunpack.c.l.b16 %v2215
      %v2264 = vpack.c.b16 %v2249, %v2248
      %v2265 = vpack.c.b16 %v2251, %v2250
      %v2266 = vpack.c.b16 %v2253, %v2252
      %v2267 = vpack.c.b16 %v2255, %v2254
      %v2268 = vpack.c.b16 %v2257, %v2256
      %v2269 = vpack.c.b16 %v2259, %v2258
      %v2270 = vpack.c.b16 %v2261, %v2260
      %v2271 = vpack.c.b16 %v2263, %v2262
      %2280 = vmatprep.subr.bf16.mxu0 0
      %2281 = vmatpush1.bf16.msra.mxu0 %v2264
      %2282 = vmatprep.subr.bf16.mxu0 0
      %2283 = vmatpush1.bf16.msra.mxu0 %v2265
      %2284 = vmatprep.subr.bf16.mxu0 0
      %2285 = vmatpush1.bf16.msra.mxu0 %v2266
      %2286 = vmatprep.subr.bf16.mxu0 0
      %2287 = vmatpush1.bf16.msra.mxu0 %v2267
      %2288 = vmatprep.subr.bf16.mxu0 0
      %2289 = vmatpush1.bf16.msra.mxu0 %v2268
      %2290 = vmatprep.subr.bf16.mxu0 0
      %2291 = vmatpush1.bf16.msra.mxu0 %v2269
      %2292 = vmatprep.subr.bf16.mxu0 0
      %2293 = vmatpush1.bf16.msra.mxu0 %v2270
      %2294 = vmatprep.subr.bf16.mxu0 0
      %2295 = vmatpush1.bf16.msra.mxu0 %v2271
      %2296 = vmatprep.subr.bf16.mxu0 0
      %2297 = vmatpush1.bf16.msra.mxu0 0
      %2298 = vmatprep.subr.bf16.mxu0 0
      %2299 = vmatpush1.bf16.msra.mxu0 0
      %2300 = vmatprep.subr.bf16.mxu0 0
      %2301 = vmatpush1.bf16.msra.mxu0 0
      %2302 = vmatprep.subr.bf16.mxu0 0
      %2303 = vmatpush1.bf16.msra.mxu0 0
      %2304 = vmatprep.subr.bf16.mxu0 0
      %2305 = vmatpush1.bf16.msra.mxu0 0
      %2306 = vmatprep.subr.bf16.mxu0 0
      %2307 = vmatpush1.bf16.msra.mxu0 0
      %2308 = vmatprep.subr.bf16.mxu0 0
      %2309 = vmatpush1.bf16.msra.mxu0 0
      %2310 = vmatprep.subr.bf16.mxu0 0
      %2311 = vmatpush1.bf16.msra.mxu0 0
      %2312 = vmatprep.mubr.bf16.mxu0 0
      %2313 = vmatmul.mubr.bf16.gmra.mrb[0].mxu0 %v2224
      %v2314 = vpop.f32.mrb[0].mxu0
      %v2315 = vadd.f32 0.0, %v2314
      %v2316 = vpop.f32.mrb[0].mxu0
      %v2317 = vpop.f32.mrb[0].mxu0
      %v2318 = vadd.f32 0.0, %v2317
      %v2319 = vpop.f32.mrb[0].mxu0
      %2320 = vmatprep.mubr.bf16.mxu0 0
      %2321 = vmatmul.mubr.bf16.gmra.mrb[0].mxu0 %v2225
      %v2322 = vpop.f32.mrb[0].mxu0
      %v2323 = vadd.f32 0.0, %v2322
      %v2324 = vpop.f32.mrb[0].mxu0
      %v2325 = vpop.f32.mrb[0].mxu0
      %v2326 = vadd.f32 0.0, %v2325
      %v2327 = vpop.f32.mrb[0].mxu0
      %2328 = vmatprep.mubr.bf16.mxu0 0
      %2329 = vmatmul.mubr.bf16.gmra.mrb[0].mxu0 %v2226
      %v2330 = vpop.f32.mrb[0].mxu0
      %v2331 = vadd.f32 0.0, %v2330
      %v2332 = vpop.f32.mrb[0].mxu0
      %v2333 = vpop.f32.mrb[0].mxu0
      %v2334 = vadd.f32 0.0, %v2333
      %v2335 = vpop.f32.mrb[0].mxu0
      %2336 = vmatprep.mubr.bf16.mxu0 0
      %2337 = vmatmul.mubr.bf16.gmra.mrb[0].mxu0 %v2227
      %v2338 = vpop.f32.mrb[0].mxu0
      %v2339 = vadd.f32 0.0, %v2338
      %v2340 = vpop.f32.mrb[0].mxu0
      %v2341 = vpop.f32.mrb[0].mxu0
      %v2342 = vadd.f32 0.0, %v2341
      %v2343 = vpop.f32.mrb[0].mxu0
      %2344 = vdwg.mxu0
      %v2345 = vld [vmem:[#allocation2] sm:$0xff]
      %v2346 = vld [vmem:[#allocation2 + $0x8] sm:$0xff]
      %v2347 = vld [vmem:[#allocation2 + $0x10] sm:$0xff]
      %v2348 = vld [vmem:[#allocation2 + $0x18] sm:$0xff]
      %v2349 = vld [vmem:[#allocation2 + $0x20] sm:$0xff]
      %v2350 = vld [vmem:[#allocation2 + $0x28] sm:$0xff]
      %v2351 = vld [vmem:[#allocation2 + $0x30] sm:$0xff]
      %v2352 = vld [vmem:[#allocation2 + $0x38] sm:$0xff]
      %v2353 = vadd.f32 %v2345, %v2315
      %v2354 = vadd.f32 %v2346, %v2318
      %v2355 = vadd.f32 %v2347, %v2323
      %v2356 = vadd.f32 %v2348, %v2326
      %v2357 = vadd.f32 %v2349, %v2331
      %v2358 = vadd.f32 %v2350, %v2334
      %v2359 = vadd.f32 %v2351, %v2339
      %v2360 = vadd.f32 %v2352, %v2342
      %2361 = vst [vmem:[#allocation2] sm:$0xff] %v2353
      %2362 = vst [vmem:[#allocation2 + $0x8] sm:$0xff] %v2354
      %2363 = vst [vmem:[#allocation2 + $0x10] sm:$0xff] %v2355
      %2364 = vst [vmem:[#allocation2 + $0x18] sm:$0xff] %v2356
      %2365 = vst [vmem:[#allocation2 + $0x20] sm:$0xff] %v2357
      %2366 = vst [vmem:[#allocation2 + $0x28] sm:$0xff] %v2358
      %2367 = vst [vmem:[#allocation2 + $0x30] sm:$0xff] %v2359
      %2368 = vst [vmem:[#allocation2 + $0x38] sm:$0xff] %v2360
      %v2369 = vld [vmem:[#allocation2] sm:$0xff]
      %v2370 = vld [vmem:[#allocation2 + $0x8] sm:$0xff]
      %v2371 = vld [vmem:[#allocation2 + $0x10] sm:$0xff]
      %v2372 = vld [vmem:[#allocation2 + $0x18] sm:$0xff]
      %v2373 = vld [vmem:[#allocation2 + $0x20] sm:$0xff]
      %v2374 = vld [vmem:[#allocation2 + $0x28] sm:$0xff]
      %v2375 = vld [vmem:[#allocation2 + $0x30] sm:$0xff]
      %v2376 = vld [vmem:[#allocation2 + $0x38] sm:$0xff]
      %v2377 = vpack.c.bf16 %v2369, %v2369
      %v2378 = vpack.c.bf16 %v2370, %v2370
      %v2379 = vpack.c.bf16 %v2371, %v2371
      %v2380 = vpack.c.bf16 %v2372, %v2372
      %v2381 = vpack.c.bf16 %v2373, %v2373
      %v2382 = vpack.c.bf16 %v2374, %v2374
      %v2383 = vpack.c.bf16 %v2375, %v2375
      %v2384 = vpack.c.bf16 %v2376, %v2376
      %2385 = vst [vmem:[%s204] sm:$0xf] %v2377
      %2386 = vst [vmem:[%s204 + $0x4] sm:$0xf] %v2378
      %2387 = vst [vmem:[%s204 + $0x8] sm:$0xf] %v2379
      %2388 = vst [vmem:[%s204 + $0xc] sm:$0xf] %v2380
      %2389 = vst [vmem:[%s204 + $0x10] sm:$0xf] %v2381
      %2390 = vst [vmem:[%s204 + $0x14] sm:$0xf] %v2382
      %2391 = vst [vmem:[%s204 + $0x18] sm:$0xf] %v2383
      %2392 = vst [vmem:[%s204 + $0x1c] sm:$0xf] %v2384
      %v2393 = vadd.f32 %v2369, %v2370
      %v2394 = vadd.f32 %v2393, %v2371
      %v2395 = vadd.f32 %v2394, %v2372
      %v2396 = vadd.f32 %v2395, %v2373
      %v2397 = vadd.f32 %v2396, %v2374
      %v2398 = vadd.f32 %v2397, %v2375
      %v2399 = vadd.f32 %v2398, %v2376
      %v2400 = vrot.slane %v2399, 4
      %v2401 = vadd.f32 %v2399, %v2400
      %v2402 = vrot.slane %v2401, 2
      %v2403 = vadd.f32 %v2401, %v2402
      %v2404 = vrot.slane %v2403, 1
      %v2405 = vadd.f32 %v2403, %v2404
      %2406 = vst [vmem:[%s212] sm:$0x1] %v2405
      %v2407 = vmul.f32 %v2369, %v2369
      %v2408 = vmul.f32 %v2370, %v2370
      %v2409 = vmul.f32 %v2371, %v2371
      %v2410 = vmul.f32 %v2372, %v2372
      %v2411 = vmul.f32 %v2373, %v2373
      %v2412 = vmul.f32 %v2374, %v2374
      %v2413 = vmul.f32 %v2375, %v2375
      %v2414 = vmul.f32 %v2376, %v2376
      %v2415 = vadd.f32 %v2407, %v2408
      %v2416 = vadd.f32 %v2415, %v2409
      %v2417 = vadd.f32 %v2416, %v2410
      %v2418 = vadd.f32 %v2417, %v2411
      %v2419 = vadd.f32 %v2418, %v2412
      %v2420 = vadd.f32 %v2419, %v2413
      %v2421 = vadd.f32 %v2420, %v2414
      %v2422 = vrot.slane %v2421, 4
      %v2423 = vadd.f32 %v2421, %v2422
      %v2424 = vrot.slane %v2423, 2
      %v2425 = vadd.f32 %v2423, %v2424
      %v2426 = vrot.slane %v2425, 1
      %v2427 = vadd.f32 %v2425, %v2426
      %2428 = vst [vmem:[%s212 + $0x1] sm:$0x1] %v2427
      %s2429 = smul.u32 8, %s20
      %p2430 = scmp.lt.s32.totalorder %s19, 1
      %s2431 = scalar_select %p2430, %s19, 1
      %p2432 = scmp.lt.s32.totalorder %s2429, 7
      %s2433 = scalar_select %p2432, %s2429, 7
      %s2434 = smul.addr %s2431, 8
      %s2435 = sadd.s32 %s2433, %s2434
      %s2436 = smul.addr %s2435, 4
      %s2437 = scalar_lea.vmem %s2, %s2436
      %p2438 = scmp.lt.s32.totalorder %s19, 1
      %s2439 = scalar_select %p2438, %s19, 1
      %p2440 = scmp.lt.s32.totalorder %s20, 0
      %s2441 = scalar_select %p2440, %s20, 0
      %s2442 = sadd.s32 %s2441, %s2439
      %s2443 = smul.addr %s2442, 2
      %s2444 = scalar_lea.vmem %s3, %s2443
      // Predicated region
      $region29: #{down_forward.8} parent=27 // pred_check
        %p2445 = pneg %p94
      $region30: #{down_forward.8} parent=27 // pred_check_branch
        %2447 = sbr.rel (%p2445) target = $region32
      $region31: #{down_forward.8} parent=27 // pred_region
        %s2448 = smul.u32 8, %s20
      $region32: #{down_forward.8} parent=27 // pred_fallthru
        _
      // Predicated region
      $region33: #{down_forward.8} parent=27 // pred_check
        %p2449 = pneg %p122
      $region34: #{down_forward.8} parent=27 // pred_check_branch
        %2451 = sbr.rel (%p2449) target = $region36
      $region35: #{down_forward.8} parent=27 // pred_region
        _
      $region36: #{down_forward.8} parent=27 // pred_fallthru
        _
    $region28: #{down_forward.8} parent=5 // pred_fallthru
      _
    %p2452 = scmp.le.s32.totalorder 2, %s10
    // Predicated region
    $region37: #{down_forward.8} parent=5 // pred_check
      %p2453 = pneg %p2452
    $region38: #{down_forward.8} parent=5 // pred_check_branch
      %2455 = sbr.rel (%p2453) target = $region40
    $region39: #{down_forward.8} parent=5 // pred_region
      %s2456 = ssub.s32 %s10, 2
      // Predicated region
      $region41: #{down_forward.8} parent=39 // pred_check
        %p2457 = pneg %p100
      $region42: #{down_forward.8} parent=39 // pred_check_branch
        %2459 = sbr.rel (%p2457) target = $region44
      $region43: #{down_forward.8} parent=39 // pred_region
        %s2460 = smul.u32 8, %s22
        %p2461 = scmp.lt.s32.totalorder %s21, 1
        %s2462 = scalar_select %p2461, %s21, 1
        %p2463 = scmp.lt.s32.totalorder %s2460, 7
        %s2464 = scalar_select %p2463, %s2460, 7
        %s2465 = smul.addr %s2462, 8
        %s2466 = sadd.s32 %s2464, %s2465
        %s2467 = smul.addr %s2466, 4
        %s2468 = scalar_lea.vmem %s2, %s2467
      $region44: #{down_forward.8} parent=39 // pred_fallthru
        _
      // Predicated region
      $region45: #{down_forward.8} parent=39 // pred_check
        %p2469 = pneg %p128
      $region46: #{down_forward.8} parent=39 // pred_check_branch
        %2471 = sbr.rel (%p2469) target = $region48
      $region47: #{down_forward.8} parent=39 // pred_region
        %p2472 = scmp.lt.s32.totalorder %s21, 1
        %s2473 = scalar_select %p2472, %s21, 1
        %p2474 = scmp.lt.s32.totalorder %s22, 0
        %s2475 = scalar_select %p2474, %s22, 0
        %s2476 = sadd.s32 %s2475, %s2473
        %s2477 = smul.addr %s2476, 2
        %s2478 = scalar_lea.vmem %s3, %s2477
      $region48: #{down_forward.8} parent=39 // pred_fallthru
        _
    $region40: #{down_forward.8} parent=5 // pred_fallthru
      _
  $region6: #{down_forward.8} parent=0 // loop_footer
    %s14 = sadd.s32 1, %s10
  $region7: #{down_forward.8} parent=0 // loop_footer_branch
    %9 = sbr.rel target = $region3
  $region8: #{down_forward.8} parent=0 // loop_exit
    _

</llo_original>
